<compile_context>
chip_gen: v7x
topology: tpu7x:2x2x1
jax: 0.10.0
libtpu: 0.0.40
codegen_flags: <defaults>
</compile_context>

<pallas_src>
import functools

import jax
import jax.numpy as jnp
import numpy as np
from jax.experimental import pallas as pl
from jax.experimental.pallas import tpu as pltpu


def _round_up(x, m):
    return -(-x // m) * m


def _cdiv(a, b):
    return -(-a // b)


def _vmem_capacity_bytes():
    try:
        return int(pltpu.get_tpu_info().vmem_capacity_bytes)
    except Exception:
        return 64 * 1024 * 1024        # conservative (v7x per-TensorCore VMEM)


_VMEM_CAP = _vmem_capacity_bytes()
_VMEM_LIMIT = max(32 * 1024 * 1024,
                  min(int(_VMEM_CAP * 0.75), 100 * 1024 * 1024))  # ~25% headroom
_VMEM_BUDGET = max(16 * 1024 * 1024, int(_VMEM_CAP * 0.50))       # tile sizing budget


# -----------------------------------------------------------------------------
# Pallas kernel 1: tiled matmul + bias with f32 VMEM accumulator.
# grid = (R tiles, N tiles, K tiles); output block resident across K.
# -----------------------------------------------------------------------------
def _matmul_bias_kernel(x_ref, w_ref, b_ref, o_ref, acc_ref):
    k = pl.program_id(2)

    @pl.when(k == 0)
    def _init():
        acc_ref[...] = jnp.zeros_like(acc_ref)

    acc_ref[...] += jnp.dot(x_ref[...], w_ref[...],
                            preferred_element_type=jnp.float32)

    @pl.when(k == pl.num_programs(2) - 1)
    def _finalize():
        o_ref[...] = (acc_ref[...] + b_ref[...]).astype(o_ref.dtype)


def matmul_bias(x, w, b, *, compute_dtype=jnp.float32, out_dtype=jnp.float32,
                target_rt=512, target_nt=512, target_kt=512):
    """x: (R,K), w: (K,N), b: (1,N) -> (R,N) = x @ w + b  (f32 accumulation)."""
    compute_dtype = jnp.dtype(compute_dtype)
    R, K = x.shape
    N = w.shape[1]
    sub = 16 if compute_dtype == jnp.dtype(jnp.bfloat16) else 8

    # N: lane-dense tiles (multiple of 128); pad, slice back afterwards.
    nt = min(target_nt, _round_up(N, 128))
    N_pad = _round_up(N, nt)
    # K: keep whole if it fits one tile, else 128-aligned tiles (zero-padded).
    if K <= target_kt:
        kt, K_pad = K, K
    else:
        kt = target_kt
        K_pad = _round_up(K, kt)
    # R: tile chosen to minimize padded rows (no round_up(R, rt) waste).
    rt = min(_round_up(R, sub), _round_up(_cdiv(R, _cdiv(R, target_rt)), sub))
    R_pad = _round_up(R, rt)

    x = x.astype(compute_dtype)
    w = w.astype(compute_dtype)
    b = b.astype(jnp.float32)
    if (R_pad, K_pad) != (R, K):
        x = jnp.pad(x, ((0, R_pad - R), (0, K_pad - K)))
    if (K_pad, N_pad) != (K, N):
        w = jnp.pad(w, ((0, K_pad - K), (0, N_pad - N)))
    if N_pad != N:
        b = jnp.pad(b, ((0, 0), (0, N_pad - N)))

    out = pl.pallas_call(
        _matmul_bias_kernel,
        out_shape=jax.ShapeDtypeStruct((R_pad, N_pad), out_dtype),
        grid_spec=pltpu.PrefetchScalarGridSpec(
            num_scalar_prefetch=0,
            grid=(R_pad // rt, N_pad // nt, K_pad // kt),
            in_specs=[
                pl.BlockSpec((rt, kt), lambda i, j, k: (i, k)),
                pl.BlockSpec((kt, nt), lambda i, j, k: (k, j)),
                pl.BlockSpec((1, nt), lambda i, j, k: (0, j)),
            ],
            out_specs=pl.BlockSpec((rt, nt), lambda i, j, k: (i, j)),
            scratch_shapes=[pltpu.VMEM((rt, nt), jnp.float32)],
        ),
        compiler_params=pltpu.CompilerParams(
            dimension_semantics=("parallel", "parallel", "arbitrary"),
            vmem_limit_bytes=_VMEM_LIMIT),
    )(x, w, b)
    return out[:R, :N]


# -----------------------------------------------------------------------------
# Pallas kernel 2: the recurrence only.  One grid step == T timesteps.
# gates_t = pregate_t + h_{t-1} @ W_hh^T ; standard LSTM cell update.
# -----------------------------------------------------------------------------
def _lstm_recurrence_kernel(preg_ref, whh_ref, h_all_ref, hn_ref, cn_ref,
                            h_sc, c_sc, *, hidden_p, seq_len, block_t, unroll):
    s = pl.program_id(0)

    @pl.when(s == 0)
    def _init():
        h_sc[...] = jnp.zeros_like(h_sc)
        c_sc[...] = jnp.zeros_like(c_sc)

    Hp = hidden_p
    whh = whh_ref[...]           # hoisted load, resident across the loop
    last_t = seq_len - 1

    def step(t, carry):
        h_prev = h_sc[...]
        c_prev = c_sc[...]
        # Recurrent projection on the MXU (operands may be bf16, f32 acc).
        gates = preg_ref[t] + jnp.dot(h_prev.astype(whh.dtype), whh,
                                      preferred_element_type=jnp.float32)
        # PyTorch gate order [i|f|g|o]; each slice is a lane-dense multiple of
        # 128 (Hp), so the EUP sees full vregs and all stores are unmasked.
        i_g = jax.nn.sigmoid(gates[:, 0 * Hp:1 * Hp])
        f_g = jax.nn.sigmoid(gates[:, 1 * Hp:2 * Hp])
        g_g = jnp.tanh(gates[:, 2 * Hp:3 * Hp])
        o_g = jax.nn.sigmoid(gates[:, 3 * Hp:4 * Hp])
        c = f_g * c_prev + i_g * g_g          # elementwise stays f32
        h = o_g * jnp.tanh(c)
        h_sc[...] = h
        c_sc[...] = c
        h_all_ref[t] = h.astype(h_all_ref.dtype)

        # Final hidden/cell state: write only at the last *real* timestep.
        @pl.when(s * block_t + t == last_t)
        def _final():
            hn_ref[...] = h
            cn_ref[...] = c

        return carry

    jax.lax.fori_loop(0, block_t, step, 0, unroll=unroll)


# -----------------------------------------------------------------------------
# Forward pass (matches TextGenerator.forward)
# -----------------------------------------------------------------------------
def _pad_gates(w, H, Hp):
    """(rows, 4H) laid out [i|f|g|o] -> (rows, 4Hp), each gate zero-padded."""
    rows = w.shape[0]
    w = w.reshape(rows, 4, H)
    w = jnp.pad(w, ((0, 0), (0, 0), (0, Hp - H)))
    return w.reshape(rows, 4 * Hp)


def _pick_block_t(S, Bp, Hp, whh_bytes, budget):
    # double-buffered pregates + h_all blocks (f32) per timestep, plus the
    # resident W_hh (2 buffers by default), h/c carries and hn/cn blocks.
    per_t = 2 * Bp * 4 * Hp * 4 + 2 * Bp * Hp * 4
    fixed = 2 * whh_bytes + 8 * Bp * Hp * 4
    t_max = max(1, (budget - fixed) // per_t)
    return int(max(1, min(S, t_max, 64)))


def text_generator_forward(tokens, params, *, compute_dtype=jnp.float32):
    """tokens: int32 (B,S). Returns (output (B,S,O), (h_n (1,B,H), c_n (1,B,H)))."""
    compute_dtype = jnp.dtype(compute_dtype)
    B, S = tokens.shape
    E = params["embedding"].shape[1]
    H = params["w_hh"].shape[0]
    O = params["w_dec"].shape[1]

    Bp = _round_up(B, 8)                # sublane-dense batch
    Hp = _round_up(H, 128)              # lane-dense hidden (gate slices = full vregs)
    G = 4 * Hp

    # Lane-dense, per-gate zero-padded weights.  Zero-padded columns make the
    # padded h/c lanes exactly 0 at every step, so no leakage into real lanes.
    w_ih_p = _pad_gates(params["w_ih"], H, Hp)                        # (E, 4Hp)
    w_hh_p = jnp.pad(_pad_gates(params["w_hh"], H, Hp),
                     ((0, Hp - H), (0, 0))).astype(compute_dtype)     # (Hp, 4Hp)
    bias_p = _pad_gates(params["bias"], H, Hp)                        # (1, 4Hp)
    w_dec_p = jnp.pad(params["w_dec"], ((0, Hp - H), (0, 0)))         # (Hp, O)

    whh_bytes = Hp * G * jnp.dtype(compute_dtype).itemsize
    T = _pick_block_t(S, Bp, Hp, whh_bytes, _VMEM_BUDGET)
    S_pad = _round_up(S, T)
    unroll = min(T, 8) if Hp <= 256 else min(T, 4)   # partial unroll at real H

    # 1) Embedding lookup, gathered directly time-major.
    # TODO(synk): embedding gather stays in XLA (jnp.take); a Pallas DMA-gather
    # kernel adds nothing at these sizes.
    emb = jnp.take(params["embedding"], tokens.T, axis=0).astype(jnp.float32)  # (S,B,E)
    if Bp != B:
        emb = jnp.pad(emb, ((0, 0), (0, Bp - B), (0, 0)))                      # (S,Bp,E)

    # 2) Hoisted input projection: one tiled MXU matmul for all timesteps.
    # TODO(synk): on v5e, fuse this into the recurrence (stream the embedding
    # block, compute x_t@W_ih in the T-loop) or store pregates in bf16 to cut
    # the f32 pregates HBM round trip.
    pregates = matmul_bias(emb.reshape(S * Bp, E), w_ih_p, bias_p,
                           compute_dtype=compute_dtype).reshape(S, Bp, G)
    if S_pad != S:
        pregates = jnp.pad(pregates, ((0, S_pad - S), (0, 0), (0, 0)))

    # 3) Recurrence: T timesteps per sequential grid step.
    kernel = functools.partial(_lstm_recurrence_kernel, hidden_p=Hp,
                               seq_len=S, block_t=T, unroll=unroll)
    h_all, hn, cn = pl.pallas_call(
        kernel,
        out_shape=(
            jax.ShapeDtypeStruct((S_pad, Bp, Hp), jnp.float32),
            jax.ShapeDtypeStruct((Bp, Hp), jnp.float32),
            jax.ShapeDtypeStruct((Bp, Hp), jnp.float32),
        ),
        grid_spec=pltpu.PrefetchScalarGridSpec(
            num_scalar_prefetch=0,
            grid=(S_pad // T,),
            in_specs=[
                pl.BlockSpec((T, Bp, G), lambda s: (s, 0, 0)),    # pregates block
                # TODO(synk): pipeline_mode=pl.Buffered(1) would drop the dead
                # second buffer of this constant-index W_hh block (v7x VMEM).
                pl.BlockSpec((Hp, G), lambda s: (0, 0)),          # W_hh^T resident
            ],
            out_specs=[
                pl.BlockSpec((T, Bp, Hp), lambda s: (s, 0, 0)),   # h_t for all t
                pl.BlockSpec((Bp, Hp), lambda s: (0, 0)),         # h_n (resident)
                pl.BlockSpec((Bp, Hp), lambda s: (0, 0)),         # c_n (resident)
            ],
            scratch_shapes=[
                pltpu.VMEM((Bp, Hp), jnp.float32),                # h carry
                pltpu.VMEM((Bp, Hp), jnp.float32),                # c carry
            ],
        ),
        compiler_params=pltpu.CompilerParams(
            dimension_semantics=("arbitrary",),                   # serial in time
            vmem_limit_bytes=_VMEM_LIMIT),
    )(pregates, w_hh_p)

    # 4) Hoisted decoder: one tiled, lane-dense matmul over all timesteps.
    #    (O is padded to a multiple of 128 inside matmul_bias, sliced back.)
    logits = matmul_bias(h_all[:S].reshape(S * Bp, Hp), w_dec_p, params["b_dec"],
                         compute_dtype=compute_dtype).reshape(S, Bp, O)

    output = jnp.transpose(logits[:, :B, :], (1, 0, 2))    # (B, S, O), batch_first
    hidden = (hn[:B, :H][None], cn[:B, :H][None])          # (num_layers=1, B, H)
    return output, hidden


# -----------------------------------------------------------------------------
# Pure-JAX reference (for correctness check)
# -----------------------------------------------------------------------------
def reference_forward(tokens, params):
    emb = jnp.take(params["embedding"], tokens, axis=0)   # (B, S, E)
    B, S, E = emb.shape
    H = params["w_hh"].shape[0]

    def step(carry, x_t):
        h, c = carry
        gates = x_t @ params["w_ih"] + h @ params["w_hh"] + params["bias"][0]
        i = jax.nn.sigmoid(gates[:, 0 * H:1 * H])
        f = jax.nn.sigmoid(gates[:, 1 * H:2 * H])
        g = jnp.tanh(gates[:, 2 * H:3 * H])
        o = jax.nn.sigmoid(gates[:, 3 * H:4 * H])
        c = f * c + i * g
        h = o * jnp.tanh(c)
        return (h, c), h

    h0 = jnp.zeros((B, H), jnp.float32)
    c0 = jnp.zeros((B, H), jnp.float32)
    (hn, cn), hs = jax.lax.scan(step, (h0, c0), jnp.transpose(emb, (1, 0, 2)))
    out = hs @ params["w_dec"] + params["b_dec"][0]        # (S, B, O)
    return jnp.transpose(out, (1, 0, 2)), (hn[None], cn[None])


# -----------------------------------------------------------------------------
# Deterministic parameter init (shapes follow the nn.Module __init__)
# -----------------------------------------------------------------------------
def init_params(input_size, output_size, embedding_dim, hidden_size, key):
    ks = jax.random.split(key, 7)
    H = hidden_size
    scale = 1.0 / np.sqrt(H)
    return {
        # nn.Embedding(input_size, embedding_dim)
        "embedding": jax.random.normal(ks[0], (input_size, embedding_dim), jnp.float32),
        # nn.LSTM weights, stored transposed: (E, 4H), (H, 4H); bias = b_ih + b_hh
        "w_ih": jax.random.uniform(ks[1], (embedding_dim, 4 * H), jnp.float32, -scale, scale),
        "w_hh": jax.random.uniform(ks[2], (H, 4 * H), jnp.float32, -scale, scale),
        "bias": (jax.random.uniform(ks[3], (1, 4 * H), jnp.float32, -scale, scale)
                 + jax.random.uniform(ks[4], (1, 4 * H), jnp.float32, -scale, scale)),
        # nn.Linear(hidden_size, output_size), stored transposed: (H, O)
        "w_dec": jax.random.uniform(ks[5], (H, output_size), jnp.float32, -scale, scale),
        "b_dec": jax.random.uniform(ks[6], (1, output_size), jnp.float32, -scale, scale),
    }


if __name__ == "__main__":
    INPUT_SIZE = 50        # vocab size
    OUTPUT_SIZE = 50
    EMBEDDING_DIM = 32
    HIDDEN_SIZE = 32
    BATCH = 2
    SEQ = 8

    key = jax.random.PRNGKey(0)
    pkey, tkey = jax.random.split(key)
    params = init_params(INPUT_SIZE, OUTPUT_SIZE, EMBEDDING_DIM, HIDDEN_SIZE, pkey)
    tokens = jax.random.randint(tkey, (BATCH, SEQ), 0, INPUT_SIZE, dtype=jnp.int32)

    ref_out, (ref_hn, ref_cn) = reference_forward(tokens, params)

    # f32 matmul operands: tight correctness check.
    fwd32 = jax.jit(functools.partial(text_generator_forward,
                                      compute_dtype=jnp.float32))
    out, (hn, cn) = jax.block_until_ready(fwd32(tokens, params))
    np.testing.assert_allclose(np.asarray(out), np.asarray(ref_out), rtol=1e-5, atol=1e-5)
    np.testing.assert_allclose(np.asarray(hn), np.asarray(ref_hn), rtol=1e-5, atol=1e-5)
    np.testing.assert_allclose(np.asarray(cn), np.asarray(ref_cn), rtol=1e-5, atol=1e-5)
    assert out.shape == (BATCH, SEQ, OUTPUT_SIZE)
    assert hn.shape == (1, BATCH, HIDDEN_SIZE) and cn.shape == (1, BATCH, HIDDEN_SIZE)

    # bf16 matmul operands (full-rate MXU path), loosened tolerance as advised.
    fwd16 = jax.jit(functools.partial(text_generator_forward,
                                      compute_dtype=jnp.bfloat16))
    out16, (hn16, cn16) = jax.block_until_ready(fwd16(tokens, params))
    np.testing.assert_allclose(np.asarray(out16), np.asarray(ref_out), rtol=5e-2, atol=5e-2)
    np.testing.assert_allclose(np.asarray(hn16), np.asarray(ref_hn), rtol=5e-2, atol=5e-2)
    np.testing.assert_allclose(np.asarray(cn16), np.asarray(ref_cn), rtol=5e-2, atol=5e-2)

    print("KERNEL_OK")
</pallas_src>

<mosaic_0001>
module attributes {stable_mosaic.version = 11 : i64} {
  func.func @_matmul_bias_kernel(%arg0: i32, %arg1: i32, %arg2: i32, %arg3: memref<64x32xf32, #tpu.memory_space<vmem>>, %arg4: memref<32x512xf32, #tpu.memory_space<vmem>>, %arg5: memref<1x512xf32, #tpu.memory_space<vmem>>, %arg6: memref<64x512xf32, #tpu.memory_space<vmem>>, %arg7: memref<64x512xf32, #tpu.memory_space<vmem>>) attributes {dimension_semantics = [#tpu.dimension_semantics<parallel>, #tpu.dimension_semantics<parallel>, #tpu.dimension_semantics<arbitrary>], iteration_bounds = array<i64: 1, 1, 1>, scalar_prefetch = 0 : i64, scratch_operands = 1 : i64, tpu.core_type = #tpu.core_type<tc>, window_params = [{transform_indices = @transform_0, window_bounds = array<i64: 64, 32>}, {transform_indices = @transform_1, window_bounds = array<i64: 32, 512>}, {transform_indices = @transform_2, window_bounds = array<i64: 1, 512>}, {transform_indices = @transform_3, window_bounds = array<i64: 64, 512>}]} {
    %c0_i32 = arith.constant 0 : i32
    %0 = arith.cmpi eq, %arg2, %c0_i32 : i32
    %1 = arith.extui %0 : i1 to i32
    %c0_i32_0 = arith.constant 0 : i32
    %2 = arith.cmpi ne, %1, %c0_i32_0 : i32
    scf.if %2 {
      %cst_10 = arith.constant 0.000000e+00 : f32
      %12 = vector.broadcast %cst_10 : f32 to vector<64x512xf32>
      %c0_11 = arith.constant 0 : index
      %c0_12 = arith.constant 0 : index
      %13 = vector.load %arg7[%c0_11, %c0_12] : memref<64x512xf32, #tpu.memory_space<vmem>>, vector<64x512xf32>
      tpu.vector_store %arg7[%c0_11, %c0_12], %12 {strides = array<i32>} : memref<64x512xf32, #tpu.memory_space<vmem>>, vector<64x512xf32>,
    } else {
    }
    %c0 = arith.constant 0 : index
    %c0_1 = arith.constant 0 : index
    %3 = vector.load %arg7[%c0, %c0_1] : memref<64x512xf32, #tpu.memory_space<vmem>>, vector<64x512xf32>
    %c0_2 = arith.constant 0 : index
    %c0_3 = arith.constant 0 : index
    %4 = vector.load %arg3[%c0_2, %c0_3] : memref<64x32xf32, #tpu.memory_space<vmem>>, vector<64x32xf32>
    %c0_4 = arith.constant 0 : index
    %c0_5 = arith.constant 0 : index
    %5 = vector.load %arg4[%c0_4, %c0_5] : memref<32x512xf32, #tpu.memory_space<vmem>>, vector<32x512xf32>
    %cst = arith.constant dense<0.000000e+00> : vector<64x512xf32>
    %6 = tpu.matmul %4, %5, %cst {dimension_numbers = #tpu.dot_dimension_numbers<[1], [0], [0], [1], [0, 0, 1, 1], [], []>} : vector<64x32xf32>, vector<32x512xf32>, vector<64x512xf32> -> vector<64x512xf32>
    %7 = arith.addf %3, %6 : vector<64x512xf32>
    %c0_6 = arith.constant 0 : index
    %c0_7 = arith.constant 0 : index
    %8 = vector.load %arg7[%c0_6, %c0_7] : memref<64x512xf32, #tpu.memory_space<vmem>>, vector<64x512xf32>
    tpu.vector_store %arg7[%c0_6, %c0_7], %7 {strides = array<i32>} : memref<64x512xf32, #tpu.memory_space<vmem>>, vector<64x512xf32>,
    %c0_i32_8 = arith.constant 0 : i32
    %9 = arith.cmpi eq, %arg2, %c0_i32_8 : i32
    %10 = arith.extui %9 : i1 to i32
    %c0_i32_9 = arith.constant 0 : i32
    %11 = arith.cmpi ne, %10, %c0_i32_9 : i32
    scf.if %11 {
      %c0_10 = arith.constant 0 : index
      %c0_11 = arith.constant 0 : index
      %12 = vector.load %arg7[%c0_10, %c0_11] : memref<64x512xf32, #tpu.memory_space<vmem>>, vector<64x512xf32>
      %c0_12 = arith.constant 0 : index
      %c0_13 = arith.constant 0 : index
      %13 = vector.load %arg5[%c0_12, %c0_13] : memref<1x512xf32, #tpu.memory_space<vmem>>, vector<1x512xf32>
      %14 = vector.broadcast %13 : vector<1x512xf32> to vector<64x512xf32>
      %15 = arith.addf %12, %14 : vector<64x512xf32>
      %c0_14 = arith.constant 0 : index
      %c0_15 = arith.constant 0 : index
      %16 = vector.load %arg6[%c0_14, %c0_15] : memref<64x512xf32, #tpu.memory_space<vmem>>, vector<64x512xf32>
      tpu.vector_store %arg6[%c0_14, %c0_15], %15 {strides = array<i32>} : memref<64x512xf32, #tpu.memory_space<vmem>>, vector<64x512xf32>,
    } else {
    }
    return
  }
  func.func @transform_0(%arg0: i32, %arg1: i32, %arg2: i32) -> (i32, i32) {
    %c0_i32 = arith.constant 0 : i32
    return %arg0, %arg2 : i32, i32
  }
  func.func @transform_1(%arg0: i32, %arg1: i32, %arg2: i32) -> (i32, i32) {
    %c0_i32 = arith.constant 0 : i32
    return %arg2, %arg1 : i32, i32
  }
  func.func @transform_2(%arg0: i32, %arg1: i32, %arg2: i32) -> (i32, i32) {
    %c0_i32 = arith.constant 0 : i32
    %c0_i32_0 = arith.constant 0 : i32
    return %c0_i32, %arg1 : i32, i32
  }
  func.func @transform_3(%arg0: i32, %arg1: i32, %arg2: i32) -> (i32, i32) {
    %c0_i32 = arith.constant 0 : i32
    return %arg0, %arg1 : i32, i32
  }
}

module attributes {stable_mosaic.version = 11 : i64} {
  func.func @_lstm_recurrence_kernel(%arg0: i32, %arg1: memref<8x8x512xf32, #tpu.memory_space<vmem>>, %arg2: memref<128x512xf32, #tpu.memory_space<vmem>>, %arg3: memref<8x8x128xf32, #tpu.memory_space<vmem>>, %arg4: memref<8x128xf32, #tpu.memory_space<vmem>>, %arg5: memref<8x128xf32, #tpu.memory_space<vmem>>, %arg6: memref<8x128xf32, #tpu.memory_space<vmem>>, %arg7: memref<8x128xf32, #tpu.memory_space<vmem>>) attributes {dimension_semantics = [#tpu.dimension_semantics<arbitrary>], iteration_bounds = array<i64: 1>, scalar_prefetch = 0 : i64, scratch_operands = 2 : i64, tpu.core_type = #tpu.core_type<tc>, window_params = [{transform_indices = @transform_0, window_bounds = array<i64: 8, 8, 512>}, {pipeline_mode = #tpu.pipeline_mode<synchronous>, transform_indices = @transform_1, window_bounds = array<i64: 128, 512>}, {transform_indices = @transform_2, window_bounds = array<i64: 8, 8, 128>}, {pipeline_mode = #tpu.pipeline_mode<synchronous>, transform_indices = @transform_3, window_bounds = array<i64: 8, 128>}, {pipeline_mode = #tpu.pipeline_mode<synchronous>, transform_indices = @transform_4, window_bounds = array<i64: 8, 128>}]} {
    %c0_i32 = arith.constant 0 : i32
    %0 = arith.cmpi eq, %arg0, %c0_i32 : i32
    %1 = arith.extui %0 : i1 to i32
    %c0_i32_0 = arith.constant 0 : i32
    %2 = arith.cmpi ne, %1, %c0_i32_0 : i32
    scf.if %2 {
      %cst_154 = arith.constant 0.000000e+00 : f32
      %348 = vector.broadcast %cst_154 : f32 to vector<8x128xf32>
      %c0_155 = arith.constant 0 : index
      %c0_156 = arith.constant 0 : index
      %349 = vector.load %arg6[%c0_155, %c0_156] : memref<8x128xf32, #tpu.memory_space<vmem>>, vector<8x128xf32>
      tpu.vector_store %arg6[%c0_155, %c0_156], %348 {strides = array<i32>} : memref<8x128xf32, #tpu.memory_space<vmem>>, vector<8x128xf32>,
      %cst_157 = arith.constant 0.000000e+00 : f32
      %350 = vector.broadcast %cst_157 : f32 to vector<8x128xf32>
      %c0_158 = arith.constant 0 : index
      %c0_159 = arith.constant 0 : index
      %351 = vector.load %arg7[%c0_158, %c0_159] : memref<8x128xf32, #tpu.memory_space<vmem>>, vector<8x128xf32>
      tpu.vector_store %arg7[%c0_158, %c0_159], %350 {strides = array<i32>} : memref<8x128xf32, #tpu.memory_space<vmem>>, vector<8x128xf32>,
    } else {
    }
    %c0 = arith.constant 0 : index
    %c0_1 = arith.constant 0 : index
    %3 = vector.load %arg2[%c0, %c0_1] : memref<128x512xf32, #tpu.memory_space<vmem>>, vector<128x512xf32>
    %c0_i32_2 = arith.constant 0 : i32
    %c0_3 = arith.constant 0 : index
    %c0_4 = arith.constant 0 : index
    %4 = vector.load %arg6[%c0_3, %c0_4] : memref<8x128xf32, #tpu.memory_space<vmem>>, vector<8x128xf32>
    %c0_5 = arith.constant 0 : index
    %c0_6 = arith.constant 0 : index
    %5 = vector.load %arg7[%c0_5, %c0_6] : memref<8x128xf32, #tpu.memory_space<vmem>>, vector<8x128xf32>
    %6 = arith.index_cast %c0_i32_2 : i32 to index
    %c0_7 = arith.constant 0 : index
    %c0_8 = arith.constant 0 : index
    %7 = vector.load %arg1[%6, %c0_7, %c0_8] : memref<8x8x512xf32, #tpu.memory_space<vmem>>, vector<1x8x512xf32>
    %8 = vector.shape_cast %7 : vector<1x8x512xf32> to vector<8x512xf32>
    %cst = arith.constant dense<0.000000e+00> : vector<8x512xf32>
    %9 = tpu.matmul %4, %3, %cst {dimension_numbers = #tpu.dot_dimension_numbers<[1], [0], [0], [1], [0, 0, 1, 1], [], []>} : vector<8x128xf32>, vector<128x512xf32>, vector<8x512xf32> -> vector<8x512xf32>
    %10 = arith.addf %8, %9 : vector<8x512xf32>
    %11 = vector.extract_strided_slice %10 {offsets = [0, 0], sizes = [8, 128], strides = [1, 1]} : vector<8x512xf32> to vector<8x128xf32>
    %12 = arith.negf %11 : vector<8x128xf32>
    %13 = math.exp %12 : vector<8x128xf32>
    %cst_9 = arith.constant 1.000000e+00 : f32
    %14 = vector.broadcast %cst_9 : f32 to vector<8x128xf32>
    %15 = arith.addf %14, %13 : vector<8x128xf32>
    %16 = arith.divf %14, %15 : vector<8x128xf32>
    %17 = vector.extract_strided_slice %10 {offsets = [0, 128], sizes = [8, 128], strides = [1, 1]} : vector<8x512xf32> to vector<8x128xf32>
    %18 = arith.negf %17 : vector<8x128xf32>
    %19 = math.exp %18 : vector<8x128xf32>
    %cst_10 = arith.constant 1.000000e+00 : f32
    %20 = vector.broadcast %cst_10 : f32 to vector<8x128xf32>
    %21 = arith.addf %20, %19 : vector<8x128xf32>
    %22 = arith.divf %20, %21 : vector<8x128xf32>
    %23 = vector.extract_strided_slice %10 {offsets = [0, 256], sizes = [8, 128], strides = [1, 1]} : vector<8x512xf32> to vector<8x128xf32>
    %24 = math.tanh %23 : vector<8x128xf32>
    %25 = vector.extract_strided_slice %10 {offsets = [0, 384], sizes = [8, 128], strides = [1, 1]} : vector<8x512xf32> to vector<8x128xf32>
    %26 = arith.negf %25 : vector<8x128xf32>
    %27 = math.exp %26 : vector<8x128xf32>
    %cst_11 = arith.constant 1.000000e+00 : f32
    %28 = vector.broadcast %cst_11 : f32 to vector<8x128xf32>
    %29 = arith.addf %28, %27 : vector<8x128xf32>
    %30 = arith.divf %28, %29 : vector<8x128xf32>
    %31 = arith.mulf %22, %5 : vector<8x128xf32>
    %32 = arith.mulf %16, %24 : vector<8x128xf32>
    %33 = arith.addf %31, %32 : vector<8x128xf32>
    %34 = math.tanh %33 : vector<8x128xf32>
    %35 = arith.mulf %30, %34 : vector<8x128xf32>
    %c0_12 = arith.constant 0 : index
    %c0_13 = arith.constant 0 : index
    %36 = vector.load %arg6[%c0_12, %c0_13] : memref<8x128xf32, #tpu.memory_space<vmem>>, vector<8x128xf32>
    tpu.vector_store %arg6[%c0_12, %c0_13], %35 {strides = array<i32>} : memref<8x128xf32, #tpu.memory_space<vmem>>, vector<8x128xf32>,
    %c0_14 = arith.constant 0 : index
    %c0_15 = arith.constant 0 : index
    %37 = vector.load %arg7[%c0_14, %c0_15] : memref<8x128xf32, #tpu.memory_space<vmem>>, vector<8x128xf32>
    tpu.vector_store %arg7[%c0_14, %c0_15], %33 {strides = array<i32>} : memref<8x128xf32, #tpu.memory_space<vmem>>, vector<8x128xf32>,
    %38 = arith.index_cast %c0_i32_2 : i32 to index
    %c0_16 = arith.constant 0 : index
    %c0_17 = arith.constant 0 : index
    %39 = vector.load %arg3[%38, %c0_16, %c0_17] : memref<8x8x128xf32, #tpu.memory_space<vmem>>, vector<1x8x128xf32>
    %40 = vector.shape_cast %39 : vector<1x8x128xf32> to vector<8x128xf32>
    %41 = vector.shape_cast %35 : vector<8x128xf32> to vector<1x8x128xf32>
    tpu.vector_store %arg3[%38, %c0_16, %c0_17], %41 {strides = array<i32>} : memref<8x8x128xf32, #tpu.memory_space<vmem>>, vector<1x8x128xf32>,
    %c8_i32 = arith.constant 8 : i32
    %42 = arith.muli %arg0, %c8_i32 : i32
    %43 = arith.addi %42, %c0_i32_2 : i32
    %c7_i32 = arith.constant 7 : i32
    %44 = arith.cmpi eq, %43, %c7_i32 : i32
    %45 = arith.extui %44 : i1 to i32
    %c0_i32_18 = arith.constant 0 : i32
    %46 = arith.cmpi ne, %45, %c0_i32_18 : i32
    scf.if %46 {
      %c0_154 = arith.constant 0 : index
      %c0_155 = arith.constant 0 : index
      %348 = vector.load %arg4[%c0_154, %c0_155] : memref<8x128xf32, #tpu.memory_space<vmem>>, vector<8x128xf32>
      tpu.vector_store %arg4[%c0_154, %c0_155], %35 {strides = array<i32>} : memref<8x128xf32, #tpu.memory_space<vmem>>, vector<8x128xf32>,
      %c0_156 = arith.constant 0 : index
      %c0_157 = arith.constant 0 : index
      %349 = vector.load %arg5[%c0_156, %c0_157] : memref<8x128xf32, #tpu.memory_space<vmem>>, vector<8x128xf32>
      tpu.vector_store %arg5[%c0_156, %c0_157], %33 {strides = array<i32>} : memref<8x128xf32, #tpu.memory_space<vmem>>, vector<8x128xf32>,
    } else {
    }
    %c1_i32 = arith.constant 1 : i32
    %c0_19 = arith.constant 0 : index
    %c0_20 = arith.constant 0 : index
    %47 = vector.load %arg6[%c0_19, %c0_20] : memref<8x128xf32, #tpu.memory_space<vmem>>, vector<8x128xf32>
    %c0_21 = arith.constant 0 : index
    %c0_22 = arith.constant 0 : index
    %48 = vector.load %arg7[%c0_21, %c0_22] : memref<8x128xf32, #tpu.memory_space<vmem>>, vector<8x128xf32>
    %49 = arith.index_cast %c1_i32 : i32 to index
    %c0_23 = arith.constant 0 : index
    %c0_24 = arith.constant 0 : index
    %50 = vector.load %arg1[%49, %c0_23, %c0_24] : memref<8x8x512xf32, #tpu.memory_space<vmem>>, vector<1x8x512xf32>
    %51 = vector.shape_cast %50 : vector<1x8x512xf32> to vector<8x512xf32>
    %cst_25 = arith.constant dense<0.000000e+00> : vector<8x512xf32>
    %52 = tpu.matmul %47, %3, %cst_25 {dimension_numbers = #tpu.dot_dimension_numbers<[1], [0], [0], [1], [0, 0, 1, 1], [], []>} : vector<8x128xf32>, vector<128x512xf32>, vector<8x512xf32> -> vector<8x512xf32>
    %53 = arith.addf %51, %52 : vector<8x512xf32>
    %54 = vector.extract_strided_slice %53 {offsets = [0, 0], sizes = [8, 128], strides = [1, 1]} : vector<8x512xf32> to vector<8x128xf32>
    %55 = arith.negf %54 : vector<8x128xf32>
    %56 = math.exp %55 : vector<8x128xf32>
    %cst_26 = arith.constant 1.000000e+00 : f32
    %57 = vector.broadcast %cst_26 : f32 to vector<8x128xf32>
    %58 = arith.addf %57, %56 : vector<8x128xf32>
    %59 = arith.divf %57, %58 : vector<8x128xf32>
    %60 = vector.extract_strided_slice %53 {offsets = [0, 128], sizes = [8, 128], strides = [1, 1]} : vector<8x512xf32> to vector<8x128xf32>
    %61 = arith.negf %60 : vector<8x128xf32>
    %62 = math.exp %61 : vector<8x128xf32>
    %cst_27 = arith.constant 1.000000e+00 : f32
    %63 = vector.broadcast %cst_27 : f32 to vector<8x128xf32>
    %64 = arith.addf %63, %62 : vector<8x128xf32>
    %65 = arith.divf %63, %64 : vector<8x128xf32>
    %66 = vector.extract_strided_slice %53 {offsets = [0, 256], sizes = [8, 128], strides = [1, 1]} : vector<8x512xf32> to vector<8x128xf32>
    %67 = math.tanh %66 : vector<8x128xf32>
    %68 = vector.extract_strided_slice %53 {offsets = [0, 384], sizes = [8, 128], strides = [1, 1]} : vector<8x512xf32> to vector<8x128xf32>
    %69 = arith.negf %68 : vector<8x128xf32>
    %70 = math.exp %69 : vector<8x128xf32>
    %cst_28 = arith.constant 1.000000e+00 : f32
    %71 = vector.broadcast %cst_28 : f32 to vector<8x128xf32>
    %72 = arith.addf %71, %70 : vector<8x128xf32>
    %73 = arith.divf %71, %72 : vector<8x128xf32>
    %74 = arith.mulf %65, %48 : vector<8x128xf32>
    %75 = arith.mulf %59, %67 : vector<8x128xf32>
    %76 = arith.addf %74, %75 : vector<8x128xf32>
    %77 = math.tanh %76 : vector<8x128xf32>
    %78 = arith.mulf %73, %77 : vector<8x128xf32>
    %c0_29 = arith.constant 0 : index
    %c0_30 = arith.constant 0 : index
    %79 = vector.load %arg6[%c0_29, %c0_30] : memref<8x128xf32, #tpu.memory_space<vmem>>, vector<8x128xf32>
    tpu.vector_store %arg6[%c0_29, %c0_30], %78 {strides = array<i32>} : memref<8x128xf32, #tpu.memory_space<vmem>>, vector<8x128xf32>,
    %c0_31 = arith.constant 0 : index
    %c0_32 = arith.constant 0 : index
    %80 = vector.load %arg7[%c0_31, %c0_32] : memref<8x128xf32, #tpu.memory_space<vmem>>, vector<8x128xf32>
    tpu.vector_store %arg7[%c0_31, %c0_32], %76 {strides = array<i32>} : memref<8x128xf32, #tpu.memory_space<vmem>>, vector<8x128xf32>,
    %81 = arith.index_cast %c1_i32 : i32 to index
    %c0_33 = arith.constant 0 : index
    %c0_34 = arith.constant 0 : index
    %82 = vector.load %arg3[%81, %c0_33, %c0_34] : memref<8x8x128xf32, #tpu.memory_space<vmem>>, vector<1x8x128xf32>
    %83 = vector.shape_cast %82 : vector<1x8x128xf32> to vector<8x128xf32>
    %84 = vector.shape_cast %78 : vector<8x128xf32> to vector<1x8x128xf32>
    tpu.vector_store %arg3[%81, %c0_33, %c0_34], %84 {strides = array<i32>} : memref<8x8x128xf32, #tpu.memory_space<vmem>>, vector<1x8x128xf32>,
    %c8_i32_35 = arith.constant 8 : i32
    %85 = arith.muli %arg0, %c8_i32_35 : i32
    %86 = arith.addi %85, %c1_i32 : i32
    %c7_i32_36 = arith.constant 7 : i32
    %87 = arith.cmpi eq, %86, %c7_i32_36 : i32
    %88 = arith.extui %87 : i1 to i32
    %c0_i32_37 = arith.constant 0 : i32
    %89 = arith.cmpi ne, %88, %c0_i32_37 : i32
    scf.if %89 {
      %c0_154 = arith.constant 0 : index
      %c0_155 = arith.constant 0 : index
      %348 = vector.load %arg4[%c0_154, %c0_155] : memref<8x128xf32, #tpu.memory_space<vmem>>, vector<8x128xf32>
      tpu.vector_store %arg4[%c0_154, %c0_155], %78 {strides = array<i32>} : memref<8x128xf32, #tpu.memory_space<vmem>>, vector<8x128xf32>,
      %c0_156 = arith.constant 0 : index
      %c0_157 = arith.constant 0 : index
      %349 = vector.load %arg5[%c0_156, %c0_157] : memref<8x128xf32, #tpu.memory_space<vmem>>, vector<8x128xf32>
      tpu.vector_store %arg5[%c0_156, %c0_157], %76 {strides = array<i32>} : memref<8x128xf32, #tpu.memory_space<vmem>>, vector<8x128xf32>,
    } else {
    }
    %c2_i32 = arith.constant 2 : i32
    %c0_38 = arith.constant 0 : index
    %c0_39 = arith.constant 0 : index
    %90 = vector.load %arg6[%c0_38, %c0_39] : memref<8x128xf32, #tpu.memory_space<vmem>>, vector<8x128xf32>
    %c0_40 = arith.constant 0 : index
    %c0_41 = arith.constant 0 : index
    %91 = vector.load %arg7[%c0_40, %c0_41] : memref<8x128xf32, #tpu.memory_space<vmem>>, vector<8x128xf32>
    %92 = arith.index_cast %c2_i32 : i32 to index
    %c0_42 = arith.constant 0 : index
    %c0_43 = arith.constant 0 : index
    %93 = vector.load %arg1[%92, %c0_42, %c0_43] : memref<8x8x512xf32, #tpu.memory_space<vmem>>, vector<1x8x512xf32>
    %94 = vector.shape_cast %93 : vector<1x8x512xf32> to vector<8x512xf32>
    %cst_44 = arith.constant dense<0.000000e+00> : vector<8x512xf32>
    %95 = tpu.matmul %90, %3, %cst_44 {dimension_numbers = #tpu.dot_dimension_numbers<[1], [0], [0], [1], [0, 0, 1, 1], [], []>} : vector<8x128xf32>, vector<128x512xf32>, vector<8x512xf32> -> vector<8x512xf32>
    %96 = arith.addf %94, %95 : vector<8x512xf32>
    %97 = vector.extract_strided_slice %96 {offsets = [0, 0], sizes = [8, 128], strides = [1, 1]} : vector<8x512xf32> to vector<8x128xf32>
    %98 = arith.negf %97 : vector<8x128xf32>
    %99 = math.exp %98 : vector<8x128xf32>
    %cst_45 = arith.constant 1.000000e+00 : f32
    %100 = vector.broadcast %cst_45 : f32 to vector<8x128xf32>
    %101 = arith.addf %100, %99 : vector<8x128xf32>
    %102 = arith.divf %100, %101 : vector<8x128xf32>
    %103 = vector.extract_strided_slice %96 {offsets = [0, 128], sizes = [8, 128], strides = [1, 1]} : vector<8x512xf32> to vector<8x128xf32>
    %104 = arith.negf %103 : vector<8x128xf32>
    %105 = math.exp %104 : vector<8x128xf32>
    %cst_46 = arith.constant 1.000000e+00 : f32
    %106 = vector.broadcast %cst_46 : f32 to vector<8x128xf32>
    %107 = arith.addf %106, %105 : vector<8x128xf32>
    %108 = arith.divf %106, %107 : vector<8x128xf32>
    %109 = vector.extract_strided_slice %96 {offsets = [0, 256], sizes = [8, 128], strides = [1, 1]} : vector<8x512xf32> to vector<8x128xf32>
    %110 = math.tanh %109 : vector<8x128xf32>
    %111 = vector.extract_strided_slice %96 {offsets = [0, 384], sizes = [8, 128], strides = [1, 1]} : vector<8x512xf32> to vector<8x128xf32>
    %112 = arith.negf %111 : vector<8x128xf32>
    %113 = math.exp %112 : vector<8x128xf32>
    %cst_47 = arith.constant 1.000000e+00 : f32
    %114 = vector.broadcast %cst_47 : f32 to vector<8x128xf32>
    %115 = arith.addf %114, %113 : vector<8x128xf32>
    %116 = arith.divf %114, %115 : vector<8x128xf32>
    %117 = arith.mulf %108, %91 : vector<8x128xf32>
    %118 = arith.mulf %102, %110 : vector<8x128xf32>
    %119 = arith.addf %117, %118 : vector<8x128xf32>
    %120 = math.tanh %119 : vector<8x128xf32>
    %121 = arith.mulf %116, %120 : vector<8x128xf32>
    %c0_48 = arith.constant 0 : index
    %c0_49 = arith.constant 0 : index
    %122 = vector.load %arg6[%c0_48, %c0_49] : memref<8x128xf32, #tpu.memory_space<vmem>>, vector<8x128xf32>
    tpu.vector_store %arg6[%c0_48, %c0_49], %121 {strides = array<i32>} : memref<8x128xf32, #tpu.memory_space<vmem>>, vector<8x128xf32>,
    %c0_50 = arith.constant 0 : index
    %c0_51 = arith.constant 0 : index
    %123 = vector.load %arg7[%c0_50, %c0_51] : memref<8x128xf32, #tpu.memory_space<vmem>>, vector<8x128xf32>
    tpu.vector_store %arg7[%c0_50, %c0_51], %119 {strides = array<i32>} : memref<8x128xf32, #tpu.memory_space<vmem>>, vector<8x128xf32>,
    %124 = arith.index_cast %c2_i32 : i32 to index
    %c0_52 = arith.constant 0 : index
    %c0_53 = arith.constant 0 : index
    %125 = vector.load %arg3[%124, %c0_52, %c0_53] : memref<8x8x128xf32, #tpu.memory_space<vmem>>, vector<1x8x128xf32>
    %126 = vector.shape_cast %125 : vector<1x8x128xf32> to vector<8x128xf32>
    %127 = vector.shape_cast %121 : vector<8x128xf32> to vector<1x8x128xf32>
    tpu.vector_store %arg3[%124, %c0_52, %c0_53], %127 {strides = array<i32>} : memref<8x8x128xf32, #tpu.memory_space<vmem>>, vector<1x8x128xf32>,
    %c8_i32_54 = arith.constant 8 : i32
    %128 = arith.muli %arg0, %c8_i32_54 : i32
    %129 = arith.addi %128, %c2_i32 : i32
    %c7_i32_55 = arith.constant 7 : i32
    %130 = arith.cmpi eq, %129, %c7_i32_55 : i32
    %131 = arith.extui %130 : i1 to i32
    %c0_i32_56 = arith.constant 0 : i32
    %132 = arith.cmpi ne, %131, %c0_i32_56 : i32
    scf.if %132 {
      %c0_154 = arith.constant 0 : index
      %c0_155 = arith.constant 0 : index
      %348 = vector.load %arg4[%c0_154, %c0_155] : memref<8x128xf32, #tpu.memory_space<vmem>>, vector<8x128xf32>
      tpu.vector_store %arg4[%c0_154, %c0_155], %121 {strides = array<i32>} : memref<8x128xf32, #tpu.memory_space<vmem>>, vector<8x128xf32>,
      %c0_156 = arith.constant 0 : index
      %c0_157 = arith.constant 0 : index
      %349 = vector.load %arg5[%c0_156, %c0_157] : memref<8x128xf32, #tpu.memory_space<vmem>>, vector<8x128xf32>
      tpu.vector_store %arg5[%c0_156, %c0_157], %119 {strides = array<i32>} : memref<8x128xf32, #tpu.memory_space<vmem>>, vector<8x128xf32>,
    } else {
    }
    %c3_i32 = arith.constant 3 : i32
    %c0_57 = arith.constant 0 : index
    %c0_58 = arith.constant 0 : index
    %133 = vector.load %arg6[%c0_57, %c0_58] : memref<8x128xf32, #tpu.memory_space<vmem>>, vector<8x128xf32>
    %c0_59 = arith.constant 0 : index
    %c0_60 = arith.constant 0 : index
    %134 = vector.load %arg7[%c0_59, %c0_60] : memref<8x128xf32, #tpu.memory_space<vmem>>, vector<8x128xf32>
    %135 = arith.index_cast %c3_i32 : i32 to index
    %c0_61 = arith.constant 0 : index
    %c0_62 = arith.constant 0 : index
    %136 = vector.load %arg1[%135, %c0_61, %c0_62] : memref<8x8x512xf32, #tpu.memory_space<vmem>>, vector<1x8x512xf32>
    %137 = vector.shape_cast %136 : vector<1x8x512xf32> to vector<8x512xf32>
    %cst_63 = arith.constant dense<0.000000e+00> : vector<8x512xf32>
    %138 = tpu.matmul %133, %3, %cst_63 {dimension_numbers = #tpu.dot_dimension_numbers<[1], [0], [0], [1], [0, 0, 1, 1], [], []>} : vector<8x128xf32>, vector<128x512xf32>, vector<8x512xf32> -> vector<8x512xf32>
    %139 = arith.addf %137, %138 : vector<8x512xf32>
    %140 = vector.extract_strided_slice %139 {offsets = [0, 0], sizes = [8, 128], strides = [1, 1]} : vector<8x512xf32> to vector<8x128xf32>
    %141 = arith.negf %140 : vector<8x128xf32>
    %142 = math.exp %141 : vector<8x128xf32>
    %cst_64 = arith.constant 1.000000e+00 : f32
    %143 = vector.broadcast %cst_64 : f32 to vector<8x128xf32>
    %144 = arith.addf %143, %142 : vector<8x128xf32>
    %145 = arith.divf %143, %144 : vector<8x128xf32>
    %146 = vector.extract_strided_slice %139 {offsets = [0, 128], sizes = [8, 128], strides = [1, 1]} : vector<8x512xf32> to vector<8x128xf32>
    %147 = arith.negf %146 : vector<8x128xf32>
    %148 = math.exp %147 : vector<8x128xf32>
    %cst_65 = arith.constant 1.000000e+00 : f32
    %149 = vector.broadcast %cst_65 : f32 to vector<8x128xf32>
    %150 = arith.addf %149, %148 : vector<8x128xf32>
    %151 = arith.divf %149, %150 : vector<8x128xf32>
    %152 = vector.extract_strided_slice %139 {offsets = [0, 256], sizes = [8, 128], strides = [1, 1]} : vector<8x512xf32> to vector<8x128xf32>
    %153 = math.tanh %152 : vector<8x128xf32>
    %154 = vector.extract_strided_slice %139 {offsets = [0, 384], sizes = [8, 128], strides = [1, 1]} : vector<8x512xf32> to vector<8x128xf32>
    %155 = arith.negf %154 : vector<8x128xf32>
    %156 = math.exp %155 : vector<8x128xf32>
    %cst_66 = arith.constant 1.000000e+00 : f32
    %157 = vector.broadcast %cst_66 : f32 to vector<8x128xf32>
    %158 = arith.addf %157, %156 : vector<8x128xf32>
    %159 = arith.divf %157, %158 : vector<8x128xf32>
    %160 = arith.mulf %151, %134 : vector<8x128xf32>
    %161 = arith.mulf %145, %153 : vector<8x128xf32>
    %162 = arith.addf %160, %161 : vector<8x128xf32>
    %163 = math.tanh %162 : vector<8x128xf32>
    %164 = arith.mulf %159, %163 : vector<8x128xf32>
    %c0_67 = arith.constant 0 : index
    %c0_68 = arith.constant 0 : index
    %165 = vector.load %arg6[%c0_67, %c0_68] : memref<8x128xf32, #tpu.memory_space<vmem>>, vector<8x128xf32>
    tpu.vector_store %arg6[%c0_67, %c0_68], %164 {strides = array<i32>} : memref<8x128xf32, #tpu.memory_space<vmem>>, vector<8x128xf32>,
    %c0_69 = arith.constant 0 : index
    %c0_70 = arith.constant 0 : index
    %166 = vector.load %arg7[%c0_69, %c0_70] : memref<8x128xf32, #tpu.memory_space<vmem>>, vector<8x128xf32>
    tpu.vector_store %arg7[%c0_69, %c0_70], %162 {strides = array<i32>} : memref<8x128xf32, #tpu.memory_space<vmem>>, vector<8x128xf32>,
    %167 = arith.index_cast %c3_i32 : i32 to index
    %c0_71 = arith.constant 0 : index
    %c0_72 = arith.constant 0 : index
    %168 = vector.load %arg3[%167, %c0_71, %c0_72] : memref<8x8x128xf32, #tpu.memory_space<vmem>>, vector<1x8x128xf32>
    %169 = vector.shape_cast %168 : vector<1x8x128xf32> to vector<8x128xf32>
    %170 = vector.shape_cast %164 : vector<8x128xf32> to vector<1x8x128xf32>
    tpu.vector_store %arg3[%167, %c0_71, %c0_72], %170 {strides = array<i32>} : memref<8x8x128xf32, #tpu.memory_space<vmem>>, vector<1x8x128xf32>,
    %c8_i32_73 = arith.constant 8 : i32
    %171 = arith.muli %arg0, %c8_i32_73 : i32
    %172 = arith.addi %171, %c3_i32 : i32
    %c7_i32_74 = arith.constant 7 : i32
    %173 = arith.cmpi eq, %172, %c7_i32_74 : i32
    %174 = arith.extui %173 : i1 to i32
    %c0_i32_75 = arith.constant 0 : i32
    %175 = arith.cmpi ne, %174, %c0_i32_75 : i32
    scf.if %175 {
      %c0_154 = arith.constant 0 : index
      %c0_155 = arith.constant 0 : index
      %348 = vector.load %arg4[%c0_154, %c0_155] : memref<8x128xf32, #tpu.memory_space<vmem>>, vector<8x128xf32>
      tpu.vector_store %arg4[%c0_154, %c0_155], %164 {strides = array<i32>} : memref<8x128xf32, #tpu.memory_space<vmem>>, vector<8x128xf32>,
      %c0_156 = arith.constant 0 : index
      %c0_157 = arith.constant 0 : index
      %349 = vector.load %arg5[%c0_156, %c0_157] : memref<8x128xf32, #tpu.memory_space<vmem>>, vector<8x128xf32>
      tpu.vector_store %arg5[%c0_156, %c0_157], %162 {strides = array<i32>} : memref<8x128xf32, #tpu.memory_space<vmem>>, vector<8x128xf32>,
    } else {
    }
    %c4_i32 = arith.constant 4 : i32
    %c0_76 = arith.constant 0 : index
    %c0_77 = arith.constant 0 : index
    %176 = vector.load %arg6[%c0_76, %c0_77] : memref<8x128xf32, #tpu.memory_space<vmem>>, vector<8x128xf32>
    %c0_78 = arith.constant 0 : index
    %c0_79 = arith.constant 0 : index
    %177 = vector.load %arg7[%c0_78, %c0_79] : memref<8x128xf32, #tpu.memory_space<vmem>>, vector<8x128xf32>
    %178 = arith.index_cast %c4_i32 : i32 to index
    %c0_80 = arith.constant 0 : index
    %c0_81 = arith.constant 0 : index
    %179 = vector.load %arg1[%178, %c0_80, %c0_81] : memref<8x8x512xf32, #tpu.memory_space<vmem>>, vector<1x8x512xf32>
    %180 = vector.shape_cast %179 : vector<1x8x512xf32> to vector<8x512xf32>
    %cst_82 = arith.constant dense<0.000000e+00> : vector<8x512xf32>
    %181 = tpu.matmul %176, %3, %cst_82 {dimension_numbers = #tpu.dot_dimension_numbers<[1], [0], [0], [1], [0, 0, 1, 1], [], []>} : vector<8x128xf32>, vector<128x512xf32>, vector<8x512xf32> -> vector<8x512xf32>
    %182 = arith.addf %180, %181 : vector<8x512xf32>
    %183 = vector.extract_strided_slice %182 {offsets = [0, 0], sizes = [8, 128], strides = [1, 1]} : vector<8x512xf32> to vector<8x128xf32>
    %184 = arith.negf %183 : vector<8x128xf32>
    %185 = math.exp %184 : vector<8x128xf32>
    %cst_83 = arith.constant 1.000000e+00 : f32
    %186 = vector.broadcast %cst_83 : f32 to vector<8x128xf32>
    %187 = arith.addf %186, %185 : vector<8x128xf32>
    %188 = arith.divf %186, %187 : vector<8x128xf32>
    %189 = vector.extract_strided_slice %182 {offsets = [0, 128], sizes = [8, 128], strides = [1, 1]} : vector<8x512xf32> to vector<8x128xf32>
    %190 = arith.negf %189 : vector<8x128xf32>
    %191 = math.exp %190 : vector<8x128xf32>
    %cst_84 = arith.constant 1.000000e+00 : f32
    %192 = vector.broadcast %cst_84 : f32 to vector<8x128xf32>
    %193 = arith.addf %192, %191 : vector<8x128xf32>
    %194 = arith.divf %192, %193 : vector<8x128xf32>
    %195 = vector.extract_strided_slice %182 {offsets = [0, 256], sizes = [8, 128], strides = [1, 1]} : vector<8x512xf32> to vector<8x128xf32>
    %196 = math.tanh %195 : vector<8x128xf32>
    %197 = vector.extract_strided_slice %182 {offsets = [0, 384], sizes = [8, 128], strides = [1, 1]} : vector<8x512xf32> to vector<8x128xf32>
    %198 = arith.negf %197 : vector<8x128xf32>
    %199 = math.exp %198 : vector<8x128xf32>
    %cst_85 = arith.constant 1.000000e+00 : f32
    %200 = vector.broadcast %cst_85 : f32 to vector<8x128xf32>
    %201 = arith.addf %200, %199 : vector<8x128xf32>
    %202 = arith.divf %200, %201 : vector<8x128xf32>
    %203 = arith.mulf %194, %177 : vector<8x128xf32>
    %204 = arith.mulf %188, %196 : vector<8x128xf32>
    %205 = arith.addf %203, %204 : vector<8x128xf32>
    %206 = math.tanh %205 : vector<8x128xf32>
    %207 = arith.mulf %202, %206 : vector<8x128xf32>
    %c0_86 = arith.constant 0 : index
    %c0_87 = arith.constant 0 : index
    %208 = vector.load %arg6[%c0_86, %c0_87] : memref<8x128xf32, #tpu.memory_space<vmem>>, vector<8x128xf32>
    tpu.vector_store %arg6[%c0_86, %c0_87], %207 {strides = array<i32>} : memref<8x128xf32, #tpu.memory_space<vmem>>, vector<8x128xf32>,
    %c0_88 = arith.constant 0 : index
    %c0_89 = arith.constant 0 : index
    %209 = vector.load %arg7[%c0_88, %c0_89] : memref<8x128xf32, #tpu.memory_space<vmem>>, vector<8x128xf32>
    tpu.vector_store %arg7[%c0_88, %c0_89], %205 {strides = array<i32>} : memref<8x128xf32, #tpu.memory_space<vmem>>, vector<8x128xf32>,
    %210 = arith.index_cast %c4_i32 : i32 to index
    %c0_90 = arith.constant 0 : index
    %c0_91 = arith.constant 0 : index
    %211 = vector.load %arg3[%210, %c0_90, %c0_91] : memref<8x8x128xf32, #tpu.memory_space<vmem>>, vector<1x8x128xf32>
    %212 = vector.shape_cast %211 : vector<1x8x128xf32> to vector<8x128xf32>
    %213 = vector.shape_cast %207 : vector<8x128xf32> to vector<1x8x128xf32>
    tpu.vector_store %arg3[%210, %c0_90, %c0_91], %213 {strides = array<i32>} : memref<8x8x128xf32, #tpu.memory_space<vmem>>, vector<1x8x128xf32>,
    %c8_i32_92 = arith.constant 8 : i32
    %214 = arith.muli %arg0, %c8_i32_92 : i32
    %215 = arith.addi %214, %c4_i32 : i32
    %c7_i32_93 = arith.constant 7 : i32
    %216 = arith.cmpi eq, %215, %c7_i32_93 : i32
    %217 = arith.extui %216 : i1 to i32
    %c0_i32_94 = arith.constant 0 : i32
    %218 = arith.cmpi ne, %217, %c0_i32_94 : i32
    scf.if %218 {
      %c0_154 = arith.constant 0 : index
      %c0_155 = arith.constant 0 : index
      %348 = vector.load %arg4[%c0_154, %c0_155] : memref<8x128xf32, #tpu.memory_space<vmem>>, vector<8x128xf32>
      tpu.vector_store %arg4[%c0_154, %c0_155], %207 {strides = array<i32>} : memref<8x128xf32, #tpu.memory_space<vmem>>, vector<8x128xf32>,
      %c0_156 = arith.constant 0 : index
      %c0_157 = arith.constant 0 : index
      %349 = vector.load %arg5[%c0_156, %c0_157] : memref<8x128xf32, #tpu.memory_space<vmem>>, vector<8x128xf32>
      tpu.vector_store %arg5[%c0_156, %c0_157], %205 {strides = array<i32>} : memref<8x128xf32, #tpu.memory_space<vmem>>, vector<8x128xf32>,
    } else {
    }
    %c5_i32 = arith.constant 5 : i32
    %c0_95 = arith.constant 0 : index
    %c0_96 = arith.constant 0 : index
    %219 = vector.load %arg6[%c0_95, %c0_96] : memref<8x128xf32, #tpu.memory_space<vmem>>, vector<8x128xf32>
    %c0_97 = arith.constant 0 : index
    %c0_98 = arith.constant 0 : index
    %220 = vector.load %arg7[%c0_97, %c0_98] : memref<8x128xf32, #tpu.memory_space<vmem>>, vector<8x128xf32>
    %221 = arith.index_cast %c5_i32 : i32 to index
    %c0_99 = arith.constant 0 : index
    %c0_100 = arith.constant 0 : index
    %222 = vector.load %arg1[%221, %c0_99, %c0_100] : memref<8x8x512xf32, #tpu.memory_space<vmem>>, vector<1x8x512xf32>
    %223 = vector.shape_cast %222 : vector<1x8x512xf32> to vector<8x512xf32>
    %cst_101 = arith.constant dense<0.000000e+00> : vector<8x512xf32>
    %224 = tpu.matmul %219, %3, %cst_101 {dimension_numbers = #tpu.dot_dimension_numbers<[1], [0], [0], [1], [0, 0, 1, 1], [], []>} : vector<8x128xf32>, vector<128x512xf32>, vector<8x512xf32> -> vector<8x512xf32>
    %225 = arith.addf %223, %224 : vector<8x512xf32>
    %226 = vector.extract_strided_slice %225 {offsets = [0, 0], sizes = [8, 128], strides = [1, 1]} : vector<8x512xf32> to vector<8x128xf32>
    %227 = arith.negf %226 : vector<8x128xf32>
    %228 = math.exp %227 : vector<8x128xf32>
    %cst_102 = arith.constant 1.000000e+00 : f32
    %229 = vector.broadcast %cst_102 : f32 to vector<8x128xf32>
    %230 = arith.addf %229, %228 : vector<8x128xf32>
    %231 = arith.divf %229, %230 : vector<8x128xf32>
    %232 = vector.extract_strided_slice %225 {offsets = [0, 128], sizes = [8, 128], strides = [1, 1]} : vector<8x512xf32> to vector<8x128xf32>
    %233 = arith.negf %232 : vector<8x128xf32>
    %234 = math.exp %233 : vector<8x128xf32>
    %cst_103 = arith.constant 1.000000e+00 : f32
    %235 = vector.broadcast %cst_103 : f32 to vector<8x128xf32>
    %236 = arith.addf %235, %234 : vector<8x128xf32>
    %237 = arith.divf %235, %236 : vector<8x128xf32>
    %238 = vector.extract_strided_slice %225 {offsets = [0, 256], sizes = [8, 128], strides = [1, 1]} : vector<8x512xf32> to vector<8x128xf32>
    %239 = math.tanh %238 : vector<8x128xf32>
    %240 = vector.extract_strided_slice %225 {offsets = [0, 384], sizes = [8, 128], strides = [1, 1]} : vector<8x512xf32> to vector<8x128xf32>
    %241 = arith.negf %240 : vector<8x128xf32>
    %242 = math.exp %241 : vector<8x128xf32>
    %cst_104 = arith.constant 1.000000e+00 : f32
    %243 = vector.broadcast %cst_104 : f32 to vector<8x128xf32>
    %244 = arith.addf %243, %242 : vector<8x128xf32>
    %245 = arith.divf %243, %244 : vector<8x128xf32>
    %246 = arith.mulf %237, %220 : vector<8x128xf32>
    %247 = arith.mulf %231, %239 : vector<8x128xf32>
    %248 = arith.addf %246, %247 : vector<8x128xf32>
    %249 = math.tanh %248 : vector<8x128xf32>
    %250 = arith.mulf %245, %249 : vector<8x128xf32>
    %c0_105 = arith.constant 0 : index
    %c0_106 = arith.constant 0 : index
    %251 = vector.load %arg6[%c0_105, %c0_106] : memref<8x128xf32, #tpu.memory_space<vmem>>, vector<8x128xf32>
    tpu.vector_store %arg6[%c0_105, %c0_106], %250 {strides = array<i32>} : memref<8x128xf32, #tpu.memory_space<vmem>>, vector<8x128xf32>,
    %c0_107 = arith.constant 0 : index
    %c0_108 = arith.constant 0 : index
    %252 = vector.load %arg7[%c0_107, %c0_108] : memref<8x128xf32, #tpu.memory_space<vmem>>, vector<8x128xf32>
    tpu.vector_store %arg7[%c0_107, %c0_108], %248 {strides = array<i32>} : memref<8x128xf32, #tpu.memory_space<vmem>>, vector<8x128xf32>,
    %253 = arith.index_cast %c5_i32 : i32 to index
    %c0_109 = arith.constant 0 : index
    %c0_110 = arith.constant 0 : index
    %254 = vector.load %arg3[%253, %c0_109, %c0_110] : memref<8x8x128xf32, #tpu.memory_space<vmem>>, vector<1x8x128xf32>
    %255 = vector.shape_cast %254 : vector<1x8x128xf32> to vector<8x128xf32>
    %256 = vector.shape_cast %250 : vector<8x128xf32> to vector<1x8x128xf32>
    tpu.vector_store %arg3[%253, %c0_109, %c0_110], %256 {strides = array<i32>} : memref<8x8x128xf32, #tpu.memory_space<vmem>>, vector<1x8x128xf32>,
    %c8_i32_111 = arith.constant 8 : i32
    %257 = arith.muli %arg0, %c8_i32_111 : i32
    %258 = arith.addi %257, %c5_i32 : i32
    %c7_i32_112 = arith.constant 7 : i32
    %259 = arith.cmpi eq, %258, %c7_i32_112 : i32
    %260 = arith.extui %259 : i1 to i32
    %c0_i32_113 = arith.constant 0 : i32
    %261 = arith.cmpi ne, %260, %c0_i32_113 : i32
    scf.if %261 {
      %c0_154 = arith.constant 0 : index
      %c0_155 = arith.constant 0 : index
      %348 = vector.load %arg4[%c0_154, %c0_155] : memref<8x128xf32, #tpu.memory_space<vmem>>, vector<8x128xf32>
      tpu.vector_store %arg4[%c0_154, %c0_155], %250 {strides = array<i32>} : memref<8x128xf32, #tpu.memory_space<vmem>>, vector<8x128xf32>,
      %c0_156 = arith.constant 0 : index
      %c0_157 = arith.constant 0 : index
      %349 = vector.load %arg5[%c0_156, %c0_157] : memref<8x128xf32, #tpu.memory_space<vmem>>, vector<8x128xf32>
      tpu.vector_store %arg5[%c0_156, %c0_157], %248 {strides = array<i32>} : memref<8x128xf32, #tpu.memory_space<vmem>>, vector<8x128xf32>,
    } else {
    }
    %c6_i32 = arith.constant 6 : i32
    %c0_114 = arith.constant 0 : index
    %c0_115 = arith.constant 0 : index
    %262 = vector.load %arg6[%c0_114, %c0_115] : memref<8x128xf32, #tpu.memory_space<vmem>>, vector<8x128xf32>
    %c0_116 = arith.constant 0 : index
    %c0_117 = arith.constant 0 : index
    %263 = vector.load %arg7[%c0_116, %c0_117] : memref<8x128xf32, #tpu.memory_space<vmem>>, vector<8x128xf32>
    %264 = arith.index_cast %c6_i32 : i32 to index
    %c0_118 = arith.constant 0 : index
    %c0_119 = arith.constant 0 : index
    %265 = vector.load %arg1[%264, %c0_118, %c0_119] : memref<8x8x512xf32, #tpu.memory_space<vmem>>, vector<1x8x512xf32>
    %266 = vector.shape_cast %265 : vector<1x8x512xf32> to vector<8x512xf32>
    %cst_120 = arith.constant dense<0.000000e+00> : vector<8x512xf32>
    %267 = tpu.matmul %262, %3, %cst_120 {dimension_numbers = #tpu.dot_dimension_numbers<[1], [0], [0], [1], [0, 0, 1, 1], [], []>} : vector<8x128xf32>, vector<128x512xf32>, vector<8x512xf32> -> vector<8x512xf32>
    %268 = arith.addf %266, %267 : vector<8x512xf32>
    %269 = vector.extract_strided_slice %268 {offsets = [0, 0], sizes = [8, 128], strides = [1, 1]} : vector<8x512xf32> to vector<8x128xf32>
    %270 = arith.negf %269 : vector<8x128xf32>
    %271 = math.exp %270 : vector<8x128xf32>
    %cst_121 = arith.constant 1.000000e+00 : f32
    %272 = vector.broadcast %cst_121 : f32 to vector<8x128xf32>
    %273 = arith.addf %272, %271 : vector<8x128xf32>
    %274 = arith.divf %272, %273 : vector<8x128xf32>
    %275 = vector.extract_strided_slice %268 {offsets = [0, 128], sizes = [8, 128], strides = [1, 1]} : vector<8x512xf32> to vector<8x128xf32>
    %276 = arith.negf %275 : vector<8x128xf32>
    %277 = math.exp %276 : vector<8x128xf32>
    %cst_122 = arith.constant 1.000000e+00 : f32
    %278 = vector.broadcast %cst_122 : f32 to vector<8x128xf32>
    %279 = arith.addf %278, %277 : vector<8x128xf32>
    %280 = arith.divf %278, %279 : vector<8x128xf32>
    %281 = vector.extract_strided_slice %268 {offsets = [0, 256], sizes = [8, 128], strides = [1, 1]} : vector<8x512xf32> to vector<8x128xf32>
    %282 = math.tanh %281 : vector<8x128xf32>
    %283 = vector.extract_strided_slice %268 {offsets = [0, 384], sizes = [8, 128], strides = [1, 1]} : vector<8x512xf32> to vector<8x128xf32>
    %284 = arith.negf %283 : vector<8x128xf32>
    %285 = math.exp %284 : vector<8x128xf32>
    %cst_123 = arith.constant 1.000000e+00 : f32
    %286 = vector.broadcast %cst_123 : f32 to vector<8x128xf32>
    %287 = arith.addf %286, %285 : vector<8x128xf32>
    %288 = arith.divf %286, %287 : vector<8x128xf32>
    %289 = arith.mulf %280, %263 : vector<8x128xf32>
    %290 = arith.mulf %274, %282 : vector<8x128xf32>
    %291 = arith.addf %289, %290 : vector<8x128xf32>
    %292 = math.tanh %291 : vector<8x128xf32>
    %293 = arith.mulf %288, %292 : vector<8x128xf32>
    %c0_124 = arith.constant 0 : index
    %c0_125 = arith.constant 0 : index
    %294 = vector.load %arg6[%c0_124, %c0_125] : memref<8x128xf32, #tpu.memory_space<vmem>>, vector<8x128xf32>
    tpu.vector_store %arg6[%c0_124, %c0_125], %293 {strides = array<i32>} : memref<8x128xf32, #tpu.memory_space<vmem>>, vector<8x128xf32>,
    %c0_126 = arith.constant 0 : index
    %c0_127 = arith.constant 0 : index
    %295 = vector.load %arg7[%c0_126, %c0_127] : memref<8x128xf32, #tpu.memory_space<vmem>>, vector<8x128xf32>
    tpu.vector_store %arg7[%c0_126, %c0_127], %291 {strides = array<i32>} : memref<8x128xf32, #tpu.memory_space<vmem>>, vector<8x128xf32>,
    %296 = arith.index_cast %c6_i32 : i32 to index
    %c0_128 = arith.constant 0 : index
    %c0_129 = arith.constant 0 : index
    %297 = vector.load %arg3[%296, %c0_128, %c0_129] : memref<8x8x128xf32, #tpu.memory_space<vmem>>, vector<1x8x128xf32>
    %298 = vector.shape_cast %297 : vector<1x8x128xf32> to vector<8x128xf32>
    %299 = vector.shape_cast %293 : vector<8x128xf32> to vector<1x8x128xf32>
    tpu.vector_store %arg3[%296, %c0_128, %c0_129], %299 {strides = array<i32>} : memref<8x8x128xf32, #tpu.memory_space<vmem>>, vector<1x8x128xf32>,
    %c8_i32_130 = arith.constant 8 : i32
    %300 = arith.muli %arg0, %c8_i32_130 : i32
    %301 = arith.addi %300, %c6_i32 : i32
    %c7_i32_131 = arith.constant 7 : i32
    %302 = arith.cmpi eq, %301, %c7_i32_131 : i32
    %303 = arith.extui %302 : i1 to i32
    %c0_i32_132 = arith.constant 0 : i32
    %304 = arith.cmpi ne, %303, %c0_i32_132 : i32
    scf.if %304 {
      %c0_154 = arith.constant 0 : index
      %c0_155 = arith.constant 0 : index
      %348 = vector.load %arg4[%c0_154, %c0_155] : memref<8x128xf32, #tpu.memory_space<vmem>>, vector<8x128xf32>
      tpu.vector_store %arg4[%c0_154, %c0_155], %293 {strides = array<i32>} : memref<8x128xf32, #tpu.memory_space<vmem>>, vector<8x128xf32>,
      %c0_156 = arith.constant 0 : index
      %c0_157 = arith.constant 0 : index
      %349 = vector.load %arg5[%c0_156, %c0_157] : memref<8x128xf32, #tpu.memory_space<vmem>>, vector<8x128xf32>
      tpu.vector_store %arg5[%c0_156, %c0_157], %291 {strides = array<i32>} : memref<8x128xf32, #tpu.memory_space<vmem>>, vector<8x128xf32>,
    } else {
    }
    %c7_i32_133 = arith.constant 7 : i32
    %c0_134 = arith.constant 0 : index
    %c0_135 = arith.constant 0 : index
    %305 = vector.load %arg6[%c0_134, %c0_135] : memref<8x128xf32, #tpu.memory_space<vmem>>, vector<8x128xf32>
    %c0_136 = arith.constant 0 : index
    %c0_137 = arith.constant 0 : index
    %306 = vector.load %arg7[%c0_136, %c0_137] : memref<8x128xf32, #tpu.memory_space<vmem>>, vector<8x128xf32>
    %307 = arith.index_cast %c7_i32_133 : i32 to index
    %c0_138 = arith.constant 0 : index
    %c0_139 = arith.constant 0 : index
    %308 = vector.load %arg1[%307, %c0_138, %c0_139] : memref<8x8x512xf32, #tpu.memory_space<vmem>>, vector<1x8x512xf32>
    %309 = vector.shape_cast %308 : vector<1x8x512xf32> to vector<8x512xf32>
    %cst_140 = arith.constant dense<0.000000e+00> : vector<8x512xf32>
    %310 = tpu.matmul %305, %3, %cst_140 {dimension_numbers = #tpu.dot_dimension_numbers<[1], [0], [0], [1], [0, 0, 1, 1], [], []>} : vector<8x128xf32>, vector<128x512xf32>, vector<8x512xf32> -> vector<8x512xf32>
    %311 = arith.addf %309, %310 : vector<8x512xf32>
    %312 = vector.extract_strided_slice %311 {offsets = [0, 0], sizes = [8, 128], strides = [1, 1]} : vector<8x512xf32> to vector<8x128xf32>
    %313 = arith.negf %312 : vector<8x128xf32>
    %314 = math.exp %313 : vector<8x128xf32>
    %cst_141 = arith.constant 1.000000e+00 : f32
    %315 = vector.broadcast %cst_141 : f32 to vector<8x128xf32>
    %316 = arith.addf %315, %314 : vector<8x128xf32>
    %317 = arith.divf %315, %316 : vector<8x128xf32>
    %318 = vector.extract_strided_slice %311 {offsets = [0, 128], sizes = [8, 128], strides = [1, 1]} : vector<8x512xf32> to vector<8x128xf32>
    %319 = arith.negf %318 : vector<8x128xf32>
    %320 = math.exp %319 : vector<8x128xf32>
    %cst_142 = arith.constant 1.000000e+00 : f32
    %321 = vector.broadcast %cst_142 : f32 to vector<8x128xf32>
    %322 = arith.addf %321, %320 : vector<8x128xf32>
    %323 = arith.divf %321, %322 : vector<8x128xf32>
    %324 = vector.extract_strided_slice %311 {offsets = [0, 256], sizes = [8, 128], strides = [1, 1]} : vector<8x512xf32> to vector<8x128xf32>
    %325 = math.tanh %324 : vector<8x128xf32>
    %326 = vector.extract_strided_slice %311 {offsets = [0, 384], sizes = [8, 128], strides = [1, 1]} : vector<8x512xf32> to vector<8x128xf32>
    %327 = arith.negf %326 : vector<8x128xf32>
    %328 = math.exp %327 : vector<8x128xf32>
    %cst_143 = arith.constant 1.000000e+00 : f32
    %329 = vector.broadcast %cst_143 : f32 to vector<8x128xf32>
    %330 = arith.addf %329, %328 : vector<8x128xf32>
    %331 = arith.divf %329, %330 : vector<8x128xf32>
    %332 = arith.mulf %323, %306 : vector<8x128xf32>
    %333 = arith.mulf %317, %325 : vector<8x128xf32>
    %334 = arith.addf %332, %333 : vector<8x128xf32>
    %335 = math.tanh %334 : vector<8x128xf32>
    %336 = arith.mulf %331, %335 : vector<8x128xf32>
    %c0_144 = arith.constant 0 : index
    %c0_145 = arith.constant 0 : index
    %337 = vector.load %arg6[%c0_144, %c0_145] : memref<8x128xf32, #tpu.memory_space<vmem>>, vector<8x128xf32>
    tpu.vector_store %arg6[%c0_144, %c0_145], %336 {strides = array<i32>} : memref<8x128xf32, #tpu.memory_space<vmem>>, vector<8x128xf32>,
    %c0_146 = arith.constant 0 : index
    %c0_147 = arith.constant 0 : index
    %338 = vector.load %arg7[%c0_146, %c0_147] : memref<8x128xf32, #tpu.memory_space<vmem>>, vector<8x128xf32>
    tpu.vector_store %arg7[%c0_146, %c0_147], %334 {strides = array<i32>} : memref<8x128xf32, #tpu.memory_space<vmem>>, vector<8x128xf32>,
    %339 = arith.index_cast %c7_i32_133 : i32 to index
    %c0_148 = arith.constant 0 : index
    %c0_149 = arith.constant 0 : index
    %340 = vector.load %arg3[%339, %c0_148, %c0_149] : memref<8x8x128xf32, #tpu.memory_space<vmem>>, vector<1x8x128xf32>
    %341 = vector.shape_cast %340 : vector<1x8x128xf32> to vector<8x128xf32>
    %342 = vector.shape_cast %336 : vector<8x128xf32> to vector<1x8x128xf32>
    tpu.vector_store %arg3[%339, %c0_148, %c0_149], %342 {strides = array<i32>} : memref<8x8x128xf32, #tpu.memory_space<vmem>>, vector<1x8x128xf32>,
    %c8_i32_150 = arith.constant 8 : i32
    %343 = arith.muli %arg0, %c8_i32_150 : i32
    %344 = arith.addi %343, %c7_i32_133 : i32
    %c7_i32_151 = arith.constant 7 : i32
    %345 = arith.cmpi eq, %344, %c7_i32_151 : i32
    %346 = arith.extui %345 : i1 to i32
    %c0_i32_152 = arith.constant 0 : i32
    %347 = arith.cmpi ne, %346, %c0_i32_152 : i32
    scf.if %347 {
      %c0_154 = arith.constant 0 : index
      %c0_155 = arith.constant 0 : index
      %348 = vector.load %arg4[%c0_154, %c0_155] : memref<8x128xf32, #tpu.memory_space<vmem>>, vector<8x128xf32>
      tpu.vector_store %arg4[%c0_154, %c0_155], %336 {strides = array<i32>} : memref<8x128xf32, #tpu.memory_space<vmem>>, vector<8x128xf32>,
      %c0_156 = arith.constant 0 : index
      %c0_157 = arith.constant 0 : index
      %349 = vector.load %arg5[%c0_156, %c0_157] : memref<8x128xf32, #tpu.memory_space<vmem>>, vector<8x128xf32>
      tpu.vector_store %arg5[%c0_156, %c0_157], %334 {strides = array<i32>} : memref<8x128xf32, #tpu.memory_space<vmem>>, vector<8x128xf32>,
    } else {
    }
    %c8_i32_153 = arith.constant 8 : i32
    return
  }
  func.func @transform_0(%arg0: i32) -> (i32, i32, i32) {
    %c0_i32 = arith.constant 0 : i32
    %c0_i32_0 = arith.constant 0 : i32
    %c0_i32_1 = arith.constant 0 : i32
    return %arg0, %c0_i32, %c0_i32_0 : i32, i32, i32
  }
  func.func @transform_1(%arg0: i32) -> (i32, i32) {
    %c0_i32 = arith.constant 0 : i32
    %c0_i32_0 = arith.constant 0 : i32
    %c0_i32_1 = arith.constant 0 : i32
    return %c0_i32, %c0_i32_0 : i32, i32
  }
  func.func @transform_2(%arg0: i32) -> (i32, i32, i32) {
    %c0_i32 = arith.constant 0 : i32
    %c0_i32_0 = arith.constant 0 : i32
    %c0_i32_1 = arith.constant 0 : i32
    return %arg0, %c0_i32, %c0_i32_0 : i32, i32, i32
  }
  func.func @transform_3(%arg0: i32) -> (i32, i32) {
    %c0_i32 = arith.constant 0 : i32
    %c0_i32_0 = arith.constant 0 : i32
    %c0_i32_1 = arith.constant 0 : i32
    return %c0_i32, %c0_i32_0 : i32, i32
  }
  func.func @transform_4(%arg0: i32) -> (i32, i32) {
    %c0_i32 = arith.constant 0 : i32
    %c0_i32_0 = arith.constant 0 : i32
    %c0_i32_1 = arith.constant 0 : i32
    return %c0_i32, %c0_i32_0 : i32, i32
  }
}

module attributes {stable_mosaic.version = 11 : i64} {
  func.func @_matmul_bias_kernel(%arg0: i32, %arg1: i32, %arg2: i32, %arg3: memref<64x128xf32, #tpu.memory_space<vmem>>, %arg4: memref<128x128xf32, #tpu.memory_space<vmem>>, %arg5: memref<1x128xf32, #tpu.memory_space<vmem>>, %arg6: memref<64x128xf32, #tpu.memory_space<vmem>>, %arg7: memref<64x128xf32, #tpu.memory_space<vmem>>) attributes {dimension_semantics = [#tpu.dimension_semantics<parallel>, #tpu.dimension_semantics<parallel>, #tpu.dimension_semantics<arbitrary>], iteration_bounds = array<i64: 1, 1, 1>, scalar_prefetch = 0 : i64, scratch_operands = 1 : i64, tpu.core_type = #tpu.core_type<tc>, window_params = [{transform_indices = @transform_0, window_bounds = array<i64: 64, 128>}, {transform_indices = @transform_1, window_bounds = array<i64: 128, 128>}, {transform_indices = @transform_2, window_bounds = array<i64: 1, 128>}, {transform_indices = @transform_3, window_bounds = array<i64: 64, 128>}]} {
    %c0_i32 = arith.constant 0 : i32
    %0 = arith.cmpi eq, %arg2, %c0_i32 : i32
    %1 = arith.extui %0 : i1 to i32
    %c0_i32_0 = arith.constant 0 : i32
    %2 = arith.cmpi ne, %1, %c0_i32_0 : i32
    scf.if %2 {
      %cst_10 = arith.constant 0.000000e+00 : f32
      %12 = vector.broadcast %cst_10 : f32 to vector<64x128xf32>
      %c0_11 = arith.constant 0 : index
      %c0_12 = arith.constant 0 : index
      %13 = vector.load %arg7[%c0_11, %c0_12] : memref<64x128xf32, #tpu.memory_space<vmem>>, vector<64x128xf32>
      tpu.vector_store %arg7[%c0_11, %c0_12], %12 {strides = array<i32>} : memref<64x128xf32, #tpu.memory_space<vmem>>, vector<64x128xf32>,
    } else {
    }
    %c0 = arith.constant 0 : index
    %c0_1 = arith.constant 0 : index
    %3 = vector.load %arg7[%c0, %c0_1] : memref<64x128xf32, #tpu.memory_space<vmem>>, vector<64x128xf32>
    %c0_2 = arith.constant 0 : index
    %c0_3 = arith.constant 0 : index
    %4 = vector.load %arg3[%c0_2, %c0_3] : memref<64x128xf32, #tpu.memory_space<vmem>>, vector<64x128xf32>
    %c0_4 = arith.constant 0 : index
    %c0_5 = arith.constant 0 : index
    %5 = vector.load %arg4[%c0_4, %c0_5] : memref<128x128xf32, #tpu.memory_space<vmem>>, vector<128x128xf32>
    %cst = arith.constant dense<0.000000e+00> : vector<64x128xf32>
    %6 = tpu.matmul %4, %5, %cst {dimension_numbers = #tpu.dot_dimension_numbers<[1], [0], [0], [1], [0, 0, 1, 1], [], []>} : vector<64x128xf32>, vector<128x128xf32>, vector<64x128xf32> -> vector<64x128xf32>
    %7 = arith.addf %3, %6 : vector<64x128xf32>
    %c0_6 = arith.constant 0 : index
    %c0_7 = arith.constant 0 : index
    %8 = vector.load %arg7[%c0_6, %c0_7] : memref<64x128xf32, #tpu.memory_space<vmem>>, vector<64x128xf32>
    tpu.vector_store %arg7[%c0_6, %c0_7], %7 {strides = array<i32>} : memref<64x128xf32, #tpu.memory_space<vmem>>, vector<64x128xf32>,
    %c0_i32_8 = arith.constant 0 : i32
    %9 = arith.cmpi eq, %arg2, %c0_i32_8 : i32
    %10 = arith.extui %9 : i1 to i32
    %c0_i32_9 = arith.constant 0 : i32
    %11 = arith.cmpi ne, %10, %c0_i32_9 : i32
    scf.if %11 {
      %c0_10 = arith.constant 0 : index
      %c0_11 = arith.constant 0 : index
      %12 = vector.load %arg7[%c0_10, %c0_11] : memref<64x128xf32, #tpu.memory_space<vmem>>, vector<64x128xf32>
      %c0_12 = arith.constant 0 : index
      %c0_13 = arith.constant 0 : index
      %13 = vector.load %arg5[%c0_12, %c0_13] : memref<1x128xf32, #tpu.memory_space<vmem>>, vector<1x128xf32>
      %14 = vector.broadcast %13 : vector<1x128xf32> to vector<64x128xf32>
      %15 = arith.addf %12, %14 : vector<64x128xf32>
      %c0_14 = arith.constant 0 : index
      %c0_15 = arith.constant 0 : index
      %16 = vector.load %arg6[%c0_14, %c0_15] : memref<64x128xf32, #tpu.memory_space<vmem>>, vector<64x128xf32>
      tpu.vector_store %arg6[%c0_14, %c0_15], %15 {strides = array<i32>} : memref<64x128xf32, #tpu.memory_space<vmem>>, vector<64x128xf32>,
    } else {
    }
    return
  }
  func.func @transform_0(%arg0: i32, %arg1: i32, %arg2: i32) -> (i32, i32) {
    %c0_i32 = arith.constant 0 : i32
    return %arg0, %arg2 : i32, i32
  }
  func.func @transform_1(%arg0: i32, %arg1: i32, %arg2: i32) -> (i32, i32) {
    %c0_i32 = arith.constant 0 : i32
    return %arg2, %arg1 : i32, i32
  }
  func.func @transform_2(%arg0: i32, %arg1: i32, %arg2: i32) -> (i32, i32) {
    %c0_i32 = arith.constant 0 : i32
    %c0_i32_0 = arith.constant 0 : i32
    return %c0_i32, %arg1 : i32, i32
  }
  func.func @transform_3(%arg0: i32, %arg1: i32, %arg2: i32) -> (i32, i32) {
    %c0_i32 = arith.constant 0 : i32
    return %arg0, %arg1 : i32, i32
  }
}

</mosaic_0001>

<llo_original>
// kernel: text_generator_forward.5
$region0: #{text_generator_forward.5}
  #allocation0 [shape = 'u32[]', space=smem, size = 0x4, offset = 0x4, fixed_abs, tag = 'smem constant byte address 0x4 - core index']
  #allocation1 [shape = 'u32[144,128]{1,0:T(1,128)}', space=vmem, size = 0x12000, scoped, tag = 'internal scratch']
  #allocation2 [shape = 'f32[64,128]{1,0:T(8,128)}', space=vmem, size = 0x8000, scoped, tag = 'scratch operand']
  %s0 = inlined_call_operand.vmem [shape: f32[64,128], index: 0, kind: input, shape index: {}]
  %s1 = inlined_call_operand.vmem [shape: f32[128,128], index: 1, kind: input, shape index: {}]
  %s2 = inlined_call_operand.vmem [shape: f32[1,128], index: 2, kind: input, shape index: {}]
  %s3 = inlined_call_operand.vmem [shape: f32[64,128], index: 3, kind: output, shape index: {}]
  %s4 = sld [smem:[#allocation0]]
  $region30: #{text_generator_forward.5} parent=0
    _
  %s6 = ssub.s32 1, %s4
  %s7 = scalar_select 0, %s6, %s4
  // Predicated region
  $region2: #{text_generator_forward.5} parent=0 // pred_check
    _
  $region3: #{text_generator_forward.5} parent=0 // pred_check_branch
    %9 = sbr.rel (0) target = $region5
  $region4: #{text_generator_forward.5} parent=0 // pred_region
    _
  $region5: #{text_generator_forward.5} parent=0 // pred_fallthru
    _
  // Predicated region
  $region6: #{text_generator_forward.5} parent=0 // pred_check
    _
  $region7: #{text_generator_forward.5} parent=0 // pred_check_branch
    %11 = sbr.rel (0) target = $region9
  $region8: #{text_generator_forward.5} parent=0 // pred_region
    _
  $region9: #{text_generator_forward.5} parent=0 // pred_fallthru
    _
  // Predicated region
  $region10: #{text_generator_forward.5} parent=0 // pred_check
    _
  $region11: #{text_generator_forward.5} parent=0 // pred_check_branch
    %13 = sbr.rel (0) target = $region13
  $region12: #{text_generator_forward.5} parent=0 // pred_region
    _
  $region13: #{text_generator_forward.5} parent=0 // pred_fallthru
    _
  %p14 = scmp.eq.s32.totalorder 0, 0
  // Predicated region
  $region14: #{text_generator_forward.5} parent=0 // pred_check
    %p15 = pneg %p14
  $region15: #{text_generator_forward.5} parent=0 // pred_check_branch
    %17 = sbr.rel (%p15) target = $region17
  $region16: #{text_generator_forward.5} parent=0 // pred_region
    %18 = vst [vmem:[#allocation2] sm:$0xff] 0.0
    %19 = vst [vmem:[#allocation2 + $0x8] sm:$0xff] 0.0
    %20 = vst [vmem:[#allocation2 + $0x10] sm:$0xff] 0.0
    %21 = vst [vmem:[#allocation2 + $0x18] sm:$0xff] 0.0
    %22 = vst [vmem:[#allocation2 + $0x20] sm:$0xff] 0.0
    %23 = vst [vmem:[#allocation2 + $0x28] sm:$0xff] 0.0
    %24 = vst [vmem:[#allocation2 + $0x30] sm:$0xff] 0.0
    %25 = vst [vmem:[#allocation2 + $0x38] sm:$0xff] 0.0
  $region17: #{text_generator_forward.5} parent=0 // pred_fallthru
    _
  %v26 = vld [vmem:[#allocation2] sm:$0xff]
  %v27 = vld [vmem:[#allocation2 + $0x8] sm:$0xff]
  %v28 = vld [vmem:[#allocation2 + $0x10] sm:$0xff]
  %v29 = vld [vmem:[#allocation2 + $0x18] sm:$0xff]
  %v30 = vld [vmem:[#allocation2 + $0x20] sm:$0xff]
  %v31 = vld [vmem:[#allocation2 + $0x28] sm:$0xff]
  %v32 = vld [vmem:[#allocation2 + $0x30] sm:$0xff]
  %v33 = vld [vmem:[#allocation2 + $0x38] sm:$0xff]
  %v34 = vld [vmem:[%s0] sm:$0xff]
  %v35 = vld [vmem:[%s0 + $0x8] sm:$0xff]
  %v36 = vld [vmem:[%s0 + $0x10] sm:$0xff]
  %v37 = vld [vmem:[%s0 + $0x18] sm:$0xff]
  %v38 = vld [vmem:[%s0 + $0x20] sm:$0xff]
  %v39 = vld [vmem:[%s0 + $0x28] sm:$0xff]
  %v40 = vld [vmem:[%s0 + $0x30] sm:$0xff]
  %v41 = vld [vmem:[%s0 + $0x38] sm:$0xff]
  %v42 = vld [vmem:[%s1] sm:$0xff]
  %v43 = vld [vmem:[%s1 + $0x8] sm:$0xff]
  %v44 = vld [vmem:[%s1 + $0x10] sm:$0xff]
  %v45 = vld [vmem:[%s1 + $0x18] sm:$0xff]
  %v46 = vld [vmem:[%s1 + $0x20] sm:$0xff]
  %v47 = vld [vmem:[%s1 + $0x28] sm:$0xff]
  %v48 = vld [vmem:[%s1 + $0x30] sm:$0xff]
  %v49 = vld [vmem:[%s1 + $0x38] sm:$0xff]
  %v50 = vld [vmem:[%s1 + $0x40] sm:$0xff]
  %v51 = vld [vmem:[%s1 + $0x48] sm:$0xff]
  %v52 = vld [vmem:[%s1 + $0x50] sm:$0xff]
  %v53 = vld [vmem:[%s1 + $0x58] sm:$0xff]
  %v54 = vld [vmem:[%s1 + $0x60] sm:$0xff]
  %v55 = vld [vmem:[%s1 + $0x68] sm:$0xff]
  %v56 = vld [vmem:[%s1 + $0x70] sm:$0xff]
  %v57 = vld [vmem:[%s1 + $0x78] sm:$0xff]
  %58 = vmatprep.subr.mxu0 0.0
  %59 = vmatpush1.msra.mxu0 %v42
  %60 = vmatprep.subr.mxu0 0.0
  %61 = vmatpush1.msra.mxu0 %v43
  %62 = vmatprep.subr.mxu0 0.0
  %63 = vmatpush1.msra.mxu0 %v44
  %64 = vmatprep.subr.mxu0 0.0
  %65 = vmatpush1.msra.mxu0 %v45
  %66 = vmatprep.subr.mxu0 0.0
  %67 = vmatpush1.msra.mxu0 %v46
  %68 = vmatprep.subr.mxu0 0.0
  %69 = vmatpush1.msra.mxu0 %v47
  %70 = vmatprep.subr.mxu0 0.0
  %71 = vmatpush1.msra.mxu0 %v48
  %72 = vmatprep.subr.mxu0 0.0
  %73 = vmatpush1.msra.mxu0 %v49
  %74 = vmatprep.subr.mxu0 0.0
  %75 = vmatpush1.msra.mxu0 %v50
  %76 = vmatprep.subr.mxu0 0.0
  %77 = vmatpush1.msra.mxu0 %v51
  %78 = vmatprep.subr.mxu0 0.0
  %79 = vmatpush1.msra.mxu0 %v52
  %80 = vmatprep.subr.mxu0 0.0
  %81 = vmatpush1.msra.mxu0 %v53
  %82 = vmatprep.subr.mxu0 0.0
  %83 = vmatpush1.msra.mxu0 %v54
  %84 = vmatprep.subr.mxu0 0.0
  %85 = vmatpush1.msra.mxu0 %v55
  %86 = vmatprep.subr.mxu0 0.0
  %87 = vmatpush1.msra.mxu0 %v56
  %88 = vmatprep.subr.mxu0 0.0
  %89 = vmatpush1.msra.mxu0 %v57
  %90 = vmatprep.subr.mxu0 0.0
  %91 = vmatpush1.msra.mxu0 0.0
  %92 = vmatprep.subr.mxu0 0.0
  %93 = vmatpush1.msra.mxu0 0.0
  %94 = vmatprep.subr.mxu0 0.0
  %95 = vmatpush1.msra.mxu0 0.0
  %96 = vmatprep.subr.mxu0 0.0
  %97 = vmatpush1.msra.mxu0 0.0
  %98 = vmatprep.subr.mxu0 0.0
  %99 = vmatpush1.msra.mxu0 0.0
  %100 = vmatprep.subr.mxu0 0.0
  %101 = vmatpush1.msra.mxu0 0.0
  %102 = vmatprep.subr.mxu0 0.0
  %103 = vmatpush1.msra.mxu0 0.0
  %104 = vmatprep.subr.mxu0 0.0
  %105 = vmatpush1.msra.mxu0 0.0
  %106 = vmatprep.subr.mxu0 0.0
  %107 = vmatpush1.msra.mxu0 0.0
  %108 = vmatprep.subr.mxu0 0.0
  %109 = vmatpush1.msra.mxu0 0.0
  %110 = vmatprep.subr.mxu0 0.0
  %111 = vmatpush1.msra.mxu0 0.0
  %112 = vmatprep.subr.mxu0 0.0
  %113 = vmatpush1.msra.mxu0 0.0
  %114 = vmatprep.subr.mxu0 0.0
  %115 = vmatpush1.msra.mxu0 0.0
  %116 = vmatprep.subr.mxu0 0.0
  %117 = vmatpush1.msra.mxu0 0.0
  %118 = vmatprep.subr.mxu0 0.0
  %119 = vmatpush1.msra.mxu0 0.0
  %120 = vmatprep.subr.mxu0 0.0
  %121 = vmatpush1.msra.mxu0 0.0
  %122 = vmatprep.mubr.f32.mxu0 0.0
  %123 = vmatmul.mubr.f32.gmra.mrb[0].mxu0 %v34
  %v124 = vpop.f32.mrb[0].mxu0
  %v125 = vadd.f32 0.0, %v124
  %v126 = vpop.f32.mrb[0].mxu0
  %127 = vmatprep.mubr.f32.mxu0 0.0
  %128 = vmatmul.mubr.f32.gmra.mrb[0].mxu0 %v35
  %v129 = vpop.f32.mrb[0].mxu0
  %v130 = vadd.f32 0.0, %v129
  %v131 = vpop.f32.mrb[0].mxu0
  %132 = vmatprep.mubr.f32.mxu0 0.0
  %133 = vmatmul.mubr.f32.gmra.mrb[0].mxu0 %v36
  %v134 = vpop.f32.mrb[0].mxu0
  %v135 = vadd.f32 0.0, %v134
  %v136 = vpop.f32.mrb[0].mxu0
  %137 = vmatprep.mubr.f32.mxu0 0.0
  %138 = vmatmul.mubr.f32.gmra.mrb[0].mxu0 %v37
  %v139 = vpop.f32.mrb[0].mxu0
  %v140 = vadd.f32 0.0, %v139
  %v141 = vpop.f32.mrb[0].mxu0
  %142 = vmatprep.mubr.f32.mxu0 0.0
  %143 = vmatmul.mubr.f32.gmra.mrb[0].mxu0 %v38
  %v144 = vpop.f32.mrb[0].mxu0
  %v145 = vadd.f32 0.0, %v144
  %v146 = vpop.f32.mrb[0].mxu0
  %147 = vmatprep.mubr.f32.mxu0 0.0
  %148 = vmatmul.mubr.f32.gmra.mrb[0].mxu0 %v39
  %v149 = vpop.f32.mrb[0].mxu0
  %v150 = vadd.f32 0.0, %v149
  %v151 = vpop.f32.mrb[0].mxu0
  %152 = vmatprep.mubr.f32.mxu0 0.0
  %153 = vmatmul.mubr.f32.gmra.mrb[0].mxu0 %v40
  %v154 = vpop.f32.mrb[0].mxu0
  %v155 = vadd.f32 0.0, %v154
  %v156 = vpop.f32.mrb[0].mxu0
  %157 = vmatprep.mubr.f32.mxu0 0.0
  %158 = vmatmul.mubr.f32.gmra.mrb[0].mxu0 %v41
  %v159 = vpop.f32.mrb[0].mxu0
  %v160 = vadd.f32 0.0, %v159
  %v161 = vpop.f32.mrb[0].mxu0
  %162 = vdwg.mxu0
  %v163 = vadd.f32 %v26, %v125
  %v164 = vadd.f32 %v27, %v130
  %v165 = vadd.f32 %v28, %v135
  %v166 = vadd.f32 %v29, %v140
  %v167 = vadd.f32 %v30, %v145
  %v168 = vadd.f32 %v31, %v150
  %v169 = vadd.f32 %v32, %v155
  %v170 = vadd.f32 %v33, %v160
  %171 = vst [vmem:[#allocation2] sm:$0xff] %v163
  %172 = vst [vmem:[#allocation2 + $0x8] sm:$0xff] %v164
  %173 = vst [vmem:[#allocation2 + $0x10] sm:$0xff] %v165
  %174 = vst [vmem:[#allocation2 + $0x18] sm:$0xff] %v166
  %175 = vst [vmem:[#allocation2 + $0x20] sm:$0xff] %v167
  %176 = vst [vmem:[#allocation2 + $0x28] sm:$0xff] %v168
  %177 = vst [vmem:[#allocation2 + $0x30] sm:$0xff] %v169
  %178 = vst [vmem:[#allocation2 + $0x38] sm:$0xff] %v170
  // Predicated region
  $region18: #{text_generator_forward.5} parent=0 // pred_check
    %p179 = pneg %p14
  $region19: #{text_generator_forward.5} parent=0 // pred_check_branch
    %181 = sbr.rel (%p179) target = $region21
  $region20: #{text_generator_forward.5} parent=0 // pred_region
    %v182 = vld [vmem:[#allocation2] sm:$0xff]
    %v183 = vld [vmem:[#allocation2 + $0x8] sm:$0xff]
    %v184 = vld [vmem:[#allocation2 + $0x10] sm:$0xff]
    %v185 = vld [vmem:[#allocation2 + $0x18] sm:$0xff]
    %v186 = vld [vmem:[#allocation2 + $0x20] sm:$0xff]
    %v187 = vld [vmem:[#allocation2 + $0x28] sm:$0xff]
    %v188 = vld [vmem:[#allocation2 + $0x30] sm:$0xff]
    %v189 = vld [vmem:[#allocation2 + $0x38] sm:$0xff]
    %v190 = vld [vmem:[%s2] sm:$0x1]
    %v192 = vlaneseq
    %v193 = vshrl.u32 %v192, 7
    %v194 = vsub.s32 0, %v193
    %v195 = vrot.slane %v190, %v194
    %v197 = vadd.f32 %v182, %v195
    %v198 = vadd.f32 %v183, %v195
    %v199 = vadd.f32 %v184, %v195
    %v200 = vadd.f32 %v185, %v195
    %v201 = vadd.f32 %v186, %v195
    %v202 = vadd.f32 %v187, %v195
    %v203 = vadd.f32 %v188, %v195
    %v204 = vadd.f32 %v189, %v195
    %205 = vst [vmem:[%s3] sm:$0xff] %v197
    %206 = vst [vmem:[%s3 + $0x8] sm:$0xff] %v198
    %207 = vst [vmem:[%s3 + $0x10] sm:$0xff] %v199
    %208 = vst [vmem:[%s3 + $0x18] sm:$0xff] %v200
    %209 = vst [vmem:[%s3 + $0x20] sm:$0xff] %v201
    %210 = vst [vmem:[%s3 + $0x28] sm:$0xff] %v202
    %211 = vst [vmem:[%s3 + $0x30] sm:$0xff] %v203
    %212 = vst [vmem:[%s3 + $0x38] sm:$0xff] %v204
  $region21: #{text_generator_forward.5} parent=0 // pred_fallthru
    _
  // Predicated region
  $region22: #{text_generator_forward.5} parent=0 // pred_check
    _
  $region23: #{text_generator_forward.5} parent=0 // pred_check_branch
    %214 = sbr.rel (0) target = $region25
  $region24: #{text_generator_forward.5} parent=0 // pred_region
    _
  $region25: #{text_generator_forward.5} parent=0 // pred_fallthru
    _
  // Predicated region
  $region26: #{text_generator_forward.5} parent=0 // pred_check
    _
  $region27: #{text_generator_forward.5} parent=0 // pred_check_branch
    %216 = sbr.rel (0) target = $region29
  $region28: #{text_generator_forward.5} parent=0 // pred_region
    _
  $region29: #{text_generator_forward.5} parent=0 // pred_fallthru
    _

// kernel: text_generator_forward.3
$region0: #{text_generator_forward.3}
  #allocation0 [shape = 'u32[]', space=smem, size = 0x4, offset = 0x4, fixed_abs, tag = 'smem constant byte address 0x4 - core index']
  #allocation1 [shape = 'u32[144,128]{1,0:T(1,128)}', space=vmem, size = 0x12000, scoped, tag = 'internal scratch']
  #allocation2 [shape = 'f32[64,512]{1,0:T(8,128)}', space=vmem, size = 0x20000, scoped, tag = 'scratch operand']
  %s0 = inlined_call_operand.vmem [shape: f32[64,32], index: 0, kind: input, shape index: {}]
  %s1 = inlined_call_operand.vmem [shape: f32[32,512], index: 1, kind: input, shape index: {}]
  %s2 = inlined_call_operand.vmem [shape: f32[1,512], index: 2, kind: input, shape index: {}]
  %s3 = inlined_call_operand.vmem [shape: f32[64,512], index: 3, kind: output, shape index: {}]
  %s4 = sld [smem:[#allocation0]]
  $region30: #{text_generator_forward.3} parent=0
    _
  %s6 = ssub.s32 1, %s4
  %s7 = scalar_select 0, %s6, %s4
  // Predicated region
  $region2: #{text_generator_forward.3} parent=0 // pred_check
    _
  $region3: #{text_generator_forward.3} parent=0 // pred_check_branch
    %9 = sbr.rel (0) target = $region5
  $region4: #{text_generator_forward.3} parent=0 // pred_region
    _
  $region5: #{text_generator_forward.3} parent=0 // pred_fallthru
    _
  // Predicated region
  $region6: #{text_generator_forward.3} parent=0 // pred_check
    _
  $region7: #{text_generator_forward.3} parent=0 // pred_check_branch
    %11 = sbr.rel (0) target = $region9
  $region8: #{text_generator_forward.3} parent=0 // pred_region
    _
  $region9: #{text_generator_forward.3} parent=0 // pred_fallthru
    _
  // Predicated region
  $region10: #{text_generator_forward.3} parent=0 // pred_check
    _
  $region11: #{text_generator_forward.3} parent=0 // pred_check_branch
    %13 = sbr.rel (0) target = $region13
  $region12: #{text_generator_forward.3} parent=0 // pred_region
    _
  $region13: #{text_generator_forward.3} parent=0 // pred_fallthru
    _
  %p14 = scmp.eq.s32.totalorder 0, 0
  // Predicated region
  $region14: #{text_generator_forward.3} parent=0 // pred_check
    %p15 = pneg %p14
  $region15: #{text_generator_forward.3} parent=0 // pred_check_branch
    %17 = sbr.rel (%p15) target = $region17
  $region16: #{text_generator_forward.3} parent=0 // pred_region
    %18 = vst [vmem:[#allocation2] sm:$0xff] 0.0
    %19 = vst [vmem:[#allocation2 + $0x8] sm:$0xff] 0.0
    %20 = vst [vmem:[#allocation2 + $0x10] sm:$0xff] 0.0
    %21 = vst [vmem:[#allocation2 + $0x18] sm:$0xff] 0.0
    %22 = vst [vmem:[#allocation2 + $0x20] sm:$0xff] 0.0
    %23 = vst [vmem:[#allocation2 + $0x28] sm:$0xff] 0.0
    %24 = vst [vmem:[#allocation2 + $0x30] sm:$0xff] 0.0
    %25 = vst [vmem:[#allocation2 + $0x38] sm:$0xff] 0.0
    %26 = vst [vmem:[#allocation2 + $0x40] sm:$0xff] 0.0
    %27 = vst [vmem:[#allocation2 + $0x48] sm:$0xff] 0.0
    %28 = vst [vmem:[#allocation2 + $0x50] sm:$0xff] 0.0
    %29 = vst [vmem:[#allocation2 + $0x58] sm:$0xff] 0.0
    %30 = vst [vmem:[#allocation2 + $0x60] sm:$0xff] 0.0
    %31 = vst [vmem:[#allocation2 + $0x68] sm:$0xff] 0.0
    %32 = vst [vmem:[#allocation2 + $0x70] sm:$0xff] 0.0
    %33 = vst [vmem:[#allocation2 + $0x78] sm:$0xff] 0.0
    %34 = vst [vmem:[#allocation2 + $0x80] sm:$0xff] 0.0
    %35 = vst [vmem:[#allocation2 + $0x88] sm:$0xff] 0.0
    %36 = vst [vmem:[#allocation2 + $0x90] sm:$0xff] 0.0
    %37 = vst [vmem:[#allocation2 + $0x98] sm:$0xff] 0.0
    %38 = vst [vmem:[#allocation2 + $0xa0] sm:$0xff] 0.0
    %39 = vst [vmem:[#allocation2 + $0xa8] sm:$0xff] 0.0
    %40 = vst [vmem:[#allocation2 + $0xb0] sm:$0xff] 0.0
    %41 = vst [vmem:[#allocation2 + $0xb8] sm:$0xff] 0.0
    %42 = vst [vmem:[#allocation2 + $0xc0] sm:$0xff] 0.0
    %43 = vst [vmem:[#allocation2 + $0xc8] sm:$0xff] 0.0
    %44 = vst [vmem:[#allocation2 + $0xd0] sm:$0xff] 0.0
    %45 = vst [vmem:[#allocation2 + $0xd8] sm:$0xff] 0.0
    %46 = vst [vmem:[#allocation2 + $0xe0] sm:$0xff] 0.0
    %47 = vst [vmem:[#allocation2 + $0xe8] sm:$0xff] 0.0
    %48 = vst [vmem:[#allocation2 + $0xf0] sm:$0xff] 0.0
    %49 = vst [vmem:[#allocation2 + $0xf8] sm:$0xff] 0.0
  $region17: #{text_generator_forward.3} parent=0 // pred_fallthru
    _
  %v50 = vld [vmem:[#allocation2] sm:$0xff]
  %v51 = vld [vmem:[#allocation2 + $0x8] sm:$0xff]
  %v52 = vld [vmem:[#allocation2 + $0x10] sm:$0xff]
  %v53 = vld [vmem:[#allocation2 + $0x18] sm:$0xff]
  %v54 = vld [vmem:[#allocation2 + $0x20] sm:$0xff]
  %v55 = vld [vmem:[#allocation2 + $0x28] sm:$0xff]
  %v56 = vld [vmem:[#allocation2 + $0x30] sm:$0xff]
  %v57 = vld [vmem:[#allocation2 + $0x38] sm:$0xff]
  %v58 = vld [vmem:[#allocation2 + $0x40] sm:$0xff]
  %v59 = vld [vmem:[#allocation2 + $0x48] sm:$0xff]
  %v60 = vld [vmem:[#allocation2 + $0x50] sm:$0xff]
  %v61 = vld [vmem:[#allocation2 + $0x58] sm:$0xff]
  %v62 = vld [vmem:[#allocation2 + $0x60] sm:$0xff]
  %v63 = vld [vmem:[#allocation2 + $0x68] sm:$0xff]
  %v64 = vld [vmem:[#allocation2 + $0x70] sm:$0xff]
  %v65 = vld [vmem:[#allocation2 + $0x78] sm:$0xff]
  %v66 = vld [vmem:[#allocation2 + $0x80] sm:$0xff]
  %v67 = vld [vmem:[#allocation2 + $0x88] sm:$0xff]
  %v68 = vld [vmem:[#allocation2 + $0x90] sm:$0xff]
  %v69 = vld [vmem:[#allocation2 + $0x98] sm:$0xff]
  %v70 = vld [vmem:[#allocation2 + $0xa0] sm:$0xff]
  %v71 = vld [vmem:[#allocation2 + $0xa8] sm:$0xff]
  %v72 = vld [vmem:[#allocation2 + $0xb0] sm:$0xff]
  %v73 = vld [vmem:[#allocation2 + $0xb8] sm:$0xff]
  %v74 = vld [vmem:[#allocation2 + $0xc0] sm:$0xff]
  %v75 = vld [vmem:[#allocation2 + $0xc8] sm:$0xff]
  %v76 = vld [vmem:[#allocation2 + $0xd0] sm:$0xff]
  %v77 = vld [vmem:[#allocation2 + $0xd8] sm:$0xff]
  %v78 = vld [vmem:[#allocation2 + $0xe0] sm:$0xff]
  %v79 = vld [vmem:[#allocation2 + $0xe8] sm:$0xff]
  %v80 = vld [vmem:[#allocation2 + $0xf0] sm:$0xff]
  %v81 = vld [vmem:[#allocation2 + $0xf8] sm:$0xff]
  %v82 = vld [vmem:[%s0] sm:$0xff]
  %v83 = vld [vmem:[%s0 + $0x8] sm:$0xff]
  %v84 = vld [vmem:[%s0 + $0x10] sm:$0xff]
  %v85 = vld [vmem:[%s0 + $0x18] sm:$0xff]
  %v86 = vld [vmem:[%s0 + $0x20] sm:$0xff]
  %v87 = vld [vmem:[%s0 + $0x28] sm:$0xff]
  %v88 = vld [vmem:[%s0 + $0x30] sm:$0xff]
  %v89 = vld [vmem:[%s0 + $0x38] sm:$0xff]
  %v90 = vld [vmem:[%s1] sm:$0xff]
  %v91 = vld [vmem:[%s1 + $0x8] sm:$0xff]
  %v92 = vld [vmem:[%s1 + $0x10] sm:$0xff]
  %v93 = vld [vmem:[%s1 + $0x18] sm:$0xff]
  %v94 = vld [vmem:[%s1 + $0x20] sm:$0xff]
  %v95 = vld [vmem:[%s1 + $0x28] sm:$0xff]
  %v96 = vld [vmem:[%s1 + $0x30] sm:$0xff]
  %v97 = vld [vmem:[%s1 + $0x38] sm:$0xff]
  %v98 = vld [vmem:[%s1 + $0x40] sm:$0xff]
  %v99 = vld [vmem:[%s1 + $0x48] sm:$0xff]
  %v100 = vld [vmem:[%s1 + $0x50] sm:$0xff]
  %v101 = vld [vmem:[%s1 + $0x58] sm:$0xff]
  %v102 = vld [vmem:[%s1 + $0x60] sm:$0xff]
  %v103 = vld [vmem:[%s1 + $0x68] sm:$0xff]
  %v104 = vld [vmem:[%s1 + $0x70] sm:$0xff]
  %v105 = vld [vmem:[%s1 + $0x78] sm:$0xff]
  %vm106 = vcmask 261120
  %v108 = vsel %vm106, %v82, 0
  %v111 = vsel %vm106, %v83, 0
  %v114 = vsel %vm106, %v84, 0
  %v117 = vsel %vm106, %v85, 0
  %v120 = vsel %vm106, %v86, 0
  %v123 = vsel %vm106, %v87, 0
  %v126 = vsel %vm106, %v88, 0
  %v129 = vsel %vm106, %v89, 0
  %131 = vmatprep.subr.mxu0 %v91
  %132 = vmatpush1.msra.mxu0 %v90
  %133 = vmatprep.subr.mxu0 %v95
  %134 = vmatpush1.msra.mxu0 %v94
  %135 = vmatprep.subr.mxu0 %v99
  %136 = vmatpush1.msra.mxu0 %v98
  %137 = vmatprep.subr.mxu0 %v103
  %138 = vmatpush1.msra.mxu0 %v102
  %139 = vmatprep.subr.mxu0 0.0
  %140 = vmatpush1.msra.mxu0 0.0
  %141 = vmatprep.subr.mxu0 0.0
  %142 = vmatpush1.msra.mxu0 0.0
  %143 = vmatprep.subr.mxu0 0.0
  %144 = vmatpush1.msra.mxu0 0.0
  %145 = vmatprep.subr.mxu0 0.0
  %146 = vmatpush1.msra.mxu0 0.0
  %147 = vmatprep.subr.mxu0 0.0
  %148 = vmatpush1.msra.mxu0 0.0
  %149 = vmatprep.subr.mxu0 0.0
  %150 = vmatpush1.msra.mxu0 0.0
  %151 = vmatprep.subr.mxu0 0.0
  %152 = vmatpush1.msra.mxu0 0.0
  %153 = vmatprep.subr.mxu0 0.0
  %154 = vmatpush1.msra.mxu0 0.0
  %155 = vmatprep.subr.mxu0 0.0
  %156 = vmatpush1.msra.mxu0 0.0
  %157 = vmatprep.subr.mxu0 0.0
  %158 = vmatpush1.msra.mxu0 0.0
  %159 = vmatprep.subr.mxu0 0.0
  %160 = vmatpush1.msra.mxu0 0.0
  %161 = vmatprep.subr.mxu0 0.0
  %162 = vmatpush1.msra.mxu0 0.0
  %163 = vmatprep.subr.mxu0 0.0
  %164 = vmatpush1.msra.mxu0 0.0
  %165 = vmatprep.subr.mxu0 0.0
  %166 = vmatpush1.msra.mxu0 0.0
  %167 = vmatprep.subr.mxu0 0.0
  %168 = vmatpush1.msra.mxu0 0.0
  %169 = vmatprep.subr.mxu0 0.0
  %170 = vmatpush1.msra.mxu0 0.0
  %171 = vmatprep.subr.mxu0 0.0
  %172 = vmatpush1.msra.mxu0 0.0
  %173 = vmatprep.subr.mxu0 0.0
  %174 = vmatpush1.msra.mxu0 0.0
  %175 = vmatprep.subr.mxu0 0.0
  %176 = vmatpush1.msra.mxu0 0.0
  %177 = vmatprep.subr.mxu0 0.0
  %178 = vmatpush1.msra.mxu0 0.0
  %179 = vmatprep.subr.mxu0 0.0
  %180 = vmatpush1.msra.mxu0 0.0
  %181 = vmatprep.subr.mxu0 0.0
  %182 = vmatpush1.msra.mxu0 0.0
  %183 = vmatprep.subr.mxu0 0.0
  %184 = vmatpush1.msra.mxu0 0.0
  %185 = vmatprep.subr.mxu0 0.0
  %186 = vmatpush1.msra.mxu0 0.0
  %187 = vmatprep.subr.mxu0 0.0
  %188 = vmatpush1.msra.mxu0 0.0
  %189 = vmatprep.subr.mxu0 0.0
  %190 = vmatpush1.msra.mxu0 0.0
  %191 = vmatprep.subr.mxu0 0.0
  %192 = vmatpush1.msra.mxu0 0.0
  %193 = vmatprep.subr.mxu0 0.0
  %194 = vmatpush1.msra.mxu0 0.0
  %195 = vmatprep.mubr.f32.mxu0 0.0
  %196 = vmatmul.mubr.f32.gmra.mrb[0].mxu0 %v108
  %v197 = vpop.f32.mrb[0].mxu0
  %v198 = vadd.f32 0.0, %v197
  %v199 = vpop.f32.mrb[0].mxu0
  %v200 = vadd.f32 0.0, %v199
  %201 = vmatprep.mubr.f32.mxu0 0.0
  %202 = vmatmul.mubr.f32.gmra.mrb[0].mxu0 %v111
  %v203 = vpop.f32.mrb[0].mxu0
  %v204 = vadd.f32 0.0, %v203
  %v205 = vpop.f32.mrb[0].mxu0
  %v206 = vadd.f32 0.0, %v205
  %207 = vmatprep.mubr.f32.mxu0 0.0
  %208 = vmatmul.mubr.f32.gmra.mrb[0].mxu0 %v114
  %v209 = vpop.f32.mrb[0].mxu0
  %v210 = vadd.f32 0.0, %v209
  %v211 = vpop.f32.mrb[0].mxu0
  %v212 = vadd.f32 0.0, %v211
  %213 = vmatprep.mubr.f32.mxu0 0.0
  %214 = vmatmul.mubr.f32.gmra.mrb[0].mxu0 %v117
  %v215 = vpop.f32.mrb[0].mxu0
  %v216 = vadd.f32 0.0, %v215
  %v217 = vpop.f32.mrb[0].mxu0
  %v218 = vadd.f32 0.0, %v217
  %219 = vmatprep.mubr.f32.mxu0 0.0
  %220 = vmatmul.mubr.f32.gmra.mrb[0].mxu0 %v120
  %v221 = vpop.f32.mrb[0].mxu0
  %v222 = vadd.f32 0.0, %v221
  %v223 = vpop.f32.mrb[0].mxu0
  %v224 = vadd.f32 0.0, %v223
  %225 = vmatprep.mubr.f32.mxu0 0.0
  %226 = vmatmul.mubr.f32.gmra.mrb[0].mxu0 %v123
  %v227 = vpop.f32.mrb[0].mxu0
  %v228 = vadd.f32 0.0, %v227
  %v229 = vpop.f32.mrb[0].mxu0
  %v230 = vadd.f32 0.0, %v229
  %231 = vmatprep.mubr.f32.mxu0 0.0
  %232 = vmatmul.mubr.f32.gmra.mrb[0].mxu0 %v126
  %v233 = vpop.f32.mrb[0].mxu0
  %v234 = vadd.f32 0.0, %v233
  %v235 = vpop.f32.mrb[0].mxu0
  %v236 = vadd.f32 0.0, %v235
  %237 = vmatprep.mubr.f32.mxu0 0.0
  %238 = vmatmul.mubr.f32.gmra.mrb[0].mxu0 %v129
  %v239 = vpop.f32.mrb[0].mxu0
  %v240 = vadd.f32 0.0, %v239
  %v241 = vpop.f32.mrb[0].mxu0
  %v242 = vadd.f32 0.0, %v241
  %243 = vdwg.mxu0
  %244 = vmatprep.subr.mxu0 %v93
  %245 = vmatpush1.msra.mxu0 %v92
  %246 = vmatprep.subr.mxu0 %v97
  %247 = vmatpush1.msra.mxu0 %v96
  %248 = vmatprep.subr.mxu0 %v101
  %249 = vmatpush1.msra.mxu0 %v100
  %250 = vmatprep.subr.mxu0 %v105
  %251 = vmatpush1.msra.mxu0 %v104
  %252 = vmatprep.subr.mxu0 0.0
  %253 = vmatpush1.msra.mxu0 0.0
  %254 = vmatprep.subr.mxu0 0.0
  %255 = vmatpush1.msra.mxu0 0.0
  %256 = vmatprep.subr.mxu0 0.0
  %257 = vmatpush1.msra.mxu0 0.0
  %258 = vmatprep.subr.mxu0 0.0
  %259 = vmatpush1.msra.mxu0 0.0
  %260 = vmatprep.subr.mxu0 0.0
  %261 = vmatpush1.msra.mxu0 0.0
  %262 = vmatprep.subr.mxu0 0.0
  %263 = vmatpush1.msra.mxu0 0.0
  %264 = vmatprep.subr.mxu0 0.0
  %265 = vmatpush1.msra.mxu0 0.0
  %266 = vmatprep.subr.mxu0 0.0
  %267 = vmatpush1.msra.mxu0 0.0
  %268 = vmatprep.subr.mxu0 0.0
  %269 = vmatpush1.msra.mxu0 0.0
  %270 = vmatprep.subr.mxu0 0.0
  %271 = vmatpush1.msra.mxu0 0.0
  %272 = vmatprep.subr.mxu0 0.0
  %273 = vmatpush1.msra.mxu0 0.0
  %274 = vmatprep.subr.mxu0 0.0
  %275 = vmatpush1.msra.mxu0 0.0
  %276 = vmatprep.subr.mxu0 0.0
  %277 = vmatpush1.msra.mxu0 0.0
  %278 = vmatprep.subr.mxu0 0.0
  %279 = vmatpush1.msra.mxu0 0.0
  %280 = vmatprep.subr.mxu0 0.0
  %281 = vmatpush1.msra.mxu0 0.0
  %282 = vmatprep.subr.mxu0 0.0
  %283 = vmatpush1.msra.mxu0 0.0
  %284 = vmatprep.subr.mxu0 0.0
  %285 = vmatpush1.msra.mxu0 0.0
  %286 = vmatprep.subr.mxu0 0.0
  %287 = vmatpush1.msra.mxu0 0.0
  %288 = vmatprep.subr.mxu0 0.0
  %289 = vmatpush1.msra.mxu0 0.0
  %290 = vmatprep.subr.mxu0 0.0
  %291 = vmatpush1.msra.mxu0 0.0
  %292 = vmatprep.subr.mxu0 0.0
  %293 = vmatpush1.msra.mxu0 0.0
  %294 = vmatprep.subr.mxu0 0.0
  %295 = vmatpush1.msra.mxu0 0.0
  %296 = vmatprep.subr.mxu0 0.0
  %297 = vmatpush1.msra.mxu0 0.0
  %298 = vmatprep.subr.mxu0 0.0
  %299 = vmatpush1.msra.mxu0 0.0
  %300 = vmatprep.subr.mxu0 0.0
  %301 = vmatpush1.msra.mxu0 0.0
  %302 = vmatprep.subr.mxu0 0.0
  %303 = vmatpush1.msra.mxu0 0.0
  %304 = vmatprep.subr.mxu0 0.0
  %305 = vmatpush1.msra.mxu0 0.0
  %306 = vmatprep.subr.mxu0 0.0
  %307 = vmatpush1.msra.mxu0 0.0
  %308 = vmatprep.mubr.f32.mxu0 0.0
  %309 = vmatmul.mubr.f32.gmra.mrb[0].mxu0 %v108
  %v310 = vpop.f32.mrb[0].mxu0
  %v311 = vadd.f32 0.0, %v310
  %v312 = vpop.f32.mrb[0].mxu0
  %v313 = vadd.f32 0.0, %v312
  %314 = vmatprep.mubr.f32.mxu0 0.0
  %315 = vmatmul.mubr.f32.gmra.mrb[0].mxu0 %v111
  %v316 = vpop.f32.mrb[0].mxu0
  %v317 = vadd.f32 0.0, %v316
  %v318 = vpop.f32.mrb[0].mxu0
  %v319 = vadd.f32 0.0, %v318
  %320 = vmatprep.mubr.f32.mxu0 0.0
  %321 = vmatmul.mubr.f32.gmra.mrb[0].mxu0 %v114
  %v322 = vpop.f32.mrb[0].mxu0
  %v323 = vadd.f32 0.0, %v322
  %v324 = vpop.f32.mrb[0].mxu0
  %v325 = vadd.f32 0.0, %v324
  %326 = vmatprep.mubr.f32.mxu0 0.0
  %327 = vmatmul.mubr.f32.gmra.mrb[0].mxu0 %v117
  %v328 = vpop.f32.mrb[0].mxu0
  %v329 = vadd.f32 0.0, %v328
  %v330 = vpop.f32.mrb[0].mxu0
  %v331 = vadd.f32 0.0, %v330
  %332 = vmatprep.mubr.f32.mxu0 0.0
  %333 = vmatmul.mubr.f32.gmra.mrb[0].mxu0 %v120
  %v334 = vpop.f32.mrb[0].mxu0
  %v335 = vadd.f32 0.0, %v334
  %v336 = vpop.f32.mrb[0].mxu0
  %v337 = vadd.f32 0.0, %v336
  %338 = vmatprep.mubr.f32.mxu0 0.0
  %339 = vmatmul.mubr.f32.gmra.mrb[0].mxu0 %v123
  %v340 = vpop.f32.mrb[0].mxu0
  %v341 = vadd.f32 0.0, %v340
  %v342 = vpop.f32.mrb[0].mxu0
  %v343 = vadd.f32 0.0, %v342
  %344 = vmatprep.mubr.f32.mxu0 0.0
  %345 = vmatmul.mubr.f32.gmra.mrb[0].mxu0 %v126
  %v346 = vpop.f32.mrb[0].mxu0
  %v347 = vadd.f32 0.0, %v346
  %v348 = vpop.f32.mrb[0].mxu0
  %v349 = vadd.f32 0.0, %v348
  %350 = vmatprep.mubr.f32.mxu0 0.0
  %351 = vmatmul.mubr.f32.gmra.mrb[0].mxu0 %v129
  %v352 = vpop.f32.mrb[0].mxu0
  %v353 = vadd.f32 0.0, %v352
  %v354 = vpop.f32.mrb[0].mxu0
  %v355 = vadd.f32 0.0, %v354
  %356 = vdwg.mxu0
  %v357 = vadd.f32 %v50, %v198
  %v358 = vadd.f32 %v51, %v200
  %v359 = vadd.f32 %v52, %v311
  %v360 = vadd.f32 %v53, %v313
  %v361 = vadd.f32 %v54, %v204
  %v362 = vadd.f32 %v55, %v206
  %v363 = vadd.f32 %v56, %v317
  %v364 = vadd.f32 %v57, %v319
  %v365 = vadd.f32 %v58, %v210
  %v366 = vadd.f32 %v59, %v212
  %v367 = vadd.f32 %v60, %v323
  %v368 = vadd.f32 %v61, %v325
  %v369 = vadd.f32 %v62, %v216
  %v370 = vadd.f32 %v63, %v218
  %v371 = vadd.f32 %v64, %v329
  %v372 = vadd.f32 %v65, %v331
  %v373 = vadd.f32 %v66, %v222
  %v374 = vadd.f32 %v67, %v224
  %v375 = vadd.f32 %v68, %v335
  %v376 = vadd.f32 %v69, %v337
  %v377 = vadd.f32 %v70, %v228
  %v378 = vadd.f32 %v71, %v230
  %v379 = vadd.f32 %v72, %v341
  %v380 = vadd.f32 %v73, %v343
  %v381 = vadd.f32 %v74, %v234
  %v382 = vadd.f32 %v75, %v236
  %v383 = vadd.f32 %v76, %v347
  %v384 = vadd.f32 %v77, %v349
  %v385 = vadd.f32 %v78, %v240
  %v386 = vadd.f32 %v79, %v242
  %v387 = vadd.f32 %v80, %v353
  %v388 = vadd.f32 %v81, %v355
  %389 = vst [vmem:[#allocation2] sm:$0xff] %v357
  %390 = vst [vmem:[#allocation2 + $0x8] sm:$0xff] %v358
  %391 = vst [vmem:[#allocation2 + $0x10] sm:$0xff] %v359
  %392 = vst [vmem:[#allocation2 + $0x18] sm:$0xff] %v360
  %393 = vst [vmem:[#allocation2 + $0x20] sm:$0xff] %v361
  %394 = vst [vmem:[#allocation2 + $0x28] sm:$0xff] %v362
  %395 = vst [vmem:[#allocation2 + $0x30] sm:$0xff] %v363
  %396 = vst [vmem:[#allocation2 + $0x38] sm:$0xff] %v364
  %397 = vst [vmem:[#allocation2 + $0x40] sm:$0xff] %v365
  %398 = vst [vmem:[#allocation2 + $0x48] sm:$0xff] %v366
  %399 = vst [vmem:[#allocation2 + $0x50] sm:$0xff] %v367
  %400 = vst [vmem:[#allocation2 + $0x58] sm:$0xff] %v368
  %401 = vst [vmem:[#allocation2 + $0x60] sm:$0xff] %v369
  %402 = vst [vmem:[#allocation2 + $0x68] sm:$0xff] %v370
  %403 = vst [vmem:[#allocation2 + $0x70] sm:$0xff] %v371
  %404 = vst [vmem:[#allocation2 + $0x78] sm:$0xff] %v372
  %405 = vst [vmem:[#allocation2 + $0x80] sm:$0xff] %v373
  %406 = vst [vmem:[#allocation2 + $0x88] sm:$0xff] %v374
  %407 = vst [vmem:[#allocation2 + $0x90] sm:$0xff] %v375
  %408 = vst [vmem:[#allocation2 + $0x98] sm:$0xff] %v376
  %409 = vst [vmem:[#allocation2 + $0xa0] sm:$0xff] %v377
  %410 = vst [vmem:[#allocation2 + $0xa8] sm:$0xff] %v378
  %411 = vst [vmem:[#allocation2 + $0xb0] sm:$0xff] %v379
  %412 = vst [vmem:[#allocation2 + $0xb8] sm:$0xff] %v380
  %413 = vst [vmem:[#allocation2 + $0xc0] sm:$0xff] %v381
  %414 = vst [vmem:[#allocation2 + $0xc8] sm:$0xff] %v382
  %415 = vst [vmem:[#allocation2 + $0xd0] sm:$0xff] %v383
  %416 = vst [vmem:[#allocation2 + $0xd8] sm:$0xff] %v384
  %417 = vst [vmem:[#allocation2 + $0xe0] sm:$0xff] %v385
  %418 = vst [vmem:[#allocation2 + $0xe8] sm:$0xff] %v386
  %419 = vst [vmem:[#allocation2 + $0xf0] sm:$0xff] %v387
  %420 = vst [vmem:[#allocation2 + $0xf8] sm:$0xff] %v388
  // Predicated region
  $region18: #{text_generator_forward.3} parent=0 // pred_check
    %p421 = pneg %p14
  $region19: #{text_generator_forward.3} parent=0 // pred_check_branch
    %423 = sbr.rel (%p421) target = $region21
  $region20: #{text_generator_forward.3} parent=0 // pred_region
    %v424 = vld [vmem:[#allocation2] sm:$0xff]
    %v425 = vld [vmem:[#allocation2 + $0x8] sm:$0xff]
    %v426 = vld [vmem:[#allocation2 + $0x10] sm:$0xff]
    %v427 = vld [vmem:[#allocation2 + $0x18] sm:$0xff]
    %v428 = vld [vmem:[#allocation2 + $0x20] sm:$0xff]
    %v429 = vld [vmem:[#allocation2 + $0x28] sm:$0xff]
    %v430 = vld [vmem:[#allocation2 + $0x30] sm:$0xff]
    %v431 = vld [vmem:[#allocation2 + $0x38] sm:$0xff]
    %v432 = vld [vmem:[#allocation2 + $0x40] sm:$0xff]
    %v433 = vld [vmem:[#allocation2 + $0x48] sm:$0xff]
    %v434 = vld [vmem:[#allocation2 + $0x50] sm:$0xff]
    %v435 = vld [vmem:[#allocation2 + $0x58] sm:$0xff]
    %v436 = vld [vmem:[#allocation2 + $0x60] sm:$0xff]
    %v437 = vld [vmem:[#allocation2 + $0x68] sm:$0xff]
    %v438 = vld [vmem:[#allocation2 + $0x70] sm:$0xff]
    %v439 = vld [vmem:[#allocation2 + $0x78] sm:$0xff]
    %v440 = vld [vmem:[#allocation2 + $0x80] sm:$0xff]
    %v441 = vld [vmem:[#allocation2 + $0x88] sm:$0xff]
    %v442 = vld [vmem:[#allocation2 + $0x90] sm:$0xff]
    %v443 = vld [vmem:[#allocation2 + $0x98] sm:$0xff]
    %v444 = vld [vmem:[#allocation2 + $0xa0] sm:$0xff]
    %v445 = vld [vmem:[#allocation2 + $0xa8] sm:$0xff]
    %v446 = vld [vmem:[#allocation2 + $0xb0] sm:$0xff]
    %v447 = vld [vmem:[#allocation2 + $0xb8] sm:$0xff]
    %v448 = vld [vmem:[#allocation2 + $0xc0] sm:$0xff]
    %v449 = vld [vmem:[#allocation2 + $0xc8] sm:$0xff]
    %v450 = vld [vmem:[#allocation2 + $0xd0] sm:$0xff]
    %v451 = vld [vmem:[#allocation2 + $0xd8] sm:$0xff]
    %v452 = vld [vmem:[#allocation2 + $0xe0] sm:$0xff]
    %v453 = vld [vmem:[#allocation2 + $0xe8] sm:$0xff]
    %v454 = vld [vmem:[#allocation2 + $0xf0] sm:$0xff]
    %v455 = vld [vmem:[#allocation2 + $0xf8] sm:$0xff]
    %v456 = vld [vmem:[%s2] sm:$0xf]
    %v458 = vlaneseq
    %v459 = vshrl.u32 %v458, 7
    %v460 = vsub.s32 0, %v459
    %v461 = vrot.slane %v456, %v460
    %v462 = vlaneseq
    %v463 = vshrl.u32 %v462, 7
    %v464 = vsub.s32 1, %v463
    %v465 = vrot.slane %v456, %v464
    %v466 = vlaneseq
    %v467 = vshrl.u32 %v466, 7
    %v468 = vsub.s32 2, %v467
    %v469 = vrot.slane %v456, %v468
    %v470 = vlaneseq
    %v471 = vshrl.u32 %v470, 7
    %v472 = vsub.s32 3, %v471
    %v473 = vrot.slane %v456, %v472
    %v478 = vadd.f32 %v424, %v461
    %v479 = vadd.f32 %v425, %v465
    %v480 = vadd.f32 %v426, %v469
    %v481 = vadd.f32 %v427, %v473
    %v482 = vadd.f32 %v428, %v461
    %v483 = vadd.f32 %v429, %v465
    %v484 = vadd.f32 %v430, %v469
    %v485 = vadd.f32 %v431, %v473
    %v486 = vadd.f32 %v432, %v461
    %v487 = vadd.f32 %v433, %v465
    %v488 = vadd.f32 %v434, %v469
    %v489 = vadd.f32 %v435, %v473
    %v490 = vadd.f32 %v436, %v461
    %v491 = vadd.f32 %v437, %v465
    %v492 = vadd.f32 %v438, %v469
    %v493 = vadd.f32 %v439, %v473
    %v494 = vadd.f32 %v440, %v461
    %v495 = vadd.f32 %v441, %v465
    %v496 = vadd.f32 %v442, %v469
    %v497 = vadd.f32 %v443, %v473
    %v498 = vadd.f32 %v444, %v461
    %v499 = vadd.f32 %v445, %v465
    %v500 = vadd.f32 %v446, %v469
    %v501 = vadd.f32 %v447, %v473
    %v502 = vadd.f32 %v448, %v461
    %v503 = vadd.f32 %v449, %v465
    %v504 = vadd.f32 %v450, %v469
    %v505 = vadd.f32 %v451, %v473
    %v506 = vadd.f32 %v452, %v461
    %v507 = vadd.f32 %v453, %v465
    %v508 = vadd.f32 %v454, %v469
    %v509 = vadd.f32 %v455, %v473
    %510 = vst [vmem:[%s3] sm:$0xff] %v478
    %511 = vst [vmem:[%s3 + $0x8] sm:$0xff] %v479
    %512 = vst [vmem:[%s3 + $0x10] sm:$0xff] %v480
    %513 = vst [vmem:[%s3 + $0x18] sm:$0xff] %v481
    %514 = vst [vmem:[%s3 + $0x20] sm:$0xff] %v482
    %515 = vst [vmem:[%s3 + $0x28] sm:$0xff] %v483
    %516 = vst [vmem:[%s3 + $0x30] sm:$0xff] %v484
    %517 = vst [vmem:[%s3 + $0x38] sm:$0xff] %v485
    %518 = vst [vmem:[%s3 + $0x40] sm:$0xff] %v486
    %519 = vst [vmem:[%s3 + $0x48] sm:$0xff] %v487
    %520 = vst [vmem:[%s3 + $0x50] sm:$0xff] %v488
    %521 = vst [vmem:[%s3 + $0x58] sm:$0xff] %v489
    %522 = vst [vmem:[%s3 + $0x60] sm:$0xff] %v490
    %523 = vst [vmem:[%s3 + $0x68] sm:$0xff] %v491
    %524 = vst [vmem:[%s3 + $0x70] sm:$0xff] %v492
    %525 = vst [vmem:[%s3 + $0x78] sm:$0xff] %v493
    %526 = vst [vmem:[%s3 + $0x80] sm:$0xff] %v494
    %527 = vst [vmem:[%s3 + $0x88] sm:$0xff] %v495
    %528 = vst [vmem:[%s3 + $0x90] sm:$0xff] %v496
    %529 = vst [vmem:[%s3 + $0x98] sm:$0xff] %v497
    %530 = vst [vmem:[%s3 + $0xa0] sm:$0xff] %v498
    %531 = vst [vmem:[%s3 + $0xa8] sm:$0xff] %v499
    %532 = vst [vmem:[%s3 + $0xb0] sm:$0xff] %v500
    %533 = vst [vmem:[%s3 + $0xb8] sm:$0xff] %v501
    %534 = vst [vmem:[%s3 + $0xc0] sm:$0xff] %v502
    %535 = vst [vmem:[%s3 + $0xc8] sm:$0xff] %v503
    %536 = vst [vmem:[%s3 + $0xd0] sm:$0xff] %v504
    %537 = vst [vmem:[%s3 + $0xd8] sm:$0xff] %v505
    %538 = vst [vmem:[%s3 + $0xe0] sm:$0xff] %v506
    %539 = vst [vmem:[%s3 + $0xe8] sm:$0xff] %v507
    %540 = vst [vmem:[%s3 + $0xf0] sm:$0xff] %v508
    %541 = vst [vmem:[%s3 + $0xf8] sm:$0xff] %v509
  $region21: #{text_generator_forward.3} parent=0 // pred_fallthru
    _
  // Predicated region
  $region22: #{text_generator_forward.3} parent=0 // pred_check
    _
  $region23: #{text_generator_forward.3} parent=0 // pred_check_branch
    %543 = sbr.rel (0) target = $region25
  $region24: #{text_generator_forward.3} parent=0 // pred_region
    _
  $region25: #{text_generator_forward.3} parent=0 // pred_fallthru
    _
  // Predicated region
  $region26: #{text_generator_forward.3} parent=0 // pred_check
    _
  $region27: #{text_generator_forward.3} parent=0 // pred_check_branch
    %545 = sbr.rel (0) target = $region29
  $region28: #{text_generator_forward.3} parent=0 // pred_region
    _
  $region29: #{text_generator_forward.3} parent=0 // pred_fallthru
    _

// kernel: text_generator_forward.4
$region0: #{text_generator_forward.4}
  #allocation0 [shape = 'u32[]', space=smem, size = 0x4, offset = 0x4, fixed_abs, tag = 'smem constant byte address 0x4 - core index']
  #allocation1 [shape = 'u32[144,128]{1,0:T(1,128)}', space=vmem, size = 0x12000, scoped, tag = 'internal scratch']
  #allocation2 [shape = 'f32[8,128]{1,0:T(8,128)}', space=vmem, size = 0x1000, scoped, tag = 'scratch operand']
  #allocation3 [shape = 'f32[8,128]{1,0:T(8,128)}', space=vmem, size = 0x1000, scoped, tag = 'scratch operand']
  %s0 = inlined_call_operand.vmem [shape: f32[8,8,512], index: 0, kind: input, shape index: {}]
  %s1 = inlined_call_operand.vmem [shape: f32[128,512], index: 1, kind: input, shape index: {}]
  %s2 = inlined_call_operand.vmem [shape: f32[8,8,128], index: 2, kind: output, shape index: {0}]
  %s3 = inlined_call_operand.vmem [shape: f32[8,128], index: 3, kind: output, shape index: {1}]
  %s4 = inlined_call_operand.vmem [shape: f32[8,128], index: 4, kind: output, shape index: {2}]
  %5 = xla_tuple %s2, %s3, %s4
  %s6 = sld [smem:[#allocation0]]
  $region70: #{text_generator_forward.4} parent=0
    _
  %s8 = ssub.s32 1, %s6
  %s9 = scalar_select 0, %s8, %s6
  // Predicated region
  $region2: #{text_generator_forward.4} parent=0 // pred_check
    _
  $region3: #{text_generator_forward.4} parent=0 // pred_check_branch
    %11 = sbr.rel (0) target = $region5
  $region4: #{text_generator_forward.4} parent=0 // pred_region
    _
  $region5: #{text_generator_forward.4} parent=0 // pred_fallthru
    _
  // Predicated region
  $region6: #{text_generator_forward.4} parent=0 // pred_check
    _
  $region7: #{text_generator_forward.4} parent=0 // pred_check_branch
    %13 = sbr.rel (0) target = $region9
  $region8: #{text_generator_forward.4} parent=0 // pred_region
    _
  $region9: #{text_generator_forward.4} parent=0 // pred_fallthru
    _
  %p14 = scmp.eq.s32.totalorder 0, 0
  // Predicated region
  $region10: #{text_generator_forward.4} parent=0 // pred_check
    %p15 = pneg %p14
  $region11: #{text_generator_forward.4} parent=0 // pred_check_branch
    %17 = sbr.rel (%p15) target = $region13
  $region12: #{text_generator_forward.4} parent=0 // pred_region
    %18 = vst [vmem:[#allocation2] sm:$0xff] 0.0
    %19 = vst [vmem:[#allocation3] sm:$0xff] 0.0
  $region13: #{text_generator_forward.4} parent=0 // pred_fallthru
    _
  %v20 = vld [vmem:[%s1] sm:$0xff]
  %v21 = vld [vmem:[%s1 + $0x8] sm:$0xff]
  %v22 = vld [vmem:[%s1 + $0x10] sm:$0xff]
  %v23 = vld [vmem:[%s1 + $0x18] sm:$0xff]
  %v24 = vld [vmem:[%s1 + $0x20] sm:$0xff]
  %v25 = vld [vmem:[%s1 + $0x28] sm:$0xff]
  %v26 = vld [vmem:[%s1 + $0x30] sm:$0xff]
  %v27 = vld [vmem:[%s1 + $0x38] sm:$0xff]
  %v28 = vld [vmem:[%s1 + $0x40] sm:$0xff]
  %v29 = vld [vmem:[%s1 + $0x48] sm:$0xff]
  %v30 = vld [vmem:[%s1 + $0x50] sm:$0xff]
  %v31 = vld [vmem:[%s1 + $0x58] sm:$0xff]
  %v32 = vld [vmem:[%s1 + $0x60] sm:$0xff]
  %v33 = vld [vmem:[%s1 + $0x68] sm:$0xff]
  %v34 = vld [vmem:[%s1 + $0x70] sm:$0xff]
  %v35 = vld [vmem:[%s1 + $0x78] sm:$0xff]
  %v36 = vld [vmem:[%s1 + $0x80] sm:$0xff]
  %v37 = vld [vmem:[%s1 + $0x88] sm:$0xff]
  %v38 = vld [vmem:[%s1 + $0x90] sm:$0xff]
  %v39 = vld [vmem:[%s1 + $0x98] sm:$0xff]
  %v40 = vld [vmem:[%s1 + $0xa0] sm:$0xff]
  %v41 = vld [vmem:[%s1 + $0xa8] sm:$0xff]
  %v42 = vld [vmem:[%s1 + $0xb0] sm:$0xff]
  %v43 = vld [vmem:[%s1 + $0xb8] sm:$0xff]
  %v44 = vld [vmem:[%s1 + $0xc0] sm:$0xff]
  %v45 = vld [vmem:[%s1 + $0xc8] sm:$0xff]
  %v46 = vld [vmem:[%s1 + $0xd0] sm:$0xff]
  %v47 = vld [vmem:[%s1 + $0xd8] sm:$0xff]
  %v48 = vld [vmem:[%s1 + $0xe0] sm:$0xff]
  %v49 = vld [vmem:[%s1 + $0xe8] sm:$0xff]
  %v50 = vld [vmem:[%s1 + $0xf0] sm:$0xff]
  %v51 = vld [vmem:[%s1 + $0xf8] sm:$0xff]
  %v52 = vld [vmem:[%s1 + $0x100] sm:$0xff]
  %v53 = vld [vmem:[%s1 + $0x108] sm:$0xff]
  %v54 = vld [vmem:[%s1 + $0x110] sm:$0xff]
  %v55 = vld [vmem:[%s1 + $0x118] sm:$0xff]
  %v56 = vld [vmem:[%s1 + $0x120] sm:$0xff]
  %v57 = vld [vmem:[%s1 + $0x128] sm:$0xff]
  %v58 = vld [vmem:[%s1 + $0x130] sm:$0xff]
  %v59 = vld [vmem:[%s1 + $0x138] sm:$0xff]
  %v60 = vld [vmem:[%s1 + $0x140] sm:$0xff]
  %v61 = vld [vmem:[%s1 + $0x148] sm:$0xff]
  %v62 = vld [vmem:[%s1 + $0x150] sm:$0xff]
  %v63 = vld [vmem:[%s1 + $0x158] sm:$0xff]
  %v64 = vld [vmem:[%s1 + $0x160] sm:$0xff]
  %v65 = vld [vmem:[%s1 + $0x168] sm:$0xff]
  %v66 = vld [vmem:[%s1 + $0x170] sm:$0xff]
  %v67 = vld [vmem:[%s1 + $0x178] sm:$0xff]
  %v68 = vld [vmem:[%s1 + $0x180] sm:$0xff]
  %v69 = vld [vmem:[%s1 + $0x188] sm:$0xff]
  %v70 = vld [vmem:[%s1 + $0x190] sm:$0xff]
  %v71 = vld [vmem:[%s1 + $0x198] sm:$0xff]
  %v72 = vld [vmem:[%s1 + $0x1a0] sm:$0xff]
  %v73 = vld [vmem:[%s1 + $0x1a8] sm:$0xff]
  %v74 = vld [vmem:[%s1 + $0x1b0] sm:$0xff]
  %v75 = vld [vmem:[%s1 + $0x1b8] sm:$0xff]
  %v76 = vld [vmem:[%s1 + $0x1c0] sm:$0xff]
  %v77 = vld [vmem:[%s1 + $0x1c8] sm:$0xff]
  %v78 = vld [vmem:[%s1 + $0x1d0] sm:$0xff]
  %v79 = vld [vmem:[%s1 + $0x1d8] sm:$0xff]
  %v80 = vld [vmem:[%s1 + $0x1e0] sm:$0xff]
  %v81 = vld [vmem:[%s1 + $0x1e8] sm:$0xff]
  %v82 = vld [vmem:[%s1 + $0x1f0] sm:$0xff]
  %v83 = vld [vmem:[%s1 + $0x1f8] sm:$0xff]
  %v84 = vld [vmem:[#allocation2] sm:$0xff]
  %v85 = vld [vmem:[#allocation3] sm:$0xff]
  %v86 = vld [vmem:[%s0] sm:$0xff]
  %v87 = vld [vmem:[%s0 + $0x8] sm:$0xff]
  %v88 = vld [vmem:[%s0 + $0x10] sm:$0xff]
  %v89 = vld [vmem:[%s0 + $0x18] sm:$0xff]
  %90 = vmatprep.subr.mxu0 %v21
  %91 = vmatpush1.msra.mxu0 %v20
  %92 = vmatprep.subr.mxu0 %v25
  %93 = vmatpush1.msra.mxu0 %v24
  %94 = vmatprep.subr.mxu0 %v29
  %95 = vmatpush1.msra.mxu0 %v28
  %96 = vmatprep.subr.mxu0 %v33
  %97 = vmatpush1.msra.mxu0 %v32
  %98 = vmatprep.subr.mxu0 %v37
  %99 = vmatpush1.msra.mxu0 %v36
  %100 = vmatprep.subr.mxu0 %v41
  %101 = vmatpush1.msra.mxu0 %v40
  %102 = vmatprep.subr.mxu0 %v45
  %103 = vmatpush1.msra.mxu0 %v44
  %104 = vmatprep.subr.mxu0 %v49
  %105 = vmatpush1.msra.mxu0 %v48
  %106 = vmatprep.subr.mxu0 %v53
  %107 = vmatpush1.msra.mxu0 %v52
  %108 = vmatprep.subr.mxu0 %v57
  %109 = vmatpush1.msra.mxu0 %v56
  %110 = vmatprep.subr.mxu0 %v61
  %111 = vmatpush1.msra.mxu0 %v60
  %112 = vmatprep.subr.mxu0 %v65
  %113 = vmatpush1.msra.mxu0 %v64
  %114 = vmatprep.subr.mxu0 %v69
  %115 = vmatpush1.msra.mxu0 %v68
  %116 = vmatprep.subr.mxu0 %v73
  %117 = vmatpush1.msra.mxu0 %v72
  %118 = vmatprep.subr.mxu0 %v77
  %119 = vmatpush1.msra.mxu0 %v76
  %120 = vmatprep.subr.mxu0 %v81
  %121 = vmatpush1.msra.mxu0 %v80
  %122 = vmatprep.subr.mxu0 0.0
  %123 = vmatpush1.msra.mxu0 0.0
  %124 = vmatprep.subr.mxu0 0.0
  %125 = vmatpush1.msra.mxu0 0.0
  %126 = vmatprep.subr.mxu0 0.0
  %127 = vmatpush1.msra.mxu0 0.0
  %128 = vmatprep.subr.mxu0 0.0
  %129 = vmatpush1.msra.mxu0 0.0
  %130 = vmatprep.subr.mxu0 0.0
  %131 = vmatpush1.msra.mxu0 0.0
  %132 = vmatprep.subr.mxu0 0.0
  %133 = vmatpush1.msra.mxu0 0.0
  %134 = vmatprep.subr.mxu0 0.0
  %135 = vmatpush1.msra.mxu0 0.0
  %136 = vmatprep.subr.mxu0 0.0
  %137 = vmatpush1.msra.mxu0 0.0
  %138 = vmatprep.subr.mxu0 0.0
  %139 = vmatpush1.msra.mxu0 0.0
  %140 = vmatprep.subr.mxu0 0.0
  %141 = vmatpush1.msra.mxu0 0.0
  %142 = vmatprep.subr.mxu0 0.0
  %143 = vmatpush1.msra.mxu0 0.0
  %144 = vmatprep.subr.mxu0 0.0
  %145 = vmatpush1.msra.mxu0 0.0
  %146 = vmatprep.subr.mxu0 0.0
  %147 = vmatpush1.msra.mxu0 0.0
  %148 = vmatprep.subr.mxu0 0.0
  %149 = vmatpush1.msra.mxu0 0.0
  %150 = vmatprep.subr.mxu0 0.0
  %151 = vmatpush1.msra.mxu0 0.0
  %152 = vmatprep.subr.mxu0 0.0
  %153 = vmatpush1.msra.mxu0 0.0
  %154 = vmatprep.mubr.f32.mxu0 0.0
  %155 = vmatmul.mubr.f32.gmra.mrb[0].mxu0 %v84
  %v156 = vpop.f32.mrb[0].mxu0
  %v157 = vadd.f32 0.0, %v156
  %v158 = vpop.f32.mrb[0].mxu0
  %v159 = vadd.f32 0.0, %v158
  %160 = vdwg.mxu0
  %161 = vmatprep.subr.mxu0 %v23
  %162 = vmatpush1.msra.mxu0 %v22
  %163 = vmatprep.subr.mxu0 %v27
  %164 = vmatpush1.msra.mxu0 %v26
  %165 = vmatprep.subr.mxu0 %v31
  %166 = vmatpush1.msra.mxu0 %v30
  %167 = vmatprep.subr.mxu0 %v35
  %168 = vmatpush1.msra.mxu0 %v34
  %169 = vmatprep.subr.mxu0 %v39
  %170 = vmatpush1.msra.mxu0 %v38
  %171 = vmatprep.subr.mxu0 %v43
  %172 = vmatpush1.msra.mxu0 %v42
  %173 = vmatprep.subr.mxu0 %v47
  %174 = vmatpush1.msra.mxu0 %v46
  %175 = vmatprep.subr.mxu0 %v51
  %176 = vmatpush1.msra.mxu0 %v50
  %177 = vmatprep.subr.mxu0 %v55
  %178 = vmatpush1.msra.mxu0 %v54
  %179 = vmatprep.subr.mxu0 %v59
  %180 = vmatpush1.msra.mxu0 %v58
  %181 = vmatprep.subr.mxu0 %v63
  %182 = vmatpush1.msra.mxu0 %v62
  %183 = vmatprep.subr.mxu0 %v67
  %184 = vmatpush1.msra.mxu0 %v66
  %185 = vmatprep.subr.mxu0 %v71
  %186 = vmatpush1.msra.mxu0 %v70
  %187 = vmatprep.subr.mxu0 %v75
  %188 = vmatpush1.msra.mxu0 %v74
  %189 = vmatprep.subr.mxu0 %v79
  %190 = vmatpush1.msra.mxu0 %v78
  %191 = vmatprep.subr.mxu0 %v83
  %192 = vmatpush1.msra.mxu0 %v82
  %193 = vmatprep.subr.mxu0 0.0
  %194 = vmatpush1.msra.mxu0 0.0
  %195 = vmatprep.subr.mxu0 0.0
  %196 = vmatpush1.msra.mxu0 0.0
  %197 = vmatprep.subr.mxu0 0.0
  %198 = vmatpush1.msra.mxu0 0.0
  %199 = vmatprep.subr.mxu0 0.0
  %200 = vmatpush1.msra.mxu0 0.0
  %201 = vmatprep.subr.mxu0 0.0
  %202 = vmatpush1.msra.mxu0 0.0
  %203 = vmatprep.subr.mxu0 0.0
  %204 = vmatpush1.msra.mxu0 0.0
  %205 = vmatprep.subr.mxu0 0.0
  %206 = vmatpush1.msra.mxu0 0.0
  %207 = vmatprep.subr.mxu0 0.0
  %208 = vmatpush1.msra.mxu0 0.0
  %209 = vmatprep.subr.mxu0 0.0
  %210 = vmatpush1.msra.mxu0 0.0
  %211 = vmatprep.subr.mxu0 0.0
  %212 = vmatpush1.msra.mxu0 0.0
  %213 = vmatprep.subr.mxu0 0.0
  %214 = vmatpush1.msra.mxu0 0.0
  %215 = vmatprep.subr.mxu0 0.0
  %216 = vmatpush1.msra.mxu0 0.0
  %217 = vmatprep.subr.mxu0 0.0
  %218 = vmatpush1.msra.mxu0 0.0
  %219 = vmatprep.subr.mxu0 0.0
  %220 = vmatpush1.msra.mxu0 0.0
  %221 = vmatprep.subr.mxu0 0.0
  %222 = vmatpush1.msra.mxu0 0.0
  %223 = vmatprep.subr.mxu0 0.0
  %224 = vmatpush1.msra.mxu0 0.0
  %225 = vmatprep.mubr.f32.mxu0 0.0
  %226 = vmatmul.mubr.f32.gmra.mrb[0].mxu0 %v84
  %v227 = vpop.f32.mrb[0].mxu0
  %v228 = vadd.f32 0.0, %v227
  %v229 = vpop.f32.mrb[0].mxu0
  %v230 = vadd.f32 0.0, %v229
  %231 = vdwg.mxu0
  %v232 = vadd.f32 %v86, %v157
  %v233 = vadd.f32 %v87, %v159
  %v234 = vadd.f32 %v88, %v228
  %v235 = vadd.f32 %v89, %v230
  %v236 = vxor.u32 %v232, 2147483648
  %v237 = vmul.f32 %v236, 1.442695
  %v238 = vpow.pop %v237
  %v239 = vadd.f32 %v238, 1.0
  %v240 = vrcp.pop %v239
  %v241 = vmul.f32 1.0, %v240
  %v242 = vxor.u32 %v233, 2147483648
  %v243 = vmul.f32 %v242, 1.442695
  %v244 = vpow.pop %v243
  %v245 = vadd.f32 %v244, 1.0
  %v246 = vrcp.pop %v245
  %v247 = vmul.f32 1.0, %v246
  %v248 = vtanh.pop %v234
  %v249 = vxor.u32 %v235, 2147483648
  %v250 = vmul.f32 %v249, 1.442695
  %v251 = vpow.pop %v250
  %v252 = vadd.f32 %v251, 1.0
  %v253 = vrcp.pop %v252
  %v254 = vmul.f32 1.0, %v253
  %v255 = vmul.f32 %v247, %v85
  %v256 = vmul.f32 %v241, %v248
  %v257 = vadd.f32 %v255, %v256
  %v258 = vtanh.pop %v257
  %v259 = vmul.f32 %v254, %v258
  %260 = vst [vmem:[#allocation2] sm:$0xff] %v259
  %261 = vst [vmem:[#allocation3] sm:$0xff] %v257
  %262 = vst [vmem:[%s2] sm:$0xff] %v259
  %s263 = smul.u32 0, 8
  %p264 = scmp.eq.s32.totalorder %s263, 7
  // Predicated region
  $region14: #{text_generator_forward.4} parent=0 // pred_check
    %p265 = pneg %p264
  $region15: #{text_generator_forward.4} parent=0 // pred_check_branch
    %267 = sbr.rel (%p265) target = $region17
  $region16: #{text_generator_forward.4} parent=0 // pred_region
    %268 = vst [vmem:[%s3] sm:$0xff] %v259
    %269 = vst [vmem:[%s4] sm:$0xff] %v257
  $region17: #{text_generator_forward.4} parent=0 // pred_fallthru
    _
  %v270 = vld [vmem:[#allocation2] sm:$0xff]
  %v271 = vld [vmem:[#allocation3] sm:$0xff]
  %s272 = scalar_lea.vmem %s0, 32
  %v273 = vld [vmem:[%s272] sm:$0xff]
  %v274 = vld [vmem:[%s272 + $0x8] sm:$0xff]
  %v275 = vld [vmem:[%s272 + $0x10] sm:$0xff]
  %v276 = vld [vmem:[%s272 + $0x18] sm:$0xff]
  %277 = vmatprep.subr.mxu0 %v21
  %278 = vmatpush1.msra.mxu0 %v20
  %279 = vmatprep.subr.mxu0 %v25
  %280 = vmatpush1.msra.mxu0 %v24
  %281 = vmatprep.subr.mxu0 %v29
  %282 = vmatpush1.msra.mxu0 %v28
  %283 = vmatprep.subr.mxu0 %v33
  %284 = vmatpush1.msra.mxu0 %v32
  %285 = vmatprep.subr.mxu0 %v37
  %286 = vmatpush1.msra.mxu0 %v36
  %287 = vmatprep.subr.mxu0 %v41
  %288 = vmatpush1.msra.mxu0 %v40
  %289 = vmatprep.subr.mxu0 %v45
  %290 = vmatpush1.msra.mxu0 %v44
  %291 = vmatprep.subr.mxu0 %v49
  %292 = vmatpush1.msra.mxu0 %v48
  %293 = vmatprep.subr.mxu0 %v53
  %294 = vmatpush1.msra.mxu0 %v52
  %295 = vmatprep.subr.mxu0 %v57
  %296 = vmatpush1.msra.mxu0 %v56
  %297 = vmatprep.subr.mxu0 %v61
  %298 = vmatpush1.msra.mxu0 %v60
  %299 = vmatprep.subr.mxu0 %v65
  %300 = vmatpush1.msra.mxu0 %v64
  %301 = vmatprep.subr.mxu0 %v69
  %302 = vmatpush1.msra.mxu0 %v68
  %303 = vmatprep.subr.mxu0 %v73
  %304 = vmatpush1.msra.mxu0 %v72
  %305 = vmatprep.subr.mxu0 %v77
  %306 = vmatpush1.msra.mxu0 %v76
  %307 = vmatprep.subr.mxu0 %v81
  %308 = vmatpush1.msra.mxu0 %v80
  %309 = vmatprep.subr.mxu0 0.0
  %310 = vmatpush1.msra.mxu0 0.0
  %311 = vmatprep.subr.mxu0 0.0
  %312 = vmatpush1.msra.mxu0 0.0
  %313 = vmatprep.subr.mxu0 0.0
  %314 = vmatpush1.msra.mxu0 0.0
  %315 = vmatprep.subr.mxu0 0.0
  %316 = vmatpush1.msra.mxu0 0.0
  %317 = vmatprep.subr.mxu0 0.0
  %318 = vmatpush1.msra.mxu0 0.0
  %319 = vmatprep.subr.mxu0 0.0
  %320 = vmatpush1.msra.mxu0 0.0
  %321 = vmatprep.subr.mxu0 0.0
  %322 = vmatpush1.msra.mxu0 0.0
  %323 = vmatprep.subr.mxu0 0.0
  %324 = vmatpush1.msra.mxu0 0.0
  %325 = vmatprep.subr.mxu0 0.0
  %326 = vmatpush1.msra.mxu0 0.0
  %327 = vmatprep.subr.mxu0 0.0
  %328 = vmatpush1.msra.mxu0 0.0
  %329 = vmatprep.subr.mxu0 0.0
  %330 = vmatpush1.msra.mxu0 0.0
  %331 = vmatprep.subr.mxu0 0.0
  %332 = vmatpush1.msra.mxu0 0.0
  %333 = vmatprep.subr.mxu0 0.0
  %334 = vmatpush1.msra.mxu0 0.0
  %335 = vmatprep.subr.mxu0 0.0
  %336 = vmatpush1.msra.mxu0 0.0
  %337 = vmatprep.subr.mxu0 0.0
  %338 = vmatpush1.msra.mxu0 0.0
  %339 = vmatprep.subr.mxu0 0.0
  %340 = vmatpush1.msra.mxu0 0.0
  %341 = vmatprep.mubr.f32.mxu0 0.0
  %342 = vmatmul.mubr.f32.gmra.mrb[0].mxu0 %v270
  %v343 = vpop.f32.mrb[0].mxu0
  %v344 = vadd.f32 0.0, %v343
  %v345 = vpop.f32.mrb[0].mxu0
  %v346 = vadd.f32 0.0, %v345
  %347 = vdwg.mxu0
  %348 = vmatprep.subr.mxu0 %v23
  %349 = vmatpush1.msra.mxu0 %v22
  %350 = vmatprep.subr.mxu0 %v27
  %351 = vmatpush1.msra.mxu0 %v26
  %352 = vmatprep.subr.mxu0 %v31
  %353 = vmatpush1.msra.mxu0 %v30
  %354 = vmatprep.subr.mxu0 %v35
  %355 = vmatpush1.msra.mxu0 %v34
  %356 = vmatprep.subr.mxu0 %v39
  %357 = vmatpush1.msra.mxu0 %v38
  %358 = vmatprep.subr.mxu0 %v43
  %359 = vmatpush1.msra.mxu0 %v42
  %360 = vmatprep.subr.mxu0 %v47
  %361 = vmatpush1.msra.mxu0 %v46
  %362 = vmatprep.subr.mxu0 %v51
  %363 = vmatpush1.msra.mxu0 %v50
  %364 = vmatprep.subr.mxu0 %v55
  %365 = vmatpush1.msra.mxu0 %v54
  %366 = vmatprep.subr.mxu0 %v59
  %367 = vmatpush1.msra.mxu0 %v58
  %368 = vmatprep.subr.mxu0 %v63
  %369 = vmatpush1.msra.mxu0 %v62
  %370 = vmatprep.subr.mxu0 %v67
  %371 = vmatpush1.msra.mxu0 %v66
  %372 = vmatprep.subr.mxu0 %v71
  %373 = vmatpush1.msra.mxu0 %v70
  %374 = vmatprep.subr.mxu0 %v75
  %375 = vmatpush1.msra.mxu0 %v74
  %376 = vmatprep.subr.mxu0 %v79
  %377 = vmatpush1.msra.mxu0 %v78
  %378 = vmatprep.subr.mxu0 %v83
  %379 = vmatpush1.msra.mxu0 %v82
  %380 = vmatprep.subr.mxu0 0.0
  %381 = vmatpush1.msra.mxu0 0.0
  %382 = vmatprep.subr.mxu0 0.0
  %383 = vmatpush1.msra.mxu0 0.0
  %384 = vmatprep.subr.mxu0 0.0
  %385 = vmatpush1.msra.mxu0 0.0
  %386 = vmatprep.subr.mxu0 0.0
  %387 = vmatpush1.msra.mxu0 0.0
  %388 = vmatprep.subr.mxu0 0.0
  %389 = vmatpush1.msra.mxu0 0.0
  %390 = vmatprep.subr.mxu0 0.0
  %391 = vmatpush1.msra.mxu0 0.0
  %392 = vmatprep.subr.mxu0 0.0
  %393 = vmatpush1.msra.mxu0 0.0
  %394 = vmatprep.subr.mxu0 0.0
  %395 = vmatpush1.msra.mxu0 0.0
  %396 = vmatprep.subr.mxu0 0.0
  %397 = vmatpush1.msra.mxu0 0.0
  %398 = vmatprep.subr.mxu0 0.0
  %399 = vmatpush1.msra.mxu0 0.0
  %400 = vmatprep.subr.mxu0 0.0
  %401 = vmatpush1.msra.mxu0 0.0
  %402 = vmatprep.subr.mxu0 0.0
  %403 = vmatpush1.msra.mxu0 0.0
  %404 = vmatprep.subr.mxu0 0.0
  %405 = vmatpush1.msra.mxu0 0.0
  %406 = vmatprep.subr.mxu0 0.0
  %407 = vmatpush1.msra.mxu0 0.0
  %408 = vmatprep.subr.mxu0 0.0
  %409 = vmatpush1.msra.mxu0 0.0
  %410 = vmatprep.subr.mxu0 0.0
  %411 = vmatpush1.msra.mxu0 0.0
  %412 = vmatprep.mubr.f32.mxu0 0.0
  %413 = vmatmul.mubr.f32.gmra.mrb[0].mxu0 %v270
  %v414 = vpop.f32.mrb[0].mxu0
  %v415 = vadd.f32 0.0, %v414
  %v416 = vpop.f32.mrb[0].mxu0
  %v417 = vadd.f32 0.0, %v416
  %418 = vdwg.mxu0
  %v419 = vadd.f32 %v273, %v344
  %v420 = vadd.f32 %v274, %v346
  %v421 = vadd.f32 %v275, %v415
  %v422 = vadd.f32 %v276, %v417
  %v423 = vxor.u32 %v419, 2147483648
  %v424 = vmul.f32 %v423, 1.442695
  %v425 = vpow.pop %v424
  %v426 = vadd.f32 %v425, 1.0
  %v427 = vrcp.pop %v426
  %v428 = vmul.f32 1.0, %v427
  %v429 = vxor.u32 %v420, 2147483648
  %v430 = vmul.f32 %v429, 1.442695
  %v431 = vpow.pop %v430
  %v432 = vadd.f32 %v431, 1.0
  %v433 = vrcp.pop %v432
  %v434 = vmul.f32 1.0, %v433
  %v435 = vtanh.pop %v421
  %v436 = vxor.u32 %v422, 2147483648
  %v437 = vmul.f32 %v436, 1.442695
  %v438 = vpow.pop %v437
  %v439 = vadd.f32 %v438, 1.0
  %v440 = vrcp.pop %v439
  %v441 = vmul.f32 1.0, %v440
  %v442 = vmul.f32 %v434, %v271
  %v443 = vmul.f32 %v428, %v435
  %v444 = vadd.f32 %v442, %v443
  %v445 = vtanh.pop %v444
  %v446 = vmul.f32 %v441, %v445
  %447 = vst [vmem:[#allocation2] sm:$0xff] %v446
  %448 = vst [vmem:[#allocation3] sm:$0xff] %v444
  %s449 = scalar_lea.vmem %s2, 8
  %450 = vst [vmem:[%s449] sm:$0xff] %v446
  %s451 = sadd.s32 %s263, 1
  %p452 = scmp.eq.s32.totalorder %s451, 7
  // Predicated region
  $region18: #{text_generator_forward.4} parent=0 // pred_check
    %p453 = pneg %p452
  $region19: #{text_generator_forward.4} parent=0 // pred_check_branch
    %455 = sbr.rel (%p453) target = $region21
  $region20: #{text_generator_forward.4} parent=0 // pred_region
    %456 = vst [vmem:[%s3] sm:$0xff] %v446
    %457 = vst [vmem:[%s4] sm:$0xff] %v444
  $region21: #{text_generator_forward.4} parent=0 // pred_fallthru
    _
  %v458 = vld [vmem:[#allocation2] sm:$0xff]
  %v459 = vld [vmem:[#allocation3] sm:$0xff]
  %s460 = scalar_lea.vmem %s0, 64
  %v461 = vld [vmem:[%s460] sm:$0xff]
  %v462 = vld [vmem:[%s460 + $0x8] sm:$0xff]
  %v463 = vld [vmem:[%s460 + $0x10] sm:$0xff]
  %v464 = vld [vmem:[%s460 + $0x18] sm:$0xff]
  %465 = vmatprep.subr.mxu0 %v21
  %466 = vmatpush1.msra.mxu0 %v20
  %467 = vmatprep.subr.mxu0 %v25
  %468 = vmatpush1.msra.mxu0 %v24
  %469 = vmatprep.subr.mxu0 %v29
  %470 = vmatpush1.msra.mxu0 %v28
  %471 = vmatprep.subr.mxu0 %v33
  %472 = vmatpush1.msra.mxu0 %v32
  %473 = vmatprep.subr.mxu0 %v37
  %474 = vmatpush1.msra.mxu0 %v36
  %475 = vmatprep.subr.mxu0 %v41
  %476 = vmatpush1.msra.mxu0 %v40
  %477 = vmatprep.subr.mxu0 %v45
  %478 = vmatpush1.msra.mxu0 %v44
  %479 = vmatprep.subr.mxu0 %v49
  %480 = vmatpush1.msra.mxu0 %v48
  %481 = vmatprep.subr.mxu0 %v53
  %482 = vmatpush1.msra.mxu0 %v52
  %483 = vmatprep.subr.mxu0 %v57
  %484 = vmatpush1.msra.mxu0 %v56
  %485 = vmatprep.subr.mxu0 %v61
  %486 = vmatpush1.msra.mxu0 %v60
  %487 = vmatprep.subr.mxu0 %v65
  %488 = vmatpush1.msra.mxu0 %v64
  %489 = vmatprep.subr.mxu0 %v69
  %490 = vmatpush1.msra.mxu0 %v68
  %491 = vmatprep.subr.mxu0 %v73
  %492 = vmatpush1.msra.mxu0 %v72
  %493 = vmatprep.subr.mxu0 %v77
  %494 = vmatpush1.msra.mxu0 %v76
  %495 = vmatprep.subr.mxu0 %v81
  %496 = vmatpush1.msra.mxu0 %v80
  %497 = vmatprep.subr.mxu0 0.0
  %498 = vmatpush1.msra.mxu0 0.0
  %499 = vmatprep.subr.mxu0 0.0
  %500 = vmatpush1.msra.mxu0 0.0
  %501 = vmatprep.subr.mxu0 0.0
  %502 = vmatpush1.msra.mxu0 0.0
  %503 = vmatprep.subr.mxu0 0.0
  %504 = vmatpush1.msra.mxu0 0.0
  %505 = vmatprep.subr.mxu0 0.0
  %506 = vmatpush1.msra.mxu0 0.0
  %507 = vmatprep.subr.mxu0 0.0
  %508 = vmatpush1.msra.mxu0 0.0
  %509 = vmatprep.subr.mxu0 0.0
  %510 = vmatpush1.msra.mxu0 0.0
  %511 = vmatprep.subr.mxu0 0.0
  %512 = vmatpush1.msra.mxu0 0.0
  %513 = vmatprep.subr.mxu0 0.0
  %514 = vmatpush1.msra.mxu0 0.0
  %515 = vmatprep.subr.mxu0 0.0
  %516 = vmatpush1.msra.mxu0 0.0
  %517 = vmatprep.subr.mxu0 0.0
  %518 = vmatpush1.msra.mxu0 0.0
  %519 = vmatprep.subr.mxu0 0.0
  %520 = vmatpush1.msra.mxu0 0.0
  %521 = vmatprep.subr.mxu0 0.0
  %522 = vmatpush1.msra.mxu0 0.0
  %523 = vmatprep.subr.mxu0 0.0
  %524 = vmatpush1.msra.mxu0 0.0
  %525 = vmatprep.subr.mxu0 0.0
  %526 = vmatpush1.msra.mxu0 0.0
  %527 = vmatprep.subr.mxu0 0.0
  %528 = vmatpush1.msra.mxu0 0.0
  %529 = vmatprep.mubr.f32.mxu0 0.0
  %530 = vmatmul.mubr.f32.gmra.mrb[0].mxu0 %v458
  %v531 = vpop.f32.mrb[0].mxu0
  %v532 = vadd.f32 0.0, %v531
  %v533 = vpop.f32.mrb[0].mxu0
  %v534 = vadd.f32 0.0, %v533
  %535 = vdwg.mxu0
  %536 = vmatprep.subr.mxu0 %v23
  %537 = vmatpush1.msra.mxu0 %v22
  %538 = vmatprep.subr.mxu0 %v27
  %539 = vmatpush1.msra.mxu0 %v26
  %540 = vmatprep.subr.mxu0 %v31
  %541 = vmatpush1.msra.mxu0 %v30
  %542 = vmatprep.subr.mxu0 %v35
  %543 = vmatpush1.msra.mxu0 %v34
  %544 = vmatprep.subr.mxu0 %v39
  %545 = vmatpush1.msra.mxu0 %v38
  %546 = vmatprep.subr.mxu0 %v43
  %547 = vmatpush1.msra.mxu0 %v42
  %548 = vmatprep.subr.mxu0 %v47
  %549 = vmatpush1.msra.mxu0 %v46
  %550 = vmatprep.subr.mxu0 %v51
  %551 = vmatpush1.msra.mxu0 %v50
  %552 = vmatprep.subr.mxu0 %v55
  %553 = vmatpush1.msra.mxu0 %v54
  %554 = vmatprep.subr.mxu0 %v59
  %555 = vmatpush1.msra.mxu0 %v58
  %556 = vmatprep.subr.mxu0 %v63
  %557 = vmatpush1.msra.mxu0 %v62
  %558 = vmatprep.subr.mxu0 %v67
  %559 = vmatpush1.msra.mxu0 %v66
  %560 = vmatprep.subr.mxu0 %v71
  %561 = vmatpush1.msra.mxu0 %v70
  %562 = vmatprep.subr.mxu0 %v75
  %563 = vmatpush1.msra.mxu0 %v74
  %564 = vmatprep.subr.mxu0 %v79
  %565 = vmatpush1.msra.mxu0 %v78
  %566 = vmatprep.subr.mxu0 %v83
  %567 = vmatpush1.msra.mxu0 %v82
  %568 = vmatprep.subr.mxu0 0.0
  %569 = vmatpush1.msra.mxu0 0.0
  %570 = vmatprep.subr.mxu0 0.0
  %571 = vmatpush1.msra.mxu0 0.0
  %572 = vmatprep.subr.mxu0 0.0
  %573 = vmatpush1.msra.mxu0 0.0
  %574 = vmatprep.subr.mxu0 0.0
  %575 = vmatpush1.msra.mxu0 0.0
  %576 = vmatprep.subr.mxu0 0.0
  %577 = vmatpush1.msra.mxu0 0.0
  %578 = vmatprep.subr.mxu0 0.0
  %579 = vmatpush1.msra.mxu0 0.0
  %580 = vmatprep.subr.mxu0 0.0
  %581 = vmatpush1.msra.mxu0 0.0
  %582 = vmatprep.subr.mxu0 0.0
  %583 = vmatpush1.msra.mxu0 0.0
  %584 = vmatprep.subr.mxu0 0.0
  %585 = vmatpush1.msra.mxu0 0.0
  %586 = vmatprep.subr.mxu0 0.0
  %587 = vmatpush1.msra.mxu0 0.0
  %588 = vmatprep.subr.mxu0 0.0
  %589 = vmatpush1.msra.mxu0 0.0
  %590 = vmatprep.subr.mxu0 0.0
  %591 = vmatpush1.msra.mxu0 0.0
  %592 = vmatprep.subr.mxu0 0.0
  %593 = vmatpush1.msra.mxu0 0.0
  %594 = vmatprep.subr.mxu0 0.0
  %595 = vmatpush1.msra.mxu0 0.0
  %596 = vmatprep.subr.mxu0 0.0
  %597 = vmatpush1.msra.mxu0 0.0
  %598 = vmatprep.subr.mxu0 0.0
  %599 = vmatpush1.msra.mxu0 0.0
  %600 = vmatprep.mubr.f32.mxu0 0.0
  %601 = vmatmul.mubr.f32.gmra.mrb[0].mxu0 %v458
  %v602 = vpop.f32.mrb[0].mxu0
  %v603 = vadd.f32 0.0, %v602
  %v604 = vpop.f32.mrb[0].mxu0
  %v605 = vadd.f32 0.0, %v604
  %606 = vdwg.mxu0
  %v607 = vadd.f32 %v461, %v532
  %v608 = vadd.f32 %v462, %v534
  %v609 = vadd.f32 %v463, %v603
  %v610 = vadd.f32 %v464, %v605
  %v611 = vxor.u32 %v607, 2147483648
  %v612 = vmul.f32 %v611, 1.442695
  %v613 = vpow.pop %v612
  %v614 = vadd.f32 %v613, 1.0
  %v615 = vrcp.pop %v614
  %v616 = vmul.f32 1.0, %v615
  %v617 = vxor.u32 %v608, 2147483648
  %v618 = vmul.f32 %v617, 1.442695
  %v619 = vpow.pop %v618
  %v620 = vadd.f32 %v619, 1.0
  %v621 = vrcp.pop %v620
  %v622 = vmul.f32 1.0, %v621
  %v623 = vtanh.pop %v609
  %v624 = vxor.u32 %v610, 2147483648
  %v625 = vmul.f32 %v624, 1.442695
  %v626 = vpow.pop %v625
  %v627 = vadd.f32 %v626, 1.0
  %v628 = vrcp.pop %v627
  %v629 = vmul.f32 1.0, %v628
  %v630 = vmul.f32 %v622, %v459
  %v631 = vmul.f32 %v616, %v623
  %v632 = vadd.f32 %v630, %v631
  %v633 = vtanh.pop %v632
  %v634 = vmul.f32 %v629, %v633
  %635 = vst [vmem:[#allocation2] sm:$0xff] %v634
  %636 = vst [vmem:[#allocation3] sm:$0xff] %v632
  %s637 = scalar_lea.vmem %s2, 16
  %638 = vst [vmem:[%s637] sm:$0xff] %v634
  %s639 = sadd.s32 %s263, 2
  %p640 = scmp.eq.s32.totalorder %s639, 7
  // Predicated region
  $region22: #{text_generator_forward.4} parent=0 // pred_check
    %p641 = pneg %p640
  $region23: #{text_generator_forward.4} parent=0 // pred_check_branch
    %643 = sbr.rel (%p641) target = $region25
  $region24: #{text_generator_forward.4} parent=0 // pred_region
    %644 = vst [vmem:[%s3] sm:$0xff] %v634
    %645 = vst [vmem:[%s4] sm:$0xff] %v632
  $region25: #{text_generator_forward.4} parent=0 // pred_fallthru
    _
  %v646 = vld [vmem:[#allocation2] sm:$0xff]
  %v647 = vld [vmem:[#allocation3] sm:$0xff]
  %s648 = scalar_lea.vmem %s0, 96
  %v649 = vld [vmem:[%s648] sm:$0xff]
  %v650 = vld [vmem:[%s648 + $0x8] sm:$0xff]
  %v651 = vld [vmem:[%s648 + $0x10] sm:$0xff]
  %v652 = vld [vmem:[%s648 + $0x18] sm:$0xff]
  %653 = vmatprep.subr.mxu0 %v21
  %654 = vmatpush1.msra.mxu0 %v20
  %655 = vmatprep.subr.mxu0 %v25
  %656 = vmatpush1.msra.mxu0 %v24
  %657 = vmatprep.subr.mxu0 %v29
  %658 = vmatpush1.msra.mxu0 %v28
  %659 = vmatprep.subr.mxu0 %v33
  %660 = vmatpush1.msra.mxu0 %v32
  %661 = vmatprep.subr.mxu0 %v37
  %662 = vmatpush1.msra.mxu0 %v36
  %663 = vmatprep.subr.mxu0 %v41
  %664 = vmatpush1.msra.mxu0 %v40
  %665 = vmatprep.subr.mxu0 %v45
  %666 = vmatpush1.msra.mxu0 %v44
  %667 = vmatprep.subr.mxu0 %v49
  %668 = vmatpush1.msra.mxu0 %v48
  %669 = vmatprep.subr.mxu0 %v53
  %670 = vmatpush1.msra.mxu0 %v52
  %671 = vmatprep.subr.mxu0 %v57
  %672 = vmatpush1.msra.mxu0 %v56
  %673 = vmatprep.subr.mxu0 %v61
  %674 = vmatpush1.msra.mxu0 %v60
  %675 = vmatprep.subr.mxu0 %v65
  %676 = vmatpush1.msra.mxu0 %v64
  %677 = vmatprep.subr.mxu0 %v69
  %678 = vmatpush1.msra.mxu0 %v68
  %679 = vmatprep.subr.mxu0 %v73
  %680 = vmatpush1.msra.mxu0 %v72
  %681 = vmatprep.subr.mxu0 %v77
  %682 = vmatpush1.msra.mxu0 %v76
  %683 = vmatprep.subr.mxu0 %v81
  %684 = vmatpush1.msra.mxu0 %v80
  %685 = vmatprep.subr.mxu0 0.0
  %686 = vmatpush1.msra.mxu0 0.0
  %687 = vmatprep.subr.mxu0 0.0
  %688 = vmatpush1.msra.mxu0 0.0
  %689 = vmatprep.subr.mxu0 0.0
  %690 = vmatpush1.msra.mxu0 0.0
  %691 = vmatprep.subr.mxu0 0.0
  %692 = vmatpush1.msra.mxu0 0.0
  %693 = vmatprep.subr.mxu0 0.0
  %694 = vmatpush1.msra.mxu0 0.0
  %695 = vmatprep.subr.mxu0 0.0
  %696 = vmatpush1.msra.mxu0 0.0
  %697 = vmatprep.subr.mxu0 0.0
  %698 = vmatpush1.msra.mxu0 0.0
  %699 = vmatprep.subr.mxu0 0.0
  %700 = vmatpush1.msra.mxu0 0.0
  %701 = vmatprep.subr.mxu0 0.0
  %702 = vmatpush1.msra.mxu0 0.0
  %703 = vmatprep.subr.mxu0 0.0
  %704 = vmatpush1.msra.mxu0 0.0
  %705 = vmatprep.subr.mxu0 0.0
  %706 = vmatpush1.msra.mxu0 0.0
  %707 = vmatprep.subr.mxu0 0.0
  %708 = vmatpush1.msra.mxu0 0.0
  %709 = vmatprep.subr.mxu0 0.0
  %710 = vmatpush1.msra.mxu0 0.0
  %711 = vmatprep.subr.mxu0 0.0
  %712 = vmatpush1.msra.mxu0 0.0
  %713 = vmatprep.subr.mxu0 0.0
  %714 = vmatpush1.msra.mxu0 0.0
  %715 = vmatprep.subr.mxu0 0.0
  %716 = vmatpush1.msra.mxu0 0.0
  %717 = vmatprep.mubr.f32.mxu0 0.0
  %718 = vmatmul.mubr.f32.gmra.mrb[0].mxu0 %v646
  %v719 = vpop.f32.mrb[0].mxu0
  %v720 = vadd.f32 0.0, %v719
  %v721 = vpop.f32.mrb[0].mxu0
  %v722 = vadd.f32 0.0, %v721
  %723 = vdwg.mxu0
  %724 = vmatprep.subr.mxu0 %v23
  %725 = vmatpush1.msra.mxu0 %v22
  %726 = vmatprep.subr.mxu0 %v27
  %727 = vmatpush1.msra.mxu0 %v26
  %728 = vmatprep.subr.mxu0 %v31
  %729 = vmatpush1.msra.mxu0 %v30
  %730 = vmatprep.subr.mxu0 %v35
  %731 = vmatpush1.msra.mxu0 %v34
  %732 = vmatprep.subr.mxu0 %v39
  %733 = vmatpush1.msra.mxu0 %v38
  %734 = vmatprep.subr.mxu0 %v43
  %735 = vmatpush1.msra.mxu0 %v42
  %736 = vmatprep.subr.mxu0 %v47
  %737 = vmatpush1.msra.mxu0 %v46
  %738 = vmatprep.subr.mxu0 %v51
  %739 = vmatpush1.msra.mxu0 %v50
  %740 = vmatprep.subr.mxu0 %v55
  %741 = vmatpush1.msra.mxu0 %v54
  %742 = vmatprep.subr.mxu0 %v59
  %743 = vmatpush1.msra.mxu0 %v58
  %744 = vmatprep.subr.mxu0 %v63
  %745 = vmatpush1.msra.mxu0 %v62
  %746 = vmatprep.subr.mxu0 %v67
  %747 = vmatpush1.msra.mxu0 %v66
  %748 = vmatprep.subr.mxu0 %v71
  %749 = vmatpush1.msra.mxu0 %v70
  %750 = vmatprep.subr.mxu0 %v75
  %751 = vmatpush1.msra.mxu0 %v74
  %752 = vmatprep.subr.mxu0 %v79
  %753 = vmatpush1.msra.mxu0 %v78
  %754 = vmatprep.subr.mxu0 %v83
  %755 = vmatpush1.msra.mxu0 %v82
  %756 = vmatprep.subr.mxu0 0.0
  %757 = vmatpush1.msra.mxu0 0.0
  %758 = vmatprep.subr.mxu0 0.0
  %759 = vmatpush1.msra.mxu0 0.0
  %760 = vmatprep.subr.mxu0 0.0
  %761 = vmatpush1.msra.mxu0 0.0
  %762 = vmatprep.subr.mxu0 0.0
  %763 = vmatpush1.msra.mxu0 0.0
  %764 = vmatprep.subr.mxu0 0.0
  %765 = vmatpush1.msra.mxu0 0.0
  %766 = vmatprep.subr.mxu0 0.0
  %767 = vmatpush1.msra.mxu0 0.0
  %768 = vmatprep.subr.mxu0 0.0
  %769 = vmatpush1.msra.mxu0 0.0
  %770 = vmatprep.subr.mxu0 0.0
  %771 = vmatpush1.msra.mxu0 0.0
  %772 = vmatprep.subr.mxu0 0.0
  %773 = vmatpush1.msra.mxu0 0.0
  %774 = vmatprep.subr.mxu0 0.0
  %775 = vmatpush1.msra.mxu0 0.0
  %776 = vmatprep.subr.mxu0 0.0
  %777 = vmatpush1.msra.mxu0 0.0
  %778 = vmatprep.subr.mxu0 0.0
  %779 = vmatpush1.msra.mxu0 0.0
  %780 = vmatprep.subr.mxu0 0.0
  %781 = vmatpush1.msra.mxu0 0.0
  %782 = vmatprep.subr.mxu0 0.0
  %783 = vmatpush1.msra.mxu0 0.0
  %784 = vmatprep.subr.mxu0 0.0
  %785 = vmatpush1.msra.mxu0 0.0
  %786 = vmatprep.subr.mxu0 0.0
  %787 = vmatpush1.msra.mxu0 0.0
  %788 = vmatprep.mubr.f32.mxu0 0.0
  %789 = vmatmul.mubr.f32.gmra.mrb[0].mxu0 %v646
  %v790 = vpop.f32.mrb[0].mxu0
  %v791 = vadd.f32 0.0, %v790
  %v792 = vpop.f32.mrb[0].mxu0
  %v793 = vadd.f32 0.0, %v792
  %794 = vdwg.mxu0
  %v795 = vadd.f32 %v649, %v720
  %v796 = vadd.f32 %v650, %v722
  %v797 = vadd.f32 %v651, %v791
  %v798 = vadd.f32 %v652, %v793
  %v799 = vxor.u32 %v795, 2147483648
  %v800 = vmul.f32 %v799, 1.442695
  %v801 = vpow.pop %v800
  %v802 = vadd.f32 %v801, 1.0
  %v803 = vrcp.pop %v802
  %v804 = vmul.f32 1.0, %v803
  %v805 = vxor.u32 %v796, 2147483648
  %v806 = vmul.f32 %v805, 1.442695
  %v807 = vpow.pop %v806
  %v808 = vadd.f32 %v807, 1.0
  %v809 = vrcp.pop %v808
  %v810 = vmul.f32 1.0, %v809
  %v811 = vtanh.pop %v797
  %v812 = vxor.u32 %v798, 2147483648
  %v813 = vmul.f32 %v812, 1.442695
  %v814 = vpow.pop %v813
  %v815 = vadd.f32 %v814, 1.0
  %v816 = vrcp.pop %v815
  %v817 = vmul.f32 1.0, %v816
  %v818 = vmul.f32 %v810, %v647
  %v819 = vmul.f32 %v804, %v811
  %v820 = vadd.f32 %v818, %v819
  %v821 = vtanh.pop %v820
  %v822 = vmul.f32 %v817, %v821
  %823 = vst [vmem:[#allocation2] sm:$0xff] %v822
  %824 = vst [vmem:[#allocation3] sm:$0xff] %v820
  %s825 = scalar_lea.vmem %s2, 24
  %826 = vst [vmem:[%s825] sm:$0xff] %v822
  %s827 = sadd.s32 %s263, 3
  %p828 = scmp.eq.s32.totalorder %s827, 7
  // Predicated region
  $region26: #{text_generator_forward.4} parent=0 // pred_check
    %p829 = pneg %p828
  $region27: #{text_generator_forward.4} parent=0 // pred_check_branch
    %831 = sbr.rel (%p829) target = $region29
  $region28: #{text_generator_forward.4} parent=0 // pred_region
    %832 = vst [vmem:[%s3] sm:$0xff] %v822
    %833 = vst [vmem:[%s4] sm:$0xff] %v820
  $region29: #{text_generator_forward.4} parent=0 // pred_fallthru
    _
  %v834 = vld [vmem:[#allocation2] sm:$0xff]
  %v835 = vld [vmem:[#allocation3] sm:$0xff]
  %s836 = scalar_lea.vmem %s0, 128
  %v837 = vld [vmem:[%s836] sm:$0xff]
  %v838 = vld [vmem:[%s836 + $0x8] sm:$0xff]
  %v839 = vld [vmem:[%s836 + $0x10] sm:$0xff]
  %v840 = vld [vmem:[%s836 + $0x18] sm:$0xff]
  %841 = vmatprep.subr.mxu0 %v21
  %842 = vmatpush1.msra.mxu0 %v20
  %843 = vmatprep.subr.mxu0 %v25
  %844 = vmatpush1.msra.mxu0 %v24
  %845 = vmatprep.subr.mxu0 %v29
  %846 = vmatpush1.msra.mxu0 %v28
  %847 = vmatprep.subr.mxu0 %v33
  %848 = vmatpush1.msra.mxu0 %v32
  %849 = vmatprep.subr.mxu0 %v37
  %850 = vmatpush1.msra.mxu0 %v36
  %851 = vmatprep.subr.mxu0 %v41
  %852 = vmatpush1.msra.mxu0 %v40
  %853 = vmatprep.subr.mxu0 %v45
  %854 = vmatpush1.msra.mxu0 %v44
  %855 = vmatprep.subr.mxu0 %v49
  %856 = vmatpush1.msra.mxu0 %v48
  %857 = vmatprep.subr.mxu0 %v53
  %858 = vmatpush1.msra.mxu0 %v52
  %859 = vmatprep.subr.mxu0 %v57
  %860 = vmatpush1.msra.mxu0 %v56
  %861 = vmatprep.subr.mxu0 %v61
  %862 = vmatpush1.msra.mxu0 %v60
  %863 = vmatprep.subr.mxu0 %v65
  %864 = vmatpush1.msra.mxu0 %v64
  %865 = vmatprep.subr.mxu0 %v69
  %866 = vmatpush1.msra.mxu0 %v68
  %867 = vmatprep.subr.mxu0 %v73
  %868 = vmatpush1.msra.mxu0 %v72
  %869 = vmatprep.subr.mxu0 %v77
  %870 = vmatpush1.msra.mxu0 %v76
  %871 = vmatprep.subr.mxu0 %v81
  %872 = vmatpush1.msra.mxu0 %v80
  %873 = vmatprep.subr.mxu0 0.0
  %874 = vmatpush1.msra.mxu0 0.0
  %875 = vmatprep.subr.mxu0 0.0
  %876 = vmatpush1.msra.mxu0 0.0
  %877 = vmatprep.subr.mxu0 0.0
  %878 = vmatpush1.msra.mxu0 0.0
  %879 = vmatprep.subr.mxu0 0.0
  %880 = vmatpush1.msra.mxu0 0.0
  %881 = vmatprep.subr.mxu0 0.0
  %882 = vmatpush1.msra.mxu0 0.0
  %883 = vmatprep.subr.mxu0 0.0
  %884 = vmatpush1.msra.mxu0 0.0
  %885 = vmatprep.subr.mxu0 0.0
  %886 = vmatpush1.msra.mxu0 0.0
  %887 = vmatprep.subr.mxu0 0.0
  %888 = vmatpush1.msra.mxu0 0.0
  %889 = vmatprep.subr.mxu0 0.0
  %890 = vmatpush1.msra.mxu0 0.0
  %891 = vmatprep.subr.mxu0 0.0
  %892 = vmatpush1.msra.mxu0 0.0
  %893 = vmatprep.subr.mxu0 0.0
  %894 = vmatpush1.msra.mxu0 0.0
  %895 = vmatprep.subr.mxu0 0.0
  %896 = vmatpush1.msra.mxu0 0.0
  %897 = vmatprep.subr.mxu0 0.0
  %898 = vmatpush1.msra.mxu0 0.0
  %899 = vmatprep.subr.mxu0 0.0
  %900 = vmatpush1.msra.mxu0 0.0
  %901 = vmatprep.subr.mxu0 0.0
  %902 = vmatpush1.msra.mxu0 0.0
  %903 = vmatprep.subr.mxu0 0.0
  %904 = vmatpush1.msra.mxu0 0.0
  %905 = vmatprep.mubr.f32.mxu0 0.0
  %906 = vmatmul.mubr.f32.gmra.mrb[0].mxu0 %v834
  %v907 = vpop.f32.mrb[0].mxu0
  %v908 = vadd.f32 0.0, %v907
  %v909 = vpop.f32.mrb[0].mxu0
  %v910 = vadd.f32 0.0, %v909
  %911 = vdwg.mxu0
  %912 = vmatprep.subr.mxu0 %v23
  %913 = vmatpush1.msra.mxu0 %v22
  %914 = vmatprep.subr.mxu0 %v27
  %915 = vmatpush1.msra.mxu0 %v26
  %916 = vmatprep.subr.mxu0 %v31
  %917 = vmatpush1.msra.mxu0 %v30
  %918 = vmatprep.subr.mxu0 %v35
  %919 = vmatpush1.msra.mxu0 %v34
  %920 = vmatprep.subr.mxu0 %v39
  %921 = vmatpush1.msra.mxu0 %v38
  %922 = vmatprep.subr.mxu0 %v43
  %923 = vmatpush1.msra.mxu0 %v42
  %924 = vmatprep.subr.mxu0 %v47
  %925 = vmatpush1.msra.mxu0 %v46
  %926 = vmatprep.subr.mxu0 %v51
  %927 = vmatpush1.msra.mxu0 %v50
  %928 = vmatprep.subr.mxu0 %v55
  %929 = vmatpush1.msra.mxu0 %v54
  %930 = vmatprep.subr.mxu0 %v59
  %931 = vmatpush1.msra.mxu0 %v58
  %932 = vmatprep.subr.mxu0 %v63
  %933 = vmatpush1.msra.mxu0 %v62
  %934 = vmatprep.subr.mxu0 %v67
  %935 = vmatpush1.msra.mxu0 %v66
  %936 = vmatprep.subr.mxu0 %v71
  %937 = vmatpush1.msra.mxu0 %v70
  %938 = vmatprep.subr.mxu0 %v75
  %939 = vmatpush1.msra.mxu0 %v74
  %940 = vmatprep.subr.mxu0 %v79
  %941 = vmatpush1.msra.mxu0 %v78
  %942 = vmatprep.subr.mxu0 %v83
  %943 = vmatpush1.msra.mxu0 %v82
  %944 = vmatprep.subr.mxu0 0.0
  %945 = vmatpush1.msra.mxu0 0.0
  %946 = vmatprep.subr.mxu0 0.0
  %947 = vmatpush1.msra.mxu0 0.0
  %948 = vmatprep.subr.mxu0 0.0
  %949 = vmatpush1.msra.mxu0 0.0
  %950 = vmatprep.subr.mxu0 0.0
  %951 = vmatpush1.msra.mxu0 0.0
  %952 = vmatprep.subr.mxu0 0.0
  %953 = vmatpush1.msra.mxu0 0.0
  %954 = vmatprep.subr.mxu0 0.0
  %955 = vmatpush1.msra.mxu0 0.0
  %956 = vmatprep.subr.mxu0 0.0
  %957 = vmatpush1.msra.mxu0 0.0
  %958 = vmatprep.subr.mxu0 0.0
  %959 = vmatpush1.msra.mxu0 0.0
  %960 = vmatprep.subr.mxu0 0.0
  %961 = vmatpush1.msra.mxu0 0.0
  %962 = vmatprep.subr.mxu0 0.0
  %963 = vmatpush1.msra.mxu0 0.0
  %964 = vmatprep.subr.mxu0 0.0
  %965 = vmatpush1.msra.mxu0 0.0
  %966 = vmatprep.subr.mxu0 0.0
  %967 = vmatpush1.msra.mxu0 0.0
  %968 = vmatprep.subr.mxu0 0.0
  %969 = vmatpush1.msra.mxu0 0.0
  %970 = vmatprep.subr.mxu0 0.0
  %971 = vmatpush1.msra.mxu0 0.0
  %972 = vmatprep.subr.mxu0 0.0
  %973 = vmatpush1.msra.mxu0 0.0
  %974 = vmatprep.subr.mxu0 0.0
  %975 = vmatpush1.msra.mxu0 0.0
  %976 = vmatprep.mubr.f32.mxu0 0.0
  %977 = vmatmul.mubr.f32.gmra.mrb[0].mxu0 %v834
  %v978 = vpop.f32.mrb[0].mxu0
  %v979 = vadd.f32 0.0, %v978
  %v980 = vpop.f32.mrb[0].mxu0
  %v981 = vadd.f32 0.0, %v980
  %982 = vdwg.mxu0
  %v983 = vadd.f32 %v837, %v908
  %v984 = vadd.f32 %v838, %v910
  %v985 = vadd.f32 %v839, %v979
  %v986 = vadd.f32 %v840, %v981
  %v987 = vxor.u32 %v983, 2147483648
  %v988 = vmul.f32 %v987, 1.442695
  %v989 = vpow.pop %v988
  %v990 = vadd.f32 %v989, 1.0
  %v991 = vrcp.pop %v990
  %v992 = vmul.f32 1.0, %v991
  %v993 = vxor.u32 %v984, 2147483648
  %v994 = vmul.f32 %v993, 1.442695
  %v995 = vpow.pop %v994
  %v996 = vadd.f32 %v995, 1.0
  %v997 = vrcp.pop %v996
  %v998 = vmul.f32 1.0, %v997
  %v999 = vtanh.pop %v985
  %v1000 = vxor.u32 %v986, 2147483648
  %v1001 = vmul.f32 %v1000, 1.442695
  %v1002 = vpow.pop %v1001
  %v1003 = vadd.f32 %v1002, 1.0
  %v1004 = vrcp.pop %v1003
  %v1005 = vmul.f32 1.0, %v1004
  %v1006 = vmul.f32 %v998, %v835
  %v1007 = vmul.f32 %v992, %v999
  %v1008 = vadd.f32 %v1006, %v1007
  %v1009 = vtanh.pop %v1008
  %v1010 = vmul.f32 %v1005, %v1009
  %1011 = vst [vmem:[#allocation2] sm:$0xff] %v1010
  %1012 = vst [vmem:[#allocation3] sm:$0xff] %v1008
  %s1013 = scalar_lea.vmem %s2, 32
  %1014 = vst [vmem:[%s1013] sm:$0xff] %v1010
  %s1015 = sadd.s32 %s263, 4
  %p1016 = scmp.eq.s32.totalorder %s1015, 7
  // Predicated region
  $region30: #{text_generator_forward.4} parent=0 // pred_check
    %p1017 = pneg %p1016
  $region31: #{text_generator_forward.4} parent=0 // pred_check_branch
    %1019 = sbr.rel (%p1017) target = $region33
  $region32: #{text_generator_forward.4} parent=0 // pred_region
    %1020 = vst [vmem:[%s3] sm:$0xff] %v1010
    %1021 = vst [vmem:[%s4] sm:$0xff] %v1008
  $region33: #{text_generator_forward.4} parent=0 // pred_fallthru
    _
  %v1022 = vld [vmem:[#allocation2] sm:$0xff]
  %v1023 = vld [vmem:[#allocation3] sm:$0xff]
  %s1024 = scalar_lea.vmem %s0, 160
  %v1025 = vld [vmem:[%s1024] sm:$0xff]
  %v1026 = vld [vmem:[%s1024 + $0x8] sm:$0xff]
  %v1027 = vld [vmem:[%s1024 + $0x10] sm:$0xff]
  %v1028 = vld [vmem:[%s1024 + $0x18] sm:$0xff]
  %1029 = vmatprep.subr.mxu0 %v21
  %1030 = vmatpush1.msra.mxu0 %v20
  %1031 = vmatprep.subr.mxu0 %v25
  %1032 = vmatpush1.msra.mxu0 %v24
  %1033 = vmatprep.subr.mxu0 %v29
  %1034 = vmatpush1.msra.mxu0 %v28
  %1035 = vmatprep.subr.mxu0 %v33
  %1036 = vmatpush1.msra.mxu0 %v32
  %1037 = vmatprep.subr.mxu0 %v37
  %1038 = vmatpush1.msra.mxu0 %v36
  %1039 = vmatprep.subr.mxu0 %v41
  %1040 = vmatpush1.msra.mxu0 %v40
  %1041 = vmatprep.subr.mxu0 %v45
  %1042 = vmatpush1.msra.mxu0 %v44
  %1043 = vmatprep.subr.mxu0 %v49
  %1044 = vmatpush1.msra.mxu0 %v48
  %1045 = vmatprep.subr.mxu0 %v53
  %1046 = vmatpush1.msra.mxu0 %v52
  %1047 = vmatprep.subr.mxu0 %v57
  %1048 = vmatpush1.msra.mxu0 %v56
  %1049 = vmatprep.subr.mxu0 %v61
  %1050 = vmatpush1.msra.mxu0 %v60
  %1051 = vmatprep.subr.mxu0 %v65
  %1052 = vmatpush1.msra.mxu0 %v64
  %1053 = vmatprep.subr.mxu0 %v69
  %1054 = vmatpush1.msra.mxu0 %v68
  %1055 = vmatprep.subr.mxu0 %v73
  %1056 = vmatpush1.msra.mxu0 %v72
  %1057 = vmatprep.subr.mxu0 %v77
  %1058 = vmatpush1.msra.mxu0 %v76
  %1059 = vmatprep.subr.mxu0 %v81
  %1060 = vmatpush1.msra.mxu0 %v80
  %1061 = vmatprep.subr.mxu0 0.0
  %1062 = vmatpush1.msra.mxu0 0.0
  %1063 = vmatprep.subr.mxu0 0.0
  %1064 = vmatpush1.msra.mxu0 0.0
  %1065 = vmatprep.subr.mxu0 0.0
  %1066 = vmatpush1.msra.mxu0 0.0
  %1067 = vmatprep.subr.mxu0 0.0
  %1068 = vmatpush1.msra.mxu0 0.0
  %1069 = vmatprep.subr.mxu0 0.0
  %1070 = vmatpush1.msra.mxu0 0.0
  %1071 = vmatprep.subr.mxu0 0.0
  %1072 = vmatpush1.msra.mxu0 0.0
  %1073 = vmatprep.subr.mxu0 0.0
  %1074 = vmatpush1.msra.mxu0 0.0
  %1075 = vmatprep.subr.mxu0 0.0
  %1076 = vmatpush1.msra.mxu0 0.0
  %1077 = vmatprep.subr.mxu0 0.0
  %1078 = vmatpush1.msra.mxu0 0.0
  %1079 = vmatprep.subr.mxu0 0.0
  %1080 = vmatpush1.msra.mxu0 0.0
  %1081 = vmatprep.subr.mxu0 0.0
  %1082 = vmatpush1.msra.mxu0 0.0
  %1083 = vmatprep.subr.mxu0 0.0
  %1084 = vmatpush1.msra.mxu0 0.0
  %1085 = vmatprep.subr.mxu0 0.0
  %1086 = vmatpush1.msra.mxu0 0.0
  %1087 = vmatprep.subr.mxu0 0.0
  %1088 = vmatpush1.msra.mxu0 0.0
  %1089 = vmatprep.subr.mxu0 0.0
  %1090 = vmatpush1.msra.mxu0 0.0
  %1091 = vmatprep.subr.mxu0 0.0
  %1092 = vmatpush1.msra.mxu0 0.0
  %1093 = vmatprep.mubr.f32.mxu0 0.0
  %1094 = vmatmul.mubr.f32.gmra.mrb[0].mxu0 %v1022
  %v1095 = vpop.f32.mrb[0].mxu0
  %v1096 = vadd.f32 0.0, %v1095
  %v1097 = vpop.f32.mrb[0].mxu0
  %v1098 = vadd.f32 0.0, %v1097
  %1099 = vdwg.mxu0
  %1100 = vmatprep.subr.mxu0 %v23
  %1101 = vmatpush1.msra.mxu0 %v22
  %1102 = vmatprep.subr.mxu0 %v27
  %1103 = vmatpush1.msra.mxu0 %v26
  %1104 = vmatprep.subr.mxu0 %v31
  %1105 = vmatpush1.msra.mxu0 %v30
  %1106 = vmatprep.subr.mxu0 %v35
  %1107 = vmatpush1.msra.mxu0 %v34
  %1108 = vmatprep.subr.mxu0 %v39
  %1109 = vmatpush1.msra.mxu0 %v38
  %1110 = vmatprep.subr.mxu0 %v43
  %1111 = vmatpush1.msra.mxu0 %v42
  %1112 = vmatprep.subr.mxu0 %v47
  %1113 = vmatpush1.msra.mxu0 %v46
  %1114 = vmatprep.subr.mxu0 %v51
  %1115 = vmatpush1.msra.mxu0 %v50
  %1116 = vmatprep.subr.mxu0 %v55
  %1117 = vmatpush1.msra.mxu0 %v54
  %1118 = vmatprep.subr.mxu0 %v59
  %1119 = vmatpush1.msra.mxu0 %v58
  %1120 = vmatprep.subr.mxu0 %v63
  %1121 = vmatpush1.msra.mxu0 %v62
  %1122 = vmatprep.subr.mxu0 %v67
  %1123 = vmatpush1.msra.mxu0 %v66
  %1124 = vmatprep.subr.mxu0 %v71
  %1125 = vmatpush1.msra.mxu0 %v70
  %1126 = vmatprep.subr.mxu0 %v75
  %1127 = vmatpush1.msra.mxu0 %v74
  %1128 = vmatprep.subr.mxu0 %v79
  %1129 = vmatpush1.msra.mxu0 %v78
  %1130 = vmatprep.subr.mxu0 %v83
  %1131 = vmatpush1.msra.mxu0 %v82
  %1132 = vmatprep.subr.mxu0 0.0
  %1133 = vmatpush1.msra.mxu0 0.0
  %1134 = vmatprep.subr.mxu0 0.0
  %1135 = vmatpush1.msra.mxu0 0.0
  %1136 = vmatprep.subr.mxu0 0.0
  %1137 = vmatpush1.msra.mxu0 0.0
  %1138 = vmatprep.subr.mxu0 0.0
  %1139 = vmatpush1.msra.mxu0 0.0
  %1140 = vmatprep.subr.mxu0 0.0
  %1141 = vmatpush1.msra.mxu0 0.0
  %1142 = vmatprep.subr.mxu0 0.0
  %1143 = vmatpush1.msra.mxu0 0.0
  %1144 = vmatprep.subr.mxu0 0.0
  %1145 = vmatpush1.msra.mxu0 0.0
  %1146 = vmatprep.subr.mxu0 0.0
  %1147 = vmatpush1.msra.mxu0 0.0
  %1148 = vmatprep.subr.mxu0 0.0
  %1149 = vmatpush1.msra.mxu0 0.0
  %1150 = vmatprep.subr.mxu0 0.0
  %1151 = vmatpush1.msra.mxu0 0.0
  %1152 = vmatprep.subr.mxu0 0.0
  %1153 = vmatpush1.msra.mxu0 0.0
  %1154 = vmatprep.subr.mxu0 0.0
  %1155 = vmatpush1.msra.mxu0 0.0
  %1156 = vmatprep.subr.mxu0 0.0
  %1157 = vmatpush1.msra.mxu0 0.0
  %1158 = vmatprep.subr.mxu0 0.0
  %1159 = vmatpush1.msra.mxu0 0.0
  %1160 = vmatprep.subr.mxu0 0.0
  %1161 = vmatpush1.msra.mxu0 0.0
  %1162 = vmatprep.subr.mxu0 0.0
  %1163 = vmatpush1.msra.mxu0 0.0
  %1164 = vmatprep.mubr.f32.mxu0 0.0
  %1165 = vmatmul.mubr.f32.gmra.mrb[0].mxu0 %v1022
  %v1166 = vpop.f32.mrb[0].mxu0
  %v1167 = vadd.f32 0.0, %v1166
  %v1168 = vpop.f32.mrb[0].mxu0
  %v1169 = vadd.f32 0.0, %v1168
  %1170 = vdwg.mxu0
  %v1171 = vadd.f32 %v1025, %v1096
  %v1172 = vadd.f32 %v1026, %v1098
  %v1173 = vadd.f32 %v1027, %v1167
  %v1174 = vadd.f32 %v1028, %v1169
  %v1175 = vxor.u32 %v1171, 2147483648
  %v1176 = vmul.f32 %v1175, 1.442695
  %v1177 = vpow.pop %v1176
  %v1178 = vadd.f32 %v1177, 1.0
  %v1179 = vrcp.pop %v1178
  %v1180 = vmul.f32 1.0, %v1179
  %v1181 = vxor.u32 %v1172, 2147483648
  %v1182 = vmul.f32 %v1181, 1.442695
  %v1183 = vpow.pop %v1182
  %v1184 = vadd.f32 %v1183, 1.0
  %v1185 = vrcp.pop %v1184
  %v1186 = vmul.f32 1.0, %v1185
  %v1187 = vtanh.pop %v1173
  %v1188 = vxor.u32 %v1174, 2147483648
  %v1189 = vmul.f32 %v1188, 1.442695
  %v1190 = vpow.pop %v1189
  %v1191 = vadd.f32 %v1190, 1.0
  %v1192 = vrcp.pop %v1191
  %v1193 = vmul.f32 1.0, %v1192
  %v1194 = vmul.f32 %v1186, %v1023
  %v1195 = vmul.f32 %v1180, %v1187
  %v1196 = vadd.f32 %v1194, %v1195
  %v1197 = vtanh.pop %v1196
  %v1198 = vmul.f32 %v1193, %v1197
  %1199 = vst [vmem:[#allocation2] sm:$0xff] %v1198
  %1200 = vst [vmem:[#allocation3] sm:$0xff] %v1196
  %s1201 = scalar_lea.vmem %s2, 40
  %1202 = vst [vmem:[%s1201] sm:$0xff] %v1198
  %s1203 = sadd.s32 %s263, 5
  %p1204 = scmp.eq.s32.totalorder %s1203, 7
  // Predicated region
  $region34: #{text_generator_forward.4} parent=0 // pred_check
    %p1205 = pneg %p1204
  $region35: #{text_generator_forward.4} parent=0 // pred_check_branch
    %1207 = sbr.rel (%p1205) target = $region37
  $region36: #{text_generator_forward.4} parent=0 // pred_region
    %1208 = vst [vmem:[%s3] sm:$0xff] %v1198
    %1209 = vst [vmem:[%s4] sm:$0xff] %v1196
  $region37: #{text_generator_forward.4} parent=0 // pred_fallthru
    _
  %v1210 = vld [vmem:[#allocation2] sm:$0xff]
  %v1211 = vld [vmem:[#allocation3] sm:$0xff]
  %s1212 = scalar_lea.vmem %s0, 192
  %v1213 = vld [vmem:[%s1212] sm:$0xff]
  %v1214 = vld [vmem:[%s1212 + $0x8] sm:$0xff]
  %v1215 = vld [vmem:[%s1212 + $0x10] sm:$0xff]
  %v1216 = vld [vmem:[%s1212 + $0x18] sm:$0xff]
  %1217 = vmatprep.subr.mxu0 %v21
  %1218 = vmatpush1.msra.mxu0 %v20
  %1219 = vmatprep.subr.mxu0 %v25
  %1220 = vmatpush1.msra.mxu0 %v24
  %1221 = vmatprep.subr.mxu0 %v29
  %1222 = vmatpush1.msra.mxu0 %v28
  %1223 = vmatprep.subr.mxu0 %v33
  %1224 = vmatpush1.msra.mxu0 %v32
  %1225 = vmatprep.subr.mxu0 %v37
  %1226 = vmatpush1.msra.mxu0 %v36
  %1227 = vmatprep.subr.mxu0 %v41
  %1228 = vmatpush1.msra.mxu0 %v40
  %1229 = vmatprep.subr.mxu0 %v45
  %1230 = vmatpush1.msra.mxu0 %v44
  %1231 = vmatprep.subr.mxu0 %v49
  %1232 = vmatpush1.msra.mxu0 %v48
  %1233 = vmatprep.subr.mxu0 %v53
  %1234 = vmatpush1.msra.mxu0 %v52
  %1235 = vmatprep.subr.mxu0 %v57
  %1236 = vmatpush1.msra.mxu0 %v56
  %1237 = vmatprep.subr.mxu0 %v61
  %1238 = vmatpush1.msra.mxu0 %v60
  %1239 = vmatprep.subr.mxu0 %v65
  %1240 = vmatpush1.msra.mxu0 %v64
  %1241 = vmatprep.subr.mxu0 %v69
  %1242 = vmatpush1.msra.mxu0 %v68
  %1243 = vmatprep.subr.mxu0 %v73
  %1244 = vmatpush1.msra.mxu0 %v72
  %1245 = vmatprep.subr.mxu0 %v77
  %1246 = vmatpush1.msra.mxu0 %v76
  %1247 = vmatprep.subr.mxu0 %v81
  %1248 = vmatpush1.msra.mxu0 %v80
  %1249 = vmatprep.subr.mxu0 0.0
  %1250 = vmatpush1.msra.mxu0 0.0
  %1251 = vmatprep.subr.mxu0 0.0
  %1252 = vmatpush1.msra.mxu0 0.0
  %1253 = vmatprep.subr.mxu0 0.0
  %1254 = vmatpush1.msra.mxu0 0.0
  %1255 = vmatprep.subr.mxu0 0.0
  %1256 = vmatpush1.msra.mxu0 0.0
  %1257 = vmatprep.subr.mxu0 0.0
  %1258 = vmatpush1.msra.mxu0 0.0
  %1259 = vmatprep.subr.mxu0 0.0
  %1260 = vmatpush1.msra.mxu0 0.0
  %1261 = vmatprep.subr.mxu0 0.0
  %1262 = vmatpush1.msra.mxu0 0.0
  %1263 = vmatprep.subr.mxu0 0.0
  %1264 = vmatpush1.msra.mxu0 0.0
  %1265 = vmatprep.subr.mxu0 0.0
  %1266 = vmatpush1.msra.mxu0 0.0
  %1267 = vmatprep.subr.mxu0 0.0
  %1268 = vmatpush1.msra.mxu0 0.0
  %1269 = vmatprep.subr.mxu0 0.0
  %1270 = vmatpush1.msra.mxu0 0.0
  %1271 = vmatprep.subr.mxu0 0.0
  %1272 = vmatpush1.msra.mxu0 0.0
  %1273 = vmatprep.subr.mxu0 0.0
  %1274 = vmatpush1.msra.mxu0 0.0
  %1275 = vmatprep.subr.mxu0 0.0
  %1276 = vmatpush1.msra.mxu0 0.0
  %1277 = vmatprep.subr.mxu0 0.0
  %1278 = vmatpush1.msra.mxu0 0.0
  %1279 = vmatprep.subr.mxu0 0.0
  %1280 = vmatpush1.msra.mxu0 0.0
  %1281 = vmatprep.mubr.f32.mxu0 0.0
  %1282 = vmatmul.mubr.f32.gmra.mrb[0].mxu0 %v1210
  %v1283 = vpop.f32.mrb[0].mxu0
  %v1284 = vadd.f32 0.0, %v1283
  %v1285 = vpop.f32.mrb[0].mxu0
  %v1286 = vadd.f32 0.0, %v1285
  %1287 = vdwg.mxu0
  %1288 = vmatprep.subr.mxu0 %v23
  %1289 = vmatpush1.msra.mxu0 %v22
  %1290 = vmatprep.subr.mxu0 %v27
  %1291 = vmatpush1.msra.mxu0 %v26
  %1292 = vmatprep.subr.mxu0 %v31
  %1293 = vmatpush1.msra.mxu0 %v30
  %1294 = vmatprep.subr.mxu0 %v35
  %1295 = vmatpush1.msra.mxu0 %v34
  %1296 = vmatprep.subr.mxu0 %v39
  %1297 = vmatpush1.msra.mxu0 %v38
  %1298 = vmatprep.subr.mxu0 %v43
  %1299 = vmatpush1.msra.mxu0 %v42
  %1300 = vmatprep.subr.mxu0 %v47
  %1301 = vmatpush1.msra.mxu0 %v46
  %1302 = vmatprep.subr.mxu0 %v51
  %1303 = vmatpush1.msra.mxu0 %v50
  %1304 = vmatprep.subr.mxu0 %v55
  %1305 = vmatpush1.msra.mxu0 %v54
  %1306 = vmatprep.subr.mxu0 %v59
  %1307 = vmatpush1.msra.mxu0 %v58
  %1308 = vmatprep.subr.mxu0 %v63
  %1309 = vmatpush1.msra.mxu0 %v62
  %1310 = vmatprep.subr.mxu0 %v67
  %1311 = vmatpush1.msra.mxu0 %v66
  %1312 = vmatprep.subr.mxu0 %v71
  %1313 = vmatpush1.msra.mxu0 %v70
  %1314 = vmatprep.subr.mxu0 %v75
  %1315 = vmatpush1.msra.mxu0 %v74
  %1316 = vmatprep.subr.mxu0 %v79
  %1317 = vmatpush1.msra.mxu0 %v78
  %1318 = vmatprep.subr.mxu0 %v83
  %1319 = vmatpush1.msra.mxu0 %v82
  %1320 = vmatprep.subr.mxu0 0.0
  %1321 = vmatpush1.msra.mxu0 0.0
  %1322 = vmatprep.subr.mxu0 0.0
  %1323 = vmatpush1.msra.mxu0 0.0
  %1324 = vmatprep.subr.mxu0 0.0
  %1325 = vmatpush1.msra.mxu0 0.0
  %1326 = vmatprep.subr.mxu0 0.0
  %1327 = vmatpush1.msra.mxu0 0.0
  %1328 = vmatprep.subr.mxu0 0.0
  %1329 = vmatpush1.msra.mxu0 0.0
  %1330 = vmatprep.subr.mxu0 0.0
  %1331 = vmatpush1.msra.mxu0 0.0
  %1332 = vmatprep.subr.mxu0 0.0
  %1333 = vmatpush1.msra.mxu0 0.0
  %1334 = vmatprep.subr.mxu0 0.0
  %1335 = vmatpush1.msra.mxu0 0.0
  %1336 = vmatprep.subr.mxu0 0.0
  %1337 = vmatpush1.msra.mxu0 0.0
  %1338 = vmatprep.subr.mxu0 0.0
  %1339 = vmatpush1.msra.mxu0 0.0
  %1340 = vmatprep.subr.mxu0 0.0
  %1341 = vmatpush1.msra.mxu0 0.0
  %1342 = vmatprep.subr.mxu0 0.0
  %1343 = vmatpush1.msra.mxu0 0.0
  %1344 = vmatprep.subr.mxu0 0.0
  %1345 = vmatpush1.msra.mxu0 0.0
  %1346 = vmatprep.subr.mxu0 0.0
  %1347 = vmatpush1.msra.mxu0 0.0
  %1348 = vmatprep.subr.mxu0 0.0
  %1349 = vmatpush1.msra.mxu0 0.0
  %1350 = vmatprep.subr.mxu0 0.0
  %1351 = vmatpush1.msra.mxu0 0.0
  %1352 = vmatprep.mubr.f32.mxu0 0.0
  %1353 = vmatmul.mubr.f32.gmra.mrb[0].mxu0 %v1210
  %v1354 = vpop.f32.mrb[0].mxu0
  %v1355 = vadd.f32 0.0, %v1354
  %v1356 = vpop.f32.mrb[0].mxu0
  %v1357 = vadd.f32 0.0, %v1356
  %1358 = vdwg.mxu0
  %v1359 = vadd.f32 %v1213, %v1284
  %v1360 = vadd.f32 %v1214, %v1286
  %v1361 = vadd.f32 %v1215, %v1355
  %v1362 = vadd.f32 %v1216, %v1357
  %v1363 = vxor.u32 %v1359, 2147483648
  %v1364 = vmul.f32 %v1363, 1.442695
  %v1365 = vpow.pop %v1364
  %v1366 = vadd.f32 %v1365, 1.0
  %v1367 = vrcp.pop %v1366
  %v1368 = vmul.f32 1.0, %v1367
  %v1369 = vxor.u32 %v1360, 2147483648
  %v1370 = vmul.f32 %v1369, 1.442695
  %v1371 = vpow.pop %v1370
  %v1372 = vadd.f32 %v1371, 1.0
  %v1373 = vrcp.pop %v1372
  %v1374 = vmul.f32 1.0, %v1373
  %v1375 = vtanh.pop %v1361
  %v1376 = vxor.u32 %v1362, 2147483648
  %v1377 = vmul.f32 %v1376, 1.442695
  %v1378 = vpow.pop %v1377
  %v1379 = vadd.f32 %v1378, 1.0
  %v1380 = vrcp.pop %v1379
  %v1381 = vmul.f32 1.0, %v1380
  %v1382 = vmul.f32 %v1374, %v1211
  %v1383 = vmul.f32 %v1368, %v1375
  %v1384 = vadd.f32 %v1382, %v1383
  %v1385 = vtanh.pop %v1384
  %v1386 = vmul.f32 %v1381, %v1385
  %1387 = vst [vmem:[#allocation2] sm:$0xff] %v1386
  %1388 = vst [vmem:[#allocation3] sm:$0xff] %v1384
  %s1389 = scalar_lea.vmem %s2, 48
  %1390 = vst [vmem:[%s1389] sm:$0xff] %v1386
  %s1391 = sadd.s32 %s263, 6
  %p1392 = scmp.eq.s32.totalorder %s1391, 7
  // Predicated region
  $region38: #{text_generator_forward.4} parent=0 // pred_check
    %p1393 = pneg %p1392
  $region39: #{text_generator_forward.4} parent=0 // pred_check_branch
    %1395 = sbr.rel (%p1393) target = $region41
  $region40: #{text_generator_forward.4} parent=0 // pred_region
    %1396 = vst [vmem:[%s3] sm:$0xff] %v1386
    %1397 = vst [vmem:[%s4] sm:$0xff] %v1384
  $region41: #{text_generator_forward.4} parent=0 // pred_fallthru
    _
  %v1398 = vld [vmem:[#allocation2] sm:$0xff]
  %v1399 = vld [vmem:[#allocation3] sm:$0xff]
  %s1400 = scalar_lea.vmem %s0, 224
  %v1401 = vld [vmem:[%s1400] sm:$0xff]
  %v1402 = vld [vmem:[%s1400 + $0x8] sm:$0xff]
  %v1403 = vld [vmem:[%s1400 + $0x10] sm:$0xff]
  %v1404 = vld [vmem:[%s1400 + $0x18] sm:$0xff]
  %1405 = vmatprep.subr.mxu0 %v21
  %1406 = vmatpush1.msra.mxu0 %v20
  %1407 = vmatprep.subr.mxu0 %v25
  %1408 = vmatpush1.msra.mxu0 %v24
  %1409 = vmatprep.subr.mxu0 %v29
  %1410 = vmatpush1.msra.mxu0 %v28
  %1411 = vmatprep.subr.mxu0 %v33
  %1412 = vmatpush1.msra.mxu0 %v32
  %1413 = vmatprep.subr.mxu0 %v37
  %1414 = vmatpush1.msra.mxu0 %v36
  %1415 = vmatprep.subr.mxu0 %v41
  %1416 = vmatpush1.msra.mxu0 %v40
  %1417 = vmatprep.subr.mxu0 %v45
  %1418 = vmatpush1.msra.mxu0 %v44
  %1419 = vmatprep.subr.mxu0 %v49
  %1420 = vmatpush1.msra.mxu0 %v48
  %1421 = vmatprep.subr.mxu0 %v53
  %1422 = vmatpush1.msra.mxu0 %v52
  %1423 = vmatprep.subr.mxu0 %v57
  %1424 = vmatpush1.msra.mxu0 %v56
  %1425 = vmatprep.subr.mxu0 %v61
  %1426 = vmatpush1.msra.mxu0 %v60
  %1427 = vmatprep.subr.mxu0 %v65
  %1428 = vmatpush1.msra.mxu0 %v64
  %1429 = vmatprep.subr.mxu0 %v69
  %1430 = vmatpush1.msra.mxu0 %v68
  %1431 = vmatprep.subr.mxu0 %v73
  %1432 = vmatpush1.msra.mxu0 %v72
  %1433 = vmatprep.subr.mxu0 %v77
  %1434 = vmatpush1.msra.mxu0 %v76
  %1435 = vmatprep.subr.mxu0 %v81
  %1436 = vmatpush1.msra.mxu0 %v80
  %1437 = vmatprep.subr.mxu0 0.0
  %1438 = vmatpush1.msra.mxu0 0.0
  %1439 = vmatprep.subr.mxu0 0.0
  %1440 = vmatpush1.msra.mxu0 0.0
  %1441 = vmatprep.subr.mxu0 0.0
  %1442 = vmatpush1.msra.mxu0 0.0
  %1443 = vmatprep.subr.mxu0 0.0
  %1444 = vmatpush1.msra.mxu0 0.0
  %1445 = vmatprep.subr.mxu0 0.0
  %1446 = vmatpush1.msra.mxu0 0.0
  %1447 = vmatprep.subr.mxu0 0.0
  %1448 = vmatpush1.msra.mxu0 0.0
  %1449 = vmatprep.subr.mxu0 0.0
  %1450 = vmatpush1.msra.mxu0 0.0
  %1451 = vmatprep.subr.mxu0 0.0
  %1452 = vmatpush1.msra.mxu0 0.0
  %1453 = vmatprep.subr.mxu0 0.0
  %1454 = vmatpush1.msra.mxu0 0.0
  %1455 = vmatprep.subr.mxu0 0.0
  %1456 = vmatpush1.msra.mxu0 0.0
  %1457 = vmatprep.subr.mxu0 0.0
  %1458 = vmatpush1.msra.mxu0 0.0
  %1459 = vmatprep.subr.mxu0 0.0
  %1460 = vmatpush1.msra.mxu0 0.0
  %1461 = vmatprep.subr.mxu0 0.0
  %1462 = vmatpush1.msra.mxu0 0.0
  %1463 = vmatprep.subr.mxu0 0.0
  %1464 = vmatpush1.msra.mxu0 0.0
  %1465 = vmatprep.subr.mxu0 0.0
  %1466 = vmatpush1.msra.mxu0 0.0
  %1467 = vmatprep.subr.mxu0 0.0
  %1468 = vmatpush1.msra.mxu0 0.0
  %1469 = vmatprep.mubr.f32.mxu0 0.0
  %1470 = vmatmul.mubr.f32.gmra.mrb[0].mxu0 %v1398
  %v1471 = vpop.f32.mrb[0].mxu0
  %v1472 = vadd.f32 0.0, %v1471
  %v1473 = vpop.f32.mrb[0].mxu0
  %v1474 = vadd.f32 0.0, %v1473
  %1475 = vdwg.mxu0
  %1476 = vmatprep.subr.mxu0 %v23
  %1477 = vmatpush1.msra.mxu0 %v22
  %1478 = vmatprep.subr.mxu0 %v27
  %1479 = vmatpush1.msra.mxu0 %v26
  %1480 = vmatprep.subr.mxu0 %v31
  %1481 = vmatpush1.msra.mxu0 %v30
  %1482 = vmatprep.subr.mxu0 %v35
  %1483 = vmatpush1.msra.mxu0 %v34
  %1484 = vmatprep.subr.mxu0 %v39
  %1485 = vmatpush1.msra.mxu0 %v38
  %1486 = vmatprep.subr.mxu0 %v43
  %1487 = vmatpush1.msra.mxu0 %v42
  %1488 = vmatprep.subr.mxu0 %v47
  %1489 = vmatpush1.msra.mxu0 %v46
  %1490 = vmatprep.subr.mxu0 %v51
  %1491 = vmatpush1.msra.mxu0 %v50
  %1492 = vmatprep.subr.mxu0 %v55
  %1493 = vmatpush1.msra.mxu0 %v54
  %1494 = vmatprep.subr.mxu0 %v59
  %1495 = vmatpush1.msra.mxu0 %v58
  %1496 = vmatprep.subr.mxu0 %v63
  %1497 = vmatpush1.msra.mxu0 %v62
  %1498 = vmatprep.subr.mxu0 %v67
  %1499 = vmatpush1.msra.mxu0 %v66
  %1500 = vmatprep.subr.mxu0 %v71
  %1501 = vmatpush1.msra.mxu0 %v70
  %1502 = vmatprep.subr.mxu0 %v75
  %1503 = vmatpush1.msra.mxu0 %v74
  %1504 = vmatprep.subr.mxu0 %v79
  %1505 = vmatpush1.msra.mxu0 %v78
  %1506 = vmatprep.subr.mxu0 %v83
  %1507 = vmatpush1.msra.mxu0 %v82
  %1508 = vmatprep.subr.mxu0 0.0
  %1509 = vmatpush1.msra.mxu0 0.0
  %1510 = vmatprep.subr.mxu0 0.0
  %1511 = vmatpush1.msra.mxu0 0.0
  %1512 = vmatprep.subr.mxu0 0.0
  %1513 = vmatpush1.msra.mxu0 0.0
  %1514 = vmatprep.subr.mxu0 0.0
  %1515 = vmatpush1.msra.mxu0 0.0
  %1516 = vmatprep.subr.mxu0 0.0
  %1517 = vmatpush1.msra.mxu0 0.0
  %1518 = vmatprep.subr.mxu0 0.0
  %1519 = vmatpush1.msra.mxu0 0.0
  %1520 = vmatprep.subr.mxu0 0.0
  %1521 = vmatpush1.msra.mxu0 0.0
  %1522 = vmatprep.subr.mxu0 0.0
  %1523 = vmatpush1.msra.mxu0 0.0
  %1524 = vmatprep.subr.mxu0 0.0
  %1525 = vmatpush1.msra.mxu0 0.0
  %1526 = vmatprep.subr.mxu0 0.0
  %1527 = vmatpush1.msra.mxu0 0.0
  %1528 = vmatprep.subr.mxu0 0.0
  %1529 = vmatpush1.msra.mxu0 0.0
  %1530 = vmatprep.subr.mxu0 0.0
  %1531 = vmatpush1.msra.mxu0 0.0
  %1532 = vmatprep.subr.mxu0 0.0
  %1533 = vmatpush1.msra.mxu0 0.0
  %1534 = vmatprep.subr.mxu0 0.0
  %1535 = vmatpush1.msra.mxu0 0.0
  %1536 = vmatprep.subr.mxu0 0.0
  %1537 = vmatpush1.msra.mxu0 0.0
  %1538 = vmatprep.subr.mxu0 0.0
  %1539 = vmatpush1.msra.mxu0 0.0
  %1540 = vmatprep.mubr.f32.mxu0 0.0
  %1541 = vmatmul.mubr.f32.gmra.mrb[0].mxu0 %v1398
  %v1542 = vpop.f32.mrb[0].mxu0
  %v1543 = vadd.f32 0.0, %v1542
  %v1544 = vpop.f32.mrb[0].mxu0
  %v1545 = vadd.f32 0.0, %v1544
  %1546 = vdwg.mxu0
  %v1547 = vadd.f32 %v1401, %v1472
  %v1548 = vadd.f32 %v1402, %v1474
  %v1549 = vadd.f32 %v1403, %v1543
  %v1550 = vadd.f32 %v1404, %v1545
  %v1551 = vxor.u32 %v1547, 2147483648
  %v1552 = vmul.f32 %v1551, 1.442695
  %v1553 = vpow.pop %v1552
  %v1554 = vadd.f32 %v1553, 1.0
  %v1555 = vrcp.pop %v1554
  %v1556 = vmul.f32 1.0, %v1555
  %v1557 = vxor.u32 %v1548, 2147483648
  %v1558 = vmul.f32 %v1557, 1.442695
  %v1559 = vpow.pop %v1558
  %v1560 = vadd.f32 %v1559, 1.0
  %v1561 = vrcp.pop %v1560
  %v1562 = vmul.f32 1.0, %v1561
  %v1563 = vtanh.pop %v1549
  %v1564 = vxor.u32 %v1550, 2147483648
  %v1565 = vmul.f32 %v1564, 1.442695
  %v1566 = vpow.pop %v1565
  %v1567 = vadd.f32 %v1566, 1.0
  %v1568 = vrcp.pop %v1567
  %v1569 = vmul.f32 1.0, %v1568
  %v1570 = vmul.f32 %v1562, %v1399
  %v1571 = vmul.f32 %v1556, %v1563
  %v1572 = vadd.f32 %v1570, %v1571
  %v1573 = vtanh.pop %v1572
  %v1574 = vmul.f32 %v1569, %v1573
  %1575 = vst [vmem:[#allocation2] sm:$0xff] %v1574
  %1576 = vst [vmem:[#allocation3] sm:$0xff] %v1572
  %s1577 = scalar_lea.vmem %s2, 56
  %1578 = vst [vmem:[%s1577] sm:$0xff] %v1574
  %s1579 = sadd.s32 %s263, 7
  %p1580 = scmp.eq.s32.totalorder %s1579, 7
  // Predicated region
  $region42: #{text_generator_forward.4} parent=0 // pred_check
    %p1581 = pneg %p1580
  $region43: #{text_generator_forward.4} parent=0 // pred_check_branch
    %1583 = sbr.rel (%p1581) target = $region45
  $region44: #{text_generator_forward.4} parent=0 // pred_region
    %1584 = vst [vmem:[%s3] sm:$0xff] %v1574
    %1585 = vst [vmem:[%s4] sm:$0xff] %v1572
  $region45: #{text_generator_forward.4} parent=0 // pred_fallthru
    _
  // Predicated region
  $region46: #{text_generator_forward.4} parent=0 // pred_check
    _
  $region47: #{text_generator_forward.4} parent=0 // pred_check_branch
    %1587 = sbr.rel (0) target = $region49
  $region48: #{text_generator_forward.4} parent=0 // pred_region
    _
  $region49: #{text_generator_forward.4} parent=0 // pred_fallthru
    _
  // Predicated region
  $region50: #{text_generator_forward.4} parent=0 // pred_check
    _
  $region51: #{text_generator_forward.4} parent=0 // pred_check_branch
    %1589 = sbr.rel (0) target = $region53
  $region52: #{text_generator_forward.4} parent=0 // pred_region
    _
  $region53: #{text_generator_forward.4} parent=0 // pred_fallthru
    _
  // Predicated region
  $region54: #{text_generator_forward.4} parent=0 // pred_check
    _
  $region55: #{text_generator_forward.4} parent=0 // pred_check_branch
    %1591 = sbr.rel (0) target = $region57
  $region56: #{text_generator_forward.4} parent=0 // pred_region
    _
  $region57: #{text_generator_forward.4} parent=0 // pred_fallthru
    _
  // Predicated region
  $region58: #{text_generator_forward.4} parent=0 // pred_check
    _
  $region59: #{text_generator_forward.4} parent=0 // pred_check_branch
    %1593 = sbr.rel (0) target = $region61
  $region60: #{text_generator_forward.4} parent=0 // pred_region
    _
  $region61: #{text_generator_forward.4} parent=0 // pred_fallthru
    _
  // Predicated region
  $region62: #{text_generator_forward.4} parent=0 // pred_check
    _
  $region63: #{text_generator_forward.4} parent=0 // pred_check_branch
    %1595 = sbr.rel (0) target = $region65
  $region64: #{text_generator_forward.4} parent=0 // pred_region
    _
  $region65: #{text_generator_forward.4} parent=0 // pred_fallthru
    _
  // Predicated region
  $region66: #{text_generator_forward.4} parent=0 // pred_check
    _
  $region67: #{text_generator_forward.4} parent=0 // pred_check_branch
    %1597 = sbr.rel (0) target = $region69
  $region68: #{text_generator_forward.4} parent=0 // pred_region
    _
  $region69: #{text_generator_forward.4} parent=0 // pred_fallthru
    _

</llo_original>
